<compile_context>
chip_gen: v5e
topology: v5e:2x2
jax: 0.10.0
libtpu: 0.0.40
codegen_flags: <defaults>
</compile_context>

<pallas_src>
import jax
import jax.numpy as jnp
import numpy as np
from jax.experimental import pallas as pl
from jax.experimental.pallas import tpu as pltpu

NUM_FPN_LAYERS = 2
N_LEVELS = 4
F_CHANNELS = 128                     # module default f_channels=128 -> lane-dense features
IN_CHANNELS_LIST = [8, 16, 32, 32]   # backbone-stub channels of p1, p2, p3, p5
BN_EPS = 1e-5
CONV_DTYPE = jnp.bfloat16            # MXU operand dtype for the 1x1-conv matmuls
VMEM_LIMIT = 64 * 1024 * 1024        # explicit scoped-VMEM cap (re-derive for v7x/productn)


# ---------------------------------------------------------------------------
# Kernel A: backbone stub + chained FPN-stub convs + fused SideHead contraction,
# for ALL levels and ALL FPN layers, one launch.  Channels-first layout:
#   activations are (C, Hi*Wi) with the spatial extent in the 128-lane dim.
# Outputs: per level, the single-channel side map already summed over layers.
# ---------------------------------------------------------------------------
def _make_feature_side_kernel(n_levels, n_layers, cimg):
    n_in_per = 3 + 3 * n_layers

    def kernel(*refs):
        in_refs = refs[: n_levels * n_in_per]
        out_refs = refs[n_levels * n_in_per:]
        for i in range(n_levels):
            lv = in_refs[i * n_in_per:(i + 1) * n_in_per]
            xT = lv[0][0]                                   # (cimg, HWi) f32, lane-dense
            wb = lv[1][...]                                 # (Cb, cimg)  f32
            bb = lv[2][...]                                 # (Cb, 1)     f32
            # Backbone stub 1x1 conv: K=cimg(=3) is too thin for the MXU -> 3 VPU FMAs.
            acc = wb[:, 0:1] * xT[0:1, :]
            for c in range(1, cimg):
                acc = acc + wb[:, c:c + 1] * xT[c:c + 1, :]
            f = jnp.maximum(acc + bb, 0.0)                  # (Cb, HWi) f32
            side = None
            for l in range(n_layers):
                wf_ref = lv[3 + 3 * l]                      # (F, Cprev) bf16 (host pre-cast)
                bf_ref = lv[4 + 3 * l]                      # (F, 1)     f32
                ew_ref = lv[5 + 3 * l]                      # (1, F)     f32 folded side conv
                # FPN stub 1x1 conv on the MXU, bf16 operands, f32 accumulation.
                f = jnp.dot(wf_ref[...], f.astype(CONV_DTYPE),
                            preferred_element_type=jnp.float32) + bf_ref[...]
                f = jnp.maximum(f, 0.0)                     # (F, HWi) f32
                # SideHead contraction (conv1x1 + BN scale + softmax side/layer weights
                # folded into ew); kept f32 for accuracy, FLOPs are negligible.
                contrib = jnp.dot(ew_ref[...], f,
                                  preferred_element_type=jnp.float32)   # (1, HWi)
                side = contrib if side is None else side + contrib
            out_refs[i][0] = side                           # lane-dense (1, HWi) store
    return kernel


def feature_side_stack(pooled, backbone_params, fpn_params, eff_ws):
    """pooled[i]: (N, Cimg, Hi*Wi) f32; eff_ws[l][i]: (1, F) f32 folded contraction vectors.
    Returns side[i]: (N, 1, Hi*Wi) f32 (already summed over FPN layers)."""
    N, cimg, _ = pooled[0].shape
    n_levels = len(pooled)
    n_layers = len(fpn_params)

    args, in_specs = [], []
    out_shapes, out_specs = [], []
    for i in range(n_levels):
        hw = pooled[i].shape[2]
        wb, bb = backbone_params[i]
        args += [pooled[i], wb, bb.reshape(-1, 1)]
        in_specs += [
            pl.BlockSpec((1, cimg, hw), lambda n: (n, 0, 0)),
            pl.BlockSpec(wb.shape, lambda n: (0, 0)),
            pl.BlockSpec((wb.shape[0], 1), lambda n: (0, 0)),
        ]
        for l in range(n_layers):
            wf, bf = fpn_params[l][i]
            args += [wf.astype(CONV_DTYPE), bf.reshape(-1, 1), eff_ws[l][i]]
            in_specs += [
                pl.BlockSpec(wf.shape, lambda n: (0, 0)),
                pl.BlockSpec((wf.shape[0], 1), lambda n: (0, 0)),
                pl.BlockSpec((1, F_CHANNELS), lambda n: (0, 0)),
            ]
        out_shapes.append(jax.ShapeDtypeStruct((N, 1, hw), jnp.float32))
        out_specs.append(pl.BlockSpec((1, 1, hw), lambda n: (n, 0, 0)))

    return pl.pallas_call(
        _make_feature_side_kernel(n_levels, n_layers, cimg),
        out_shape=tuple(out_shapes),
        grid=(N,),
        in_specs=in_specs,
        out_specs=tuple(out_specs),
        compiler_params=pltpu.CompilerParams(
            dimension_semantics=("parallel",),
            vmem_limit_bytes=VMEM_LIMIT),
    )(*args)


# ---------------------------------------------------------------------------
# Kernel B: bilinear resizes (once per level, statically skipped for the identity
# level 0) + accumulation + single folded bias.  Everything f32; the accumulator
# and output are padded to a 128-multiple lane width so stores are unmasked.
# ---------------------------------------------------------------------------
def _make_fuse_kernel(n_upsampled):
    def kernel(*refs):
        bias_ref = refs[0]                     # SMEM (1,) f32: all side biases folded
        s0_ref = refs[1]                       # (1, H0, W0p) f32, level 0 (no resize)
        out_ref = refs[-1]                     # (1, H0, W0p) f32
        acc = s0_ref[0]
        pos = 2
        for _ in range(n_upsampled):
            s_ref = refs[pos]                  # (1, Hi, Wi) f32
            rw_ref = refs[pos + 1]             # (Wi, W0p)   f32 bilinear width taps (padded)
            lh_ref = refs[pos + 2]             # (H0, Hi)    f32 bilinear height taps
            pos += 3
            t = jnp.dot(s_ref[0], rw_ref[...],
                        preferred_element_type=jnp.float32)             # (Hi, W0p)
            acc = acc + jnp.dot(lh_ref[...], t,
                                preferred_element_type=jnp.float32)     # (H0, W0p)
        out_ref[0] = acc + bias_ref[0]         # single bias add, lane-dense store
    return kernel


def fused_resize_and_sum(side_maps, sizes, total_bias):
    """side_maps[i]: (N, Hi, Wi) f32 (summed over layers). Returns fuse (N, H0, W0) f32."""
    N = side_maps[0].shape[0]
    H0, W0 = sizes[0]
    W0p = ((W0 + 127) // 128) * 128            # lane-dense accumulator / store width

    s0 = jnp.pad(side_maps[0], ((0, 0), (0, 0), (0, W0p - W0)))
    args = [jnp.reshape(total_bias, (1,)).astype(jnp.float32), s0]
    in_specs = [
        pl.BlockSpec(memory_space=pltpu.MemorySpace.SMEM),
        pl.BlockSpec((1, H0, W0p), lambda n: (n, 0, 0)),
    ]
    for i in range(1, len(side_maps)):
        hi, wi = sizes[i]
        rw = np.zeros((wi, W0p), np.float32)
        rw[:, :W0] = bilinear_matrix(W0, wi).T
        lh = bilinear_matrix(H0, hi)
        args += [side_maps[i], jnp.asarray(rw), jnp.asarray(lh)]
        in_specs += [
            pl.BlockSpec((1, hi, wi), lambda n: (n, 0, 0)),
            pl.BlockSpec((wi, W0p), lambda n: (0, 0)),
            pl.BlockSpec((H0, hi), lambda n: (0, 0)),
        ]

    fuse_p = pl.pallas_call(
        _make_fuse_kernel(len(side_maps) - 1),
        out_shape=jax.ShapeDtypeStruct((N, H0, W0p), jnp.float32),
        grid=(N,),
        in_specs=in_specs,
        out_specs=pl.BlockSpec((1, H0, W0p), lambda n: (n, 0, 0)),
        compiler_params=pltpu.CompilerParams(
            dimension_semantics=("parallel",),
            vmem_limit_bytes=VMEM_LIMIT),
    )(*args)
    return fuse_p[:, :, :W0]


# ---------------------------------------------------------------------------
# Bilinear (align_corners=False) interpolation as a row-stochastic matrix; matches
# F.interpolate(mode='bilinear', align_corners=False) along one axis for upsampling.
# Built with numpy (static sizes) so it is a jit-time constant.
# ---------------------------------------------------------------------------
def bilinear_matrix(out_size, in_size):
    if out_size == in_size:
        return np.eye(out_size, dtype=np.float32)
    scale = in_size / out_size
    j = np.arange(out_size, dtype=np.float64)
    src = np.clip((j + 0.5) * scale - 0.5, 0.0, in_size - 1)
    i0 = np.floor(src).astype(np.int64)
    frac = (src - i0).astype(np.float32)
    i1 = np.minimum(i0 + 1, in_size - 1)
    m = np.zeros((out_size, in_size), np.float32)
    rows = np.arange(out_size)
    m[rows, i0] += 1.0 - frac
    m[rows, i1] += frac
    return m


# ---------------------------------------------------------------------------
# Parameter initialization (deterministic; PyTorch (C_out, C_in) conv orientation).
# ---------------------------------------------------------------------------
def init_params(key):
    keys = iter(jax.random.split(key, 256))
    params = {}

    params["backbone"] = []
    for c in IN_CHANNELS_LIST:
        w = jax.random.normal(next(keys), (c, 3), jnp.float32) * 0.1
        b = jnp.zeros((c,), jnp.float32)
        params["backbone"].append((w, b))

    params["fpn"] = []
    for layer in range(NUM_FPN_LAYERS):
        cs = IN_CHANNELS_LIST if layer == 0 else [F_CHANNELS] * N_LEVELS
        level = []
        for c in cs:
            w = jax.random.normal(next(keys), (F_CHANNELS, c), jnp.float32) * (c ** -0.5)
            b = jnp.zeros((F_CHANNELS,), jnp.float32)
            level.append((w, b))
        params["fpn"].append(level)

    # SideHead: per side 1x1 conv (C->1, no bias) + BatchNorm (eval) + fusion weight 1/n.
    params["head_side"] = []
    params["head_weight"] = []
    for layer in range(NUM_FPN_LAYERS):
        sides = []
        for _ in range(N_LEVELS):
            cw = jax.random.normal(next(keys), (F_CHANNELS,), jnp.float32) * 0.1
            gamma = 1.0 + 0.1 * jax.random.normal(next(keys), (), jnp.float32)
            beta = 0.1 * jax.random.normal(next(keys), (), jnp.float32)
            mean = 0.1 * jax.random.normal(next(keys), (), jnp.float32)
            var = 1.0 + 0.1 * jax.random.uniform(next(keys), (), jnp.float32)
            sides.append((cw, gamma, beta, mean, var))
        params["head_side"].append(sides)
        params["head_weight"].append(jnp.full((N_LEVELS,), 1.0 / N_LEVELS, jnp.float32))

    params["layer_weight"] = jnp.full((NUM_FPN_LAYERS,), 1.0 / NUM_FPN_LAYERS, jnp.float32)
    return params


def _pool2(x):
    n, c, h, w = x.shape
    return x.reshape(n, c, h // 2, 2, w // 2, 2).mean(axis=(3, 5))


# ---------------------------------------------------------------------------
# EED forward (eval mode: Dropout2d is identity, returns `fuse` only)
# ---------------------------------------------------------------------------
def eed_forward(x_nchw, params):
    x = x_nchw.astype(jnp.float32)
    N, cimg, H, W = x.shape

    # Backbone-stub pyramid: progressive 2x avg-pool so the full-res input is read once.
    pooled, sizes = [], []
    cur = x
    for _ in range(N_LEVELS):
        cur = _pool2(cur)
        h, w = cur.shape[2], cur.shape[3]
        sizes.append((h, w))
        pooled.append(cur.reshape(N, cimg, h * w))

    H0, W0 = sizes[0]
    lw = jax.nn.softmax(params["layer_weight"])

    # Fold eval-BN scale + softmax side weight + softmax layer weight into one (1, F)
    # contraction vector per (layer, level); fold ALL biases into one scalar (valid
    # because the bilinear resize matrices are row-stochastic).
    eff_ws = [[None] * N_LEVELS for _ in range(NUM_FPN_LAYERS)]
    total_bias = jnp.float32(0.0)
    for layer in range(NUM_FPN_LAYERS):
        sw = jax.nn.softmax(params["head_weight"][layer])
        for i in range(N_LEVELS):
            cw, gamma, beta, mean, var = params["head_side"][layer][i]
            bn_scale = gamma / jnp.sqrt(var + BN_EPS)
            coef = sw[i] * lw[layer]
            eff_ws[layer][i] = (cw * (coef * bn_scale)).reshape(1, F_CHANNELS)
            total_bias = total_bias + coef * (beta - mean * bn_scale)

    # Kernel A: conv stubs + fused SideHead contraction -> per-level side maps.
    side_flat = feature_side_stack(pooled, params["backbone"], params["fpn"], eff_ws)
    side_maps = [s.reshape(N, hi, wi) for s, (hi, wi) in zip(side_flat, sizes)]

    # Kernel B: per-level bilinear resizes + fusion + single folded bias.
    fuse = fused_resize_and_sum(side_maps, sizes, total_bias)
    return fuse[:, None, :, :]                               # NCHW (N, 1, H0, W0)


# ---------------------------------------------------------------------------
# Pure-JAX reference mirroring the module structure (per-(layer,level) conv -> BN ->
# bilinear resize -> softmax-weighted sums), with the same bf16 matmul-operand casts the
# kernels use, so the comparison isolates kernel / folding correctness.
# ---------------------------------------------------------------------------
def eed_reference(x_nchw, params):
    x = x_nchw.astype(jnp.float32)
    N = x.shape[0]
    pooled, sizes = [], []
    cur = x
    for _ in range(N_LEVELS):
        cur = _pool2(cur)
        sizes.append((cur.shape[2], cur.shape[3]))
        pooled.append(cur)
    H0, W0 = sizes[0]

    level_feats = []
    for i in range(N_LEVELS):
        wb, bb = params["backbone"][i]
        h = jnp.einsum("oc,nchw->nohw", wb, pooled[i]) + bb[None, :, None, None]
        level_feats.append(jnp.maximum(h, 0.0))

    feats = []
    for layer in range(NUM_FPN_LAYERS):
        new_feats = []
        for i in range(N_LEVELS):
            wf, bf = params["fpn"][layer][i]
            f = jnp.einsum("oc,nchw->nohw", wf.astype(CONV_DTYPE),
                           level_feats[i].astype(CONV_DTYPE),
                           preferred_element_type=jnp.float32)
            new_feats.append(jnp.maximum(f + bf[None, :, None, None], 0.0))
        feats.append(new_feats)
        level_feats = new_feats

    lw = jax.nn.softmax(params["layer_weight"])
    fuse = jnp.zeros((N, H0, W0), jnp.float32)
    for layer in range(NUM_FPN_LAYERS):
        sw = jax.nn.softmax(params["head_weight"][layer])
        head_out = jnp.zeros((N, H0, W0), jnp.float32)
        for i in range(N_LEVELS):
            hi, wi = sizes[i]
            cw, gamma, beta, mean, var = params["head_side"][layer][i]
            s = jnp.einsum("c,nchw->nhw", cw, feats[layer][i])          # 1x1 conv, no bias
            bn_scale = gamma / jnp.sqrt(var + BN_EPS)
            s = bn_scale * (s - mean) + beta                            # eval BatchNorm
            if (hi, wi) != (H0, W0):
                lh = bilinear_matrix(H0, hi)
                rw = bilinear_matrix(W0, wi)
                s = jnp.einsum("ah,nhw,bw->nab", lh, s, rw)             # bilinear resize
            head_out = head_out + sw[i] * s
        fuse = fuse + lw[layer] * head_out
    return fuse[:, None, :, :]


if __name__ == "__main__":
    key = jax.random.PRNGKey(0)
    k_x, k_p = jax.random.split(key)
    x = jax.random.normal(k_x, (2, 3, 32, 32), jnp.float32)   # NCHW like PyTorch
    params = init_params(k_p)

    fwd = jax.jit(eed_forward)
    out = jax.block_until_ready(fwd(x, params))
    assert out.shape == (2, 1, 16, 16), out.shape
    assert bool(jnp.all(jnp.isfinite(out)))

    ref = jax.block_until_ready(jax.jit(eed_reference)(x, params))
    np.testing.assert_allclose(np.asarray(out), np.asarray(ref), rtol=5e-2, atol=5e-5)
    print("KERNEL_OK")
</pallas_src>

<mosaic_0001>
module attributes {stable_mosaic.version = 11 : i64} {
  func.func @kernel(%arg0: i32, %arg1: memref<1xf32, #tpu.memory_space<smem>>, %arg2: memref<1x16x128xf32, #tpu.memory_space<vmem>>, %arg3: memref<1x8x8xf32, #tpu.memory_space<vmem>>, %arg4: memref<8x128xf32, #tpu.memory_space<vmem>>, %arg5: memref<16x8xf32, #tpu.memory_space<vmem>>, %arg6: memref<1x4x4xf32, #tpu.memory_space<vmem>>, %arg7: memref<4x128xf32, #tpu.memory_space<vmem>>, %arg8: memref<16x4xf32, #tpu.memory_space<vmem>>, %arg9: memref<1x2x2xf32, #tpu.memory_space<vmem>>, %arg10: memref<2x128xf32, #tpu.memory_space<vmem>>, %arg11: memref<16x2xf32, #tpu.memory_space<vmem>>, %arg12: memref<1x16x128xf32, #tpu.memory_space<vmem>>) attributes {dimension_semantics = [#tpu.dimension_semantics<parallel>], iteration_bounds = array<i64: 2>, scalar_prefetch = 0 : i64, scratch_operands = 0 : i64, tpu.core_type = #tpu.core_type<tc>, window_params = [{transform_indices = @transform_0, window_bounds = array<i64: 1>}, {transform_indices = @transform_1, window_bounds = array<i64: 1, 16, 128>}, {transform_indices = @transform_2, window_bounds = array<i64: 1, 8, 8>}, {pipeline_mode = #tpu.pipeline_mode<synchronous>, transform_indices = @transform_3, window_bounds = array<i64: 8, 128>}, {pipeline_mode = #tpu.pipeline_mode<synchronous>, transform_indices = @transform_4, window_bounds = array<i64: 16, 8>}, {transform_indices = @transform_5, window_bounds = array<i64: 1, 4, 4>}, {pipeline_mode = #tpu.pipeline_mode<synchronous>, transform_indices = @transform_6, window_bounds = array<i64: 4, 128>}, {pipeline_mode = #tpu.pipeline_mode<synchronous>, transform_indices = @transform_7, window_bounds = array<i64: 16, 4>}, {transform_indices = @transform_8, window_bounds = array<i64: 1, 2, 2>}, {pipeline_mode = #tpu.pipeline_mode<synchronous>, transform_indices = @transform_9, window_bounds = array<i64: 2, 128>}, {pipeline_mode = #tpu.pipeline_mode<synchronous>, transform_indices = @transform_10, window_bounds = array<i64: 16, 2>}, {transform_indices = @transform_11, window_bounds = array<i64: 1, 16, 128>}]} {
    %c0 = arith.constant 0 : index
    %c0_0 = arith.constant 0 : index
    %c0_1 = arith.constant 0 : index
    %0 = vector.load %arg2[%c0, %c0_0, %c0_1] : memref<1x16x128xf32, #tpu.memory_space<vmem>>, vector<1x16x128xf32>
    %1 = vector.shape_cast %0 : vector<1x16x128xf32> to vector<16x128xf32>
    %c0_2 = arith.constant 0 : index
    %c0_3 = arith.constant 0 : index
    %c0_4 = arith.constant 0 : index
    %2 = vector.load %arg3[%c0_2, %c0_3, %c0_4] : memref<1x8x8xf32, #tpu.memory_space<vmem>>, vector<1x8x8xf32>
    %3 = vector.shape_cast %2 : vector<1x8x8xf32> to vector<8x8xf32>
    %c0_5 = arith.constant 0 : index
    %c0_6 = arith.constant 0 : index
    %4 = vector.load %arg4[%c0_5, %c0_6] : memref<8x128xf32, #tpu.memory_space<vmem>>, vector<8x128xf32>
    %cst = arith.constant dense<0.000000e+00> : vector<8x128xf32>
    %5 = tpu.matmul %3, %4, %cst {dimension_numbers = #tpu.dot_dimension_numbers<[1], [0], [0], [1], [0, 0, 1, 1], [], []>} : vector<8x8xf32>, vector<8x128xf32>, vector<8x128xf32> -> vector<8x128xf32>
    %c0_7 = arith.constant 0 : index
    %c0_8 = arith.constant 0 : index
    %6 = vector.load %arg5[%c0_7, %c0_8] : memref<16x8xf32, #tpu.memory_space<vmem>>, vector<16x8xf32>
    %cst_9 = arith.constant dense<0.000000e+00> : vector<16x128xf32>
    %7 = tpu.matmul %6, %5, %cst_9 {dimension_numbers = #tpu.dot_dimension_numbers<[1], [0], [0], [1], [0, 0, 1, 1], [], []>} : vector<16x8xf32>, vector<8x128xf32>, vector<16x128xf32> -> vector<16x128xf32>
    %8 = arith.addf %1, %7 : vector<16x128xf32>
    %c0_10 = arith.constant 0 : index
    %c0_11 = arith.constant 0 : index
    %c0_12 = arith.constant 0 : index
    %9 = vector.load %arg6[%c0_10, %c0_11, %c0_12] : memref<1x4x4xf32, #tpu.memory_space<vmem>>, vector<1x4x4xf32>
    %10 = vector.shape_cast %9 : vector<1x4x4xf32> to vector<4x4xf32>
    %c0_13 = arith.constant 0 : index
    %c0_14 = arith.constant 0 : index
    %11 = vector.load %arg7[%c0_13, %c0_14] : memref<4x128xf32, #tpu.memory_space<vmem>>, vector<4x128xf32>
    %cst_15 = arith.constant dense<0.000000e+00> : vector<4x128xf32>
    %12 = tpu.matmul %10, %11, %cst_15 {dimension_numbers = #tpu.dot_dimension_numbers<[1], [0], [0], [1], [0, 0, 1, 1], [], []>} : vector<4x4xf32>, vector<4x128xf32>, vector<4x128xf32> -> vector<4x128xf32>
    %c0_16 = arith.constant 0 : index
    %c0_17 = arith.constant 0 : index
    %13 = vector.load %arg8[%c0_16, %c0_17] : memref<16x4xf32, #tpu.memory_space<vmem>>, vector<16x4xf32>
    %cst_18 = arith.constant dense<0.000000e+00> : vector<16x128xf32>
    %14 = tpu.matmul %13, %12, %cst_18 {dimension_numbers = #tpu.dot_dimension_numbers<[1], [0], [0], [1], [0, 0, 1, 1], [], []>} : vector<16x4xf32>, vector<4x128xf32>, vector<16x128xf32> -> vector<16x128xf32>
    %15 = arith.addf %8, %14 : vector<16x128xf32>
    %c0_19 = arith.constant 0 : index
    %c0_20 = arith.constant 0 : index
    %c0_21 = arith.constant 0 : index
    %16 = vector.load %arg9[%c0_19, %c0_20, %c0_21] : memref<1x2x2xf32, #tpu.memory_space<vmem>>, vector<1x2x2xf32>
    %17 = vector.shape_cast %16 : vector<1x2x2xf32> to vector<2x2xf32>
    %c0_22 = arith.constant 0 : index
    %c0_23 = arith.constant 0 : index
    %18 = vector.load %arg10[%c0_22, %c0_23] : memref<2x128xf32, #tpu.memory_space<vmem>>, vector<2x128xf32>
    %cst_24 = arith.constant dense<0.000000e+00> : vector<2x128xf32>
    %19 = tpu.matmul %17, %18, %cst_24 {dimension_numbers = #tpu.dot_dimension_numbers<[1], [0], [0], [1], [0, 0, 1, 1], [], []>} : vector<2x2xf32>, vector<2x128xf32>, vector<2x128xf32> -> vector<2x128xf32>
    %c0_25 = arith.constant 0 : index
    %c0_26 = arith.constant 0 : index
    %20 = vector.load %arg11[%c0_25, %c0_26] : memref<16x2xf32, #tpu.memory_space<vmem>>, vector<16x2xf32>
    %cst_27 = arith.constant dense<0.000000e+00> : vector<16x128xf32>
    %21 = tpu.matmul %20, %19, %cst_27 {dimension_numbers = #tpu.dot_dimension_numbers<[1], [0], [0], [1], [0, 0, 1, 1], [], []>} : vector<16x2xf32>, vector<2x128xf32>, vector<16x128xf32> -> vector<16x128xf32>
    %22 = arith.addf %15, %21 : vector<16x128xf32>
    %c0_28 = arith.constant 0 : index
    %23 = memref.load %arg1[%c0_28] : memref<1xf32, #tpu.memory_space<smem>>
    %24 = vector.broadcast %23 : f32 to vector<16x128xf32>
    %25 = arith.addf %22, %24 : vector<16x128xf32>
    %c0_29 = arith.constant 0 : index
    %c0_30 = arith.constant 0 : index
    %c0_31 = arith.constant 0 : index
    %26 = vector.load %arg12[%c0_29, %c0_30, %c0_31] : memref<1x16x128xf32, #tpu.memory_space<vmem>>, vector<1x16x128xf32>
    %27 = vector.shape_cast %26 : vector<1x16x128xf32> to vector<16x128xf32>
    %28 = vector.shape_cast %25 : vector<16x128xf32> to vector<1x16x128xf32>
    tpu.vector_store %arg12[%c0_29, %c0_30, %c0_31], %28 {strides = array<i32>} : memref<1x16x128xf32, #tpu.memory_space<vmem>>, vector<1x16x128xf32>,
    return
  }
  func.func @transform_0(%arg0: i32) -> i32 {
    %c0_i32 = arith.constant 0 : i32
    %c0_i32_0 = arith.constant 0 : i32
    return %c0_i32 : i32
  }
  func.func @transform_1(%arg0: i32) -> (i32, i32, i32) {
    %c0_i32 = arith.constant 0 : i32
    %c0_i32_0 = arith.constant 0 : i32
    %c0_i32_1 = arith.constant 0 : i32
    return %arg0, %c0_i32, %c0_i32_0 : i32, i32, i32
  }
  func.func @transform_2(%arg0: i32) -> (i32, i32, i32) {
    %c0_i32 = arith.constant 0 : i32
    %c0_i32_0 = arith.constant 0 : i32
    %c0_i32_1 = arith.constant 0 : i32
    return %arg0, %c0_i32, %c0_i32_0 : i32, i32, i32
  }
  func.func @transform_3(%arg0: i32) -> (i32, i32) {
    %c0_i32 = arith.constant 0 : i32
    %c0_i32_0 = arith.constant 0 : i32
    %c0_i32_1 = arith.constant 0 : i32
    return %c0_i32, %c0_i32_0 : i32, i32
  }
  func.func @transform_4(%arg0: i32) -> (i32, i32) {
    %c0_i32 = arith.constant 0 : i32
    %c0_i32_0 = arith.constant 0 : i32
    %c0_i32_1 = arith.constant 0 : i32
    return %c0_i32, %c0_i32_0 : i32, i32
  }
  func.func @transform_5(%arg0: i32) -> (i32, i32, i32) {
    %c0_i32 = arith.constant 0 : i32
    %c0_i32_0 = arith.constant 0 : i32
    %c0_i32_1 = arith.constant 0 : i32
    return %arg0, %c0_i32, %c0_i32_0 : i32, i32, i32
  }
  func.func @transform_6(%arg0: i32) -> (i32, i32) {
    %c0_i32 = arith.constant 0 : i32
    %c0_i32_0 = arith.constant 0 : i32
    %c0_i32_1 = arith.constant 0 : i32
    return %c0_i32, %c0_i32_0 : i32, i32
  }
  func.func @transform_7(%arg0: i32) -> (i32, i32) {
    %c0_i32 = arith.constant 0 : i32
    %c0_i32_0 = arith.constant 0 : i32
    %c0_i32_1 = arith.constant 0 : i32
    return %c0_i32, %c0_i32_0 : i32, i32
  }
  func.func @transform_8(%arg0: i32) -> (i32, i32, i32) {
    %c0_i32 = arith.constant 0 : i32
    %c0_i32_0 = arith.constant 0 : i32
    %c0_i32_1 = arith.constant 0 : i32
    return %arg0, %c0_i32, %c0_i32_0 : i32, i32, i32
  }
  func.func @transform_9(%arg0: i32) -> (i32, i32) {
    %c0_i32 = arith.constant 0 : i32
    %c0_i32_0 = arith.constant 0 : i32
    %c0_i32_1 = arith.constant 0 : i32
    return %c0_i32, %c0_i32_0 : i32, i32
  }
  func.func @transform_10(%arg0: i32) -> (i32, i32) {
    %c0_i32 = arith.constant 0 : i32
    %c0_i32_0 = arith.constant 0 : i32
    %c0_i32_1 = arith.constant 0 : i32
    return %c0_i32, %c0_i32_0 : i32, i32
  }
  func.func @transform_11(%arg0: i32) -> (i32, i32, i32) {
    %c0_i32 = arith.constant 0 : i32
    %c0_i32_0 = arith.constant 0 : i32
    %c0_i32_1 = arith.constant 0 : i32
    return %arg0, %c0_i32, %c0_i32_0 : i32, i32, i32
  }
}

module attributes {stable_mosaic.version = 11 : i64} {
  func.func @kernel(%arg0: i32, %arg1: memref<1x3x256xf32, #tpu.memory_space<vmem>>, %arg2: memref<8x3xf32, #tpu.memory_space<vmem>>, %arg3: memref<8x1xf32, #tpu.memory_space<vmem>>, %arg4: memref<128x8xbf16, #tpu.memory_space<vmem>>, %arg5: memref<128x1xf32, #tpu.memory_space<vmem>>, %arg6: memref<1x128xf32, #tpu.memory_space<vmem>>, %arg7: memref<128x128xbf16, #tpu.memory_space<vmem>>, %arg8: memref<128x1xf32, #tpu.memory_space<vmem>>, %arg9: memref<1x128xf32, #tpu.memory_space<vmem>>, %arg10: memref<1x3x64xf32, #tpu.memory_space<vmem>>, %arg11: memref<16x3xf32, #tpu.memory_space<vmem>>, %arg12: memref<16x1xf32, #tpu.memory_space<vmem>>, %arg13: memref<128x16xbf16, #tpu.memory_space<vmem>>, %arg14: memref<128x1xf32, #tpu.memory_space<vmem>>, %arg15: memref<1x128xf32, #tpu.memory_space<vmem>>, %arg16: memref<128x128xbf16, #tpu.memory_space<vmem>>, %arg17: memref<128x1xf32, #tpu.memory_space<vmem>>, %arg18: memref<1x128xf32, #tpu.memory_space<vmem>>, %arg19: memref<1x3x16xf32, #tpu.memory_space<vmem>>, %arg20: memref<32x3xf32, #tpu.memory_space<vmem>>, %arg21: memref<32x1xf32, #tpu.memory_space<vmem>>, %arg22: memref<128x32xbf16, #tpu.memory_space<vmem>>, %arg23: memref<128x1xf32, #tpu.memory_space<vmem>>, %arg24: memref<1x128xf32, #tpu.memory_space<vmem>>, %arg25: memref<128x128xbf16, #tpu.memory_space<vmem>>, %arg26: memref<128x1xf32, #tpu.memory_space<vmem>>, %arg27: memref<1x128xf32, #tpu.memory_space<vmem>>, %arg28: memref<1x3x4xf32, #tpu.memory_space<vmem>>, %arg29: memref<32x3xf32, #tpu.memory_space<vmem>>, %arg30: memref<32x1xf32, #tpu.memory_space<vmem>>, %arg31: memref<128x32xbf16, #tpu.memory_space<vmem>>, %arg32: memref<128x1xf32, #tpu.memory_space<vmem>>, %arg33: memref<1x128xf32, #tpu.memory_space<vmem>>, %arg34: memref<128x128xbf16, #tpu.memory_space<vmem>>, %arg35: memref<128x1xf32, #tpu.memory_space<vmem>>, %arg36: memref<1x128xf32, #tpu.memory_space<vmem>>, %arg37: memref<1x1x256xf32, #tpu.memory_space<vmem>>, %arg38: memref<1x1x64xf32, #tpu.memory_space<vmem>>, %arg39: memref<1x1x16xf32, #tpu.memory_space<vmem>>, %arg40: memref<1x1x4xf32, #tpu.memory_space<vmem>>) attributes {dimension_semantics = [#tpu.dimension_semantics<parallel>], iteration_bounds = array<i64: 2>, scalar_prefetch = 0 : i64, scratch_operands = 0 : i64, tpu.core_type = #tpu.core_type<tc>, window_params = [{transform_indices = @transform_0, window_bounds = array<i64: 1, 3, 256>}, {pipeline_mode = #tpu.pipeline_mode<synchronous>, transform_indices = @transform_1, window_bounds = array<i64: 8, 3>}, {pipeline_mode = #tpu.pipeline_mode<synchronous>, transform_indices = @transform_2, window_bounds = array<i64: 8, 1>}, {pipeline_mode = #tpu.pipeline_mode<synchronous>, transform_indices = @transform_3, window_bounds = array<i64: 128, 8>}, {pipeline_mode = #tpu.pipeline_mode<synchronous>, transform_indices = @transform_4, window_bounds = array<i64: 128, 1>}, {pipeline_mode = #tpu.pipeline_mode<synchronous>, transform_indices = @transform_5, window_bounds = array<i64: 1, 128>}, {pipeline_mode = #tpu.pipeline_mode<synchronous>, transform_indices = @transform_6, window_bounds = array<i64: 128, 128>}, {pipeline_mode = #tpu.pipeline_mode<synchronous>, transform_indices = @transform_7, window_bounds = array<i64: 128, 1>}, {pipeline_mode = #tpu.pipeline_mode<synchronous>, transform_indices = @transform_8, window_bounds = array<i64: 1, 128>}, {transform_indices = @transform_9, window_bounds = array<i64: 1, 3, 64>}, {pipeline_mode = #tpu.pipeline_mode<synchronous>, transform_indices = @transform_10, window_bounds = array<i64: 16, 3>}, {pipeline_mode = #tpu.pipeline_mode<synchronous>, transform_indices = @transform_11, window_bounds = array<i64: 16, 1>}, {pipeline_mode = #tpu.pipeline_mode<synchronous>, transform_indices = @transform_12, window_bounds = array<i64: 128, 16>}, {pipeline_mode = #tpu.pipeline_mode<synchronous>, transform_indices = @transform_13, window_bounds = array<i64: 128, 1>}, {pipeline_mode = #tpu.pipeline_mode<synchronous>, transform_indices = @transform_14, window_bounds = array<i64: 1, 128>}, {pipeline_mode = #tpu.pipeline_mode<synchronous>, transform_indices = @transform_15, window_bounds = array<i64: 128, 128>}, {pipeline_mode = #tpu.pipeline_mode<synchronous>, transform_indices = @transform_16, window_bounds = array<i64: 128, 1>}, {pipeline_mode = #tpu.pipeline_mode<synchronous>, transform_indices = @transform_17, window_bounds = array<i64: 1, 128>}, {transform_indices = @transform_18, window_bounds = array<i64: 1, 3, 16>}, {pipeline_mode = #tpu.pipeline_mode<synchronous>, transform_indices = @transform_19, window_bounds = array<i64: 32, 3>}, {pipeline_mode = #tpu.pipeline_mode<synchronous>, transform_indices = @transform_20, window_bounds = array<i64: 32, 1>}, {pipeline_mode = #tpu.pipeline_mode<synchronous>, transform_indices = @transform_21, window_bounds = array<i64: 128, 32>}, {pipeline_mode = #tpu.pipeline_mode<synchronous>, transform_indices = @transform_22, window_bounds = array<i64: 128, 1>}, {pipeline_mode = #tpu.pipeline_mode<synchronous>, transform_indices = @transform_23, window_bounds = array<i64: 1, 128>}, {pipeline_mode = #tpu.pipeline_mode<synchronous>, transform_indices = @transform_24, window_bounds = array<i64: 128, 128>}, {pipeline_mode = #tpu.pipeline_mode<synchronous>, transform_indices = @transform_25, window_bounds = array<i64: 128, 1>}, {pipeline_mode = #tpu.pipeline_mode<synchronous>, transform_indices = @transform_26, window_bounds = array<i64: 1, 128>}, {transform_indices = @transform_27, window_bounds = array<i64: 1, 3, 4>}, {pipeline_mode = #tpu.pipeline_mode<synchronous>, transform_indices = @transform_28, window_bounds = array<i64: 32, 3>}, {pipeline_mode = #tpu.pipeline_mode<synchronous>, transform_indices = @transform_29, window_bounds = array<i64: 32, 1>}, {pipeline_mode = #tpu.pipeline_mode<synchronous>, transform_indices = @transform_30, window_bounds = array<i64: 128, 32>}, {pipeline_mode = #tpu.pipeline_mode<synchronous>, transform_indices = @transform_31, window_bounds = array<i64: 128, 1>}, {pipeline_mode = #tpu.pipeline_mode<synchronous>, transform_indices = @transform_32, window_bounds = array<i64: 1, 128>}, {pipeline_mode = #tpu.pipeline_mode<synchronous>, transform_indices = @transform_33, window_bounds = array<i64: 128, 128>}, {pipeline_mode = #tpu.pipeline_mode<synchronous>, transform_indices = @transform_34, window_bounds = array<i64: 128, 1>}, {pipeline_mode = #tpu.pipeline_mode<synchronous>, transform_indices = @transform_35, window_bounds = array<i64: 1, 128>}, {transform_indices = @transform_36, window_bounds = array<i64: 1, 1, 256>}, {transform_indices = @transform_37, window_bounds = array<i64: 1, 1, 64>}, {transform_indices = @transform_38, window_bounds = array<i64: 1, 1, 16>}, {transform_indices = @transform_39, window_bounds = array<i64: 1, 1, 4>}]} {
    %c0 = arith.constant 0 : index
    %c0_0 = arith.constant 0 : index
    %c0_1 = arith.constant 0 : index
    %0 = vector.load %arg1[%c0, %c0_0, %c0_1] : memref<1x3x256xf32, #tpu.memory_space<vmem>>, vector<1x3x256xf32>
    %1 = vector.shape_cast %0 : vector<1x3x256xf32> to vector<3x256xf32>
    %c0_2 = arith.constant 0 : index
    %c0_3 = arith.constant 0 : index
    %2 = vector.load %arg2[%c0_2, %c0_3] : memref<8x3xf32, #tpu.memory_space<vmem>>, vector<8x3xf32>
    %c0_4 = arith.constant 0 : index
    %c0_5 = arith.constant 0 : index
    %3 = vector.load %arg3[%c0_4, %c0_5] : memref<8x1xf32, #tpu.memory_space<vmem>>, vector<8x1xf32>
    %4 = vector.extract_strided_slice %2 {offsets = [0, 0], sizes = [8, 1], strides = [1, 1]} : vector<8x3xf32> to vector<8x1xf32>
    %5 = vector.extract_strided_slice %1 {offsets = [0, 0], sizes = [1, 256], strides = [1, 1]} : vector<3x256xf32> to vector<1x256xf32>
    %6 = vector.broadcast %4 : vector<8x1xf32> to vector<8x256xf32>
    %7 = vector.broadcast %5 : vector<1x256xf32> to vector<8x256xf32>
    %8 = arith.mulf %6, %7 : vector<8x256xf32>
    %9 = vector.extract_strided_slice %2 {offsets = [0, 1], sizes = [8, 1], strides = [1, 1]} : vector<8x3xf32> to vector<8x1xf32>
    %10 = vector.extract_strided_slice %1 {offsets = [1, 0], sizes = [1, 256], strides = [1, 1]} : vector<3x256xf32> to vector<1x256xf32>
    %11 = vector.broadcast %9 : vector<8x1xf32> to vector<8x256xf32>
    %12 = vector.broadcast %10 : vector<1x256xf32> to vector<8x256xf32>
    %13 = arith.mulf %11, %12 : vector<8x256xf32>
    %14 = arith.addf %8, %13 : vector<8x256xf32>
    %15 = vector.extract_strided_slice %2 {offsets = [0, 2], sizes = [8, 1], strides = [1, 1]} : vector<8x3xf32> to vector<8x1xf32>
    %16 = vector.extract_strided_slice %1 {offsets = [2, 0], sizes = [1, 256], strides = [1, 1]} : vector<3x256xf32> to vector<1x256xf32>
    %17 = vector.broadcast %15 : vector<8x1xf32> to vector<8x256xf32>
    %18 = vector.broadcast %16 : vector<1x256xf32> to vector<8x256xf32>
    %19 = arith.mulf %17, %18 : vector<8x256xf32>
    %20 = arith.addf %14, %19 : vector<8x256xf32>
    %21 = vector.broadcast %3 : vector<8x1xf32> to vector<8x256xf32>
    %22 = arith.addf %20, %21 : vector<8x256xf32>
    %cst = arith.constant 0.000000e+00 : f32
    %23 = vector.broadcast %cst : f32 to vector<8x256xf32>
    %24 = arith.maximumf %22, %23 : vector<8x256xf32>
    %c0_6 = arith.constant 0 : index
    %c0_7 = arith.constant 0 : index
    %25 = vector.load %arg4[%c0_6, %c0_7] : memref<128x8xbf16, #tpu.memory_space<vmem>>, vector<128x8xbf16>
    %26 = arith.truncf %24 : vector<8x256xf32> to vector<8x256xbf16>
    %cst_8 = arith.constant dense<0.000000e+00> : vector<128x256xf32>
    %27 = tpu.matmul %25, %26, %cst_8 {dimension_numbers = #tpu.dot_dimension_numbers<[1], [0], [0], [1], [0, 0, 1, 1], [], []>} : vector<128x8xbf16>, vector<8x256xbf16>, vector<128x256xf32> -> vector<128x256xf32>
    %c0_9 = arith.constant 0 : index
    %c0_10 = arith.constant 0 : index
    %28 = vector.load %arg5[%c0_9, %c0_10] : memref<128x1xf32, #tpu.memory_space<vmem>>, vector<128x1xf32>
    %29 = vector.broadcast %28 : vector<128x1xf32> to vector<128x256xf32>
    %30 = arith.addf %27, %29 : vector<128x256xf32>
    %cst_11 = arith.constant 0.000000e+00 : f32
    %31 = vector.broadcast %cst_11 : f32 to vector<128x256xf32>
    %32 = arith.maximumf %30, %31 : vector<128x256xf32>
    %c0_12 = arith.constant 0 : index
    %c0_13 = arith.constant 0 : index
    %33 = vector.load %arg6[%c0_12, %c0_13] : memref<1x128xf32, #tpu.memory_space<vmem>>, vector<1x128xf32>
    %cst_14 = arith.constant dense<0.000000e+00> : vector<1x256xf32>
    %34 = tpu.matmul %33, %32, %cst_14 {dimension_numbers = #tpu.dot_dimension_numbers<[1], [0], [0], [1], [0, 0, 1, 1], [], []>} : vector<1x128xf32>, vector<128x256xf32>, vector<1x256xf32> -> vector<1x256xf32>
    %c0_15 = arith.constant 0 : index
    %c0_16 = arith.constant 0 : index
    %35 = vector.load %arg7[%c0_15, %c0_16] : memref<128x128xbf16, #tpu.memory_space<vmem>>, vector<128x128xbf16>
    %36 = arith.truncf %32 : vector<128x256xf32> to vector<128x256xbf16>
    %cst_17 = arith.constant dense<0.000000e+00> : vector<128x256xf32>
    %37 = tpu.matmul %35, %36, %cst_17 {dimension_numbers = #tpu.dot_dimension_numbers<[1], [0], [0], [1], [0, 0, 1, 1], [], []>} : vector<128x128xbf16>, vector<128x256xbf16>, vector<128x256xf32> -> vector<128x256xf32>
    %c0_18 = arith.constant 0 : index
    %c0_19 = arith.constant 0 : index
    %38 = vector.load %arg8[%c0_18, %c0_19] : memref<128x1xf32, #tpu.memory_space<vmem>>, vector<128x1xf32>
    %39 = vector.broadcast %38 : vector<128x1xf32> to vector<128x256xf32>
    %40 = arith.addf %37, %39 : vector<128x256xf32>
    %cst_20 = arith.constant 0.000000e+00 : f32
    %41 = vector.broadcast %cst_20 : f32 to vector<128x256xf32>
    %42 = arith.maximumf %40, %41 : vector<128x256xf32>
    %c0_21 = arith.constant 0 : index
    %c0_22 = arith.constant 0 : index
    %43 = vector.load %arg9[%c0_21, %c0_22] : memref<1x128xf32, #tpu.memory_space<vmem>>, vector<1x128xf32>
    %cst_23 = arith.constant dense<0.000000e+00> : vector<1x256xf32>
    %44 = tpu.matmul %43, %42, %cst_23 {dimension_numbers = #tpu.dot_dimension_numbers<[1], [0], [0], [1], [0, 0, 1, 1], [], []>} : vector<1x128xf32>, vector<128x256xf32>, vector<1x256xf32> -> vector<1x256xf32>
    %45 = arith.addf %34, %44 : vector<1x256xf32>
    %c0_24 = arith.constant 0 : index
    %c0_25 = arith.constant 0 : index
    %c0_26 = arith.constant 0 : index
    %46 = vector.load %arg37[%c0_24, %c0_25, %c0_26] : memref<1x1x256xf32, #tpu.memory_space<vmem>>, vector<1x1x256xf32>
    %47 = vector.shape_cast %46 : vector<1x1x256xf32> to vector<1x256xf32>
    %48 = vector.shape_cast %45 : vector<1x256xf32> to vector<1x1x256xf32>
    tpu.vector_store %arg37[%c0_24, %c0_25, %c0_26], %48 {strides = array<i32>} : memref<1x1x256xf32, #tpu.memory_space<vmem>>, vector<1x1x256xf32>,
    %c0_27 = arith.constant 0 : index
    %c0_28 = arith.constant 0 : index
    %c0_29 = arith.constant 0 : index
    %49 = vector.load %arg10[%c0_27, %c0_28, %c0_29] : memref<1x3x64xf32, #tpu.memory_space<vmem>>, vector<1x3x64xf32>
    %50 = vector.shape_cast %49 : vector<1x3x64xf32> to vector<3x64xf32>
    %c0_30 = arith.constant 0 : index
    %c0_31 = arith.constant 0 : index
    %51 = vector.load %arg11[%c0_30, %c0_31] : memref<16x3xf32, #tpu.memory_space<vmem>>, vector<16x3xf32>
    %c0_32 = arith.constant 0 : index
    %c0_33 = arith.constant 0 : index
    %52 = vector.load %arg12[%c0_32, %c0_33] : memref<16x1xf32, #tpu.memory_space<vmem>>, vector<16x1xf32>
    %53 = vector.extract_strided_slice %51 {offsets = [0, 0], sizes = [16, 1], strides = [1, 1]} : vector<16x3xf32> to vector<16x1xf32>
    %54 = vector.extract_strided_slice %50 {offsets = [0, 0], sizes = [1, 64], strides = [1, 1]} : vector<3x64xf32> to vector<1x64xf32>
    %55 = vector.broadcast %53 : vector<16x1xf32> to vector<16x64xf32>
    %56 = vector.broadcast %54 : vector<1x64xf32> to vector<16x64xf32>
    %57 = arith.mulf %55, %56 : vector<16x64xf32>
    %58 = vector.extract_strided_slice %51 {offsets = [0, 1], sizes = [16, 1], strides = [1, 1]} : vector<16x3xf32> to vector<16x1xf32>
    %59 = vector.extract_strided_slice %50 {offsets = [1, 0], sizes = [1, 64], strides = [1, 1]} : vector<3x64xf32> to vector<1x64xf32>
    %60 = vector.broadcast %58 : vector<16x1xf32> to vector<16x64xf32>
    %61 = vector.broadcast %59 : vector<1x64xf32> to vector<16x64xf32>
    %62 = arith.mulf %60, %61 : vector<16x64xf32>
    %63 = arith.addf %57, %62 : vector<16x64xf32>
    %64 = vector.extract_strided_slice %51 {offsets = [0, 2], sizes = [16, 1], strides = [1, 1]} : vector<16x3xf32> to vector<16x1xf32>
    %65 = vector.extract_strided_slice %50 {offsets = [2, 0], sizes = [1, 64], strides = [1, 1]} : vector<3x64xf32> to vector<1x64xf32>
    %66 = vector.broadcast %64 : vector<16x1xf32> to vector<16x64xf32>
    %67 = vector.broadcast %65 : vector<1x64xf32> to vector<16x64xf32>
    %68 = arith.mulf %66, %67 : vector<16x64xf32>
    %69 = arith.addf %63, %68 : vector<16x64xf32>
    %70 = vector.broadcast %52 : vector<16x1xf32> to vector<16x64xf32>
    %71 = arith.addf %69, %70 : vector<16x64xf32>
    %cst_34 = arith.constant 0.000000e+00 : f32
    %72 = vector.broadcast %cst_34 : f32 to vector<16x64xf32>
    %73 = arith.maximumf %71, %72 : vector<16x64xf32>
    %c0_35 = arith.constant 0 : index
    %c0_36 = arith.constant 0 : index
    %74 = vector.load %arg13[%c0_35, %c0_36] : memref<128x16xbf16, #tpu.memory_space<vmem>>, vector<128x16xbf16>
    %75 = arith.truncf %73 : vector<16x64xf32> to vector<16x64xbf16>
    %cst_37 = arith.constant dense<0.000000e+00> : vector<128x64xf32>
    %76 = tpu.matmul %74, %75, %cst_37 {dimension_numbers = #tpu.dot_dimension_numbers<[1], [0], [0], [1], [0, 0, 1, 1], [], []>} : vector<128x16xbf16>, vector<16x64xbf16>, vector<128x64xf32> -> vector<128x64xf32>
    %c0_38 = arith.constant 0 : index
    %c0_39 = arith.constant 0 : index
    %77 = vector.load %arg14[%c0_38, %c0_39] : memref<128x1xf32, #tpu.memory_space<vmem>>, vector<128x1xf32>
    %78 = vector.broadcast %77 : vector<128x1xf32> to vector<128x64xf32>
    %79 = arith.addf %76, %78 : vector<128x64xf32>
    %cst_40 = arith.constant 0.000000e+00 : f32
    %80 = vector.broadcast %cst_40 : f32 to vector<128x64xf32>
    %81 = arith.maximumf %79, %80 : vector<128x64xf32>
    %c0_41 = arith.constant 0 : index
    %c0_42 = arith.constant 0 : index
    %82 = vector.load %arg15[%c0_41, %c0_42] : memref<1x128xf32, #tpu.memory_space<vmem>>, vector<1x128xf32>
    %cst_43 = arith.constant dense<0.000000e+00> : vector<1x64xf32>
    %83 = tpu.matmul %82, %81, %cst_43 {dimension_numbers = #tpu.dot_dimension_numbers<[1], [0], [0], [1], [0, 0, 1, 1], [], []>} : vector<1x128xf32>, vector<128x64xf32>, vector<1x64xf32> -> vector<1x64xf32>
    %c0_44 = arith.constant 0 : index
    %c0_45 = arith.constant 0 : index
    %84 = vector.load %arg16[%c0_44, %c0_45] : memref<128x128xbf16, #tpu.memory_space<vmem>>, vector<128x128xbf16>
    %85 = arith.truncf %81 : vector<128x64xf32> to vector<128x64xbf16>
    %cst_46 = arith.constant dense<0.000000e+00> : vector<128x64xf32>
    %86 = tpu.matmul %84, %85, %cst_46 {dimension_numbers = #tpu.dot_dimension_numbers<[1], [0], [0], [1], [0, 0, 1, 1], [], []>} : vector<128x128xbf16>, vector<128x64xbf16>, vector<128x64xf32> -> vector<128x64xf32>
    %c0_47 = arith.constant 0 : index
    %c0_48 = arith.constant 0 : index
    %87 = vector.load %arg17[%c0_47, %c0_48] : memref<128x1xf32, #tpu.memory_space<vmem>>, vector<128x1xf32>
    %88 = vector.broadcast %87 : vector<128x1xf32> to vector<128x64xf32>
    %89 = arith.addf %86, %88 : vector<128x64xf32>
    %cst_49 = arith.constant 0.000000e+00 : f32
    %90 = vector.broadcast %cst_49 : f32 to vector<128x64xf32>
    %91 = arith.maximumf %89, %90 : vector<128x64xf32>
    %c0_50 = arith.constant 0 : index
    %c0_51 = arith.constant 0 : index
    %92 = vector.load %arg18[%c0_50, %c0_51] : memref<1x128xf32, #tpu.memory_space<vmem>>, vector<1x128xf32>
    %cst_52 = arith.constant dense<0.000000e+00> : vector<1x64xf32>
    %93 = tpu.matmul %92, %91, %cst_52 {dimension_numbers = #tpu.dot_dimension_numbers<[1], [0], [0], [1], [0, 0, 1, 1], [], []>} : vector<1x128xf32>, vector<128x64xf32>, vector<1x64xf32> -> vector<1x64xf32>
    %94 = arith.addf %83, %93 : vector<1x64xf32>
    %c0_53 = arith.constant 0 : index
    %c0_54 = arith.constant 0 : index
    %c0_55 = arith.constant 0 : index
    %95 = vector.load %arg38[%c0_53, %c0_54, %c0_55] : memref<1x1x64xf32, #tpu.memory_space<vmem>>, vector<1x1x64xf32>
    %96 = vector.shape_cast %95 : vector<1x1x64xf32> to vector<1x64xf32>
    %97 = vector.shape_cast %94 : vector<1x64xf32> to vector<1x1x64xf32>
    tpu.vector_store %arg38[%c0_53, %c0_54, %c0_55], %97 {strides = array<i32>} : memref<1x1x64xf32, #tpu.memory_space<vmem>>, vector<1x1x64xf32>,
    %c0_56 = arith.constant 0 : index
    %c0_57 = arith.constant 0 : index
    %c0_58 = arith.constant 0 : index
    %98 = vector.load %arg19[%c0_56, %c0_57, %c0_58] : memref<1x3x16xf32, #tpu.memory_space<vmem>>, vector<1x3x16xf32>
    %99 = vector.shape_cast %98 : vector<1x3x16xf32> to vector<3x16xf32>
    %c0_59 = arith.constant 0 : index
    %c0_60 = arith.constant 0 : index
    %100 = vector.load %arg20[%c0_59, %c0_60] : memref<32x3xf32, #tpu.memory_space<vmem>>, vector<32x3xf32>
    %c0_61 = arith.constant 0 : index
    %c0_62 = arith.constant 0 : index
    %101 = vector.load %arg21[%c0_61, %c0_62] : memref<32x1xf32, #tpu.memory_space<vmem>>, vector<32x1xf32>
    %102 = vector.extract_strided_slice %100 {offsets = [0, 0], sizes = [32, 1], strides = [1, 1]} : vector<32x3xf32> to vector<32x1xf32>
    %103 = vector.extract_strided_slice %99 {offsets = [0, 0], sizes = [1, 16], strides = [1, 1]} : vector<3x16xf32> to vector<1x16xf32>
    %104 = vector.broadcast %102 : vector<32x1xf32> to vector<32x16xf32>
    %105 = vector.broadcast %103 : vector<1x16xf32> to vector<32x16xf32>
    %106 = arith.mulf %104, %105 : vector<32x16xf32>
    %107 = vector.extract_strided_slice %100 {offsets = [0, 1], sizes = [32, 1], strides = [1, 1]} : vector<32x3xf32> to vector<32x1xf32>
    %108 = vector.extract_strided_slice %99 {offsets = [1, 0], sizes = [1, 16], strides = [1, 1]} : vector<3x16xf32> to vector<1x16xf32>
    %109 = vector.broadcast %107 : vector<32x1xf32> to vector<32x16xf32>
    %110 = vector.broadcast %108 : vector<1x16xf32> to vector<32x16xf32>
    %111 = arith.mulf %109, %110 : vector<32x16xf32>
    %112 = arith.addf %106, %111 : vector<32x16xf32>
    %113 = vector.extract_strided_slice %100 {offsets = [0, 2], sizes = [32, 1], strides = [1, 1]} : vector<32x3xf32> to vector<32x1xf32>
    %114 = vector.extract_strided_slice %99 {offsets = [2, 0], sizes = [1, 16], strides = [1, 1]} : vector<3x16xf32> to vector<1x16xf32>
    %115 = vector.broadcast %113 : vector<32x1xf32> to vector<32x16xf32>
    %116 = vector.broadcast %114 : vector<1x16xf32> to vector<32x16xf32>
    %117 = arith.mulf %115, %116 : vector<32x16xf32>
    %118 = arith.addf %112, %117 : vector<32x16xf32>
    %119 = vector.broadcast %101 : vector<32x1xf32> to vector<32x16xf32>
    %120 = arith.addf %118, %119 : vector<32x16xf32>
    %cst_63 = arith.constant 0.000000e+00 : f32
    %121 = vector.broadcast %cst_63 : f32 to vector<32x16xf32>
    %122 = arith.maximumf %120, %121 : vector<32x16xf32>
    %c0_64 = arith.constant 0 : index
    %c0_65 = arith.constant 0 : index
    %123 = vector.load %arg22[%c0_64, %c0_65] : memref<128x32xbf16, #tpu.memory_space<vmem>>, vector<128x32xbf16>
    %124 = arith.truncf %122 : vector<32x16xf32> to vector<32x16xbf16>
    %cst_66 = arith.constant dense<0.000000e+00> : vector<128x16xf32>
    %125 = tpu.matmul %123, %124, %cst_66 {dimension_numbers = #tpu.dot_dimension_numbers<[1], [0], [0], [1], [0, 0, 1, 1], [], []>} : vector<128x32xbf16>, vector<32x16xbf16>, vector<128x16xf32> -> vector<128x16xf32>
    %c0_67 = arith.constant 0 : index
    %c0_68 = arith.constant 0 : index
    %126 = vector.load %arg23[%c0_67, %c0_68] : memref<128x1xf32, #tpu.memory_space<vmem>>, vector<128x1xf32>
    %127 = vector.broadcast %126 : vector<128x1xf32> to vector<128x16xf32>
    %128 = arith.addf %125, %127 : vector<128x16xf32>
    %cst_69 = arith.constant 0.000000e+00 : f32
    %129 = vector.broadcast %cst_69 : f32 to vector<128x16xf32>
    %130 = arith.maximumf %128, %129 : vector<128x16xf32>
    %c0_70 = arith.constant 0 : index
    %c0_71 = arith.constant 0 : index
    %131 = vector.load %arg24[%c0_70, %c0_71] : memref<1x128xf32, #tpu.memory_space<vmem>>, vector<1x128xf32>
    %cst_72 = arith.constant dense<0.000000e+00> : vector<1x16xf32>
    %132 = tpu.matmul %131, %130, %cst_72 {dimension_numbers = #tpu.dot_dimension_numbers<[1], [0], [0], [1], [0, 0, 1, 1], [], []>} : vector<1x128xf32>, vector<128x16xf32>, vector<1x16xf32> -> vector<1x16xf32>
    %c0_73 = arith.constant 0 : index
    %c0_74 = arith.constant 0 : index
    %133 = vector.load %arg25[%c0_73, %c0_74] : memref<128x128xbf16, #tpu.memory_space<vmem>>, vector<128x128xbf16>
    %134 = arith.truncf %130 : vector<128x16xf32> to vector<128x16xbf16>
    %cst_75 = arith.constant dense<0.000000e+00> : vector<128x16xf32>
    %135 = tpu.matmul %133, %134, %cst_75 {dimension_numbers = #tpu.dot_dimension_numbers<[1], [0], [0], [1], [0, 0, 1, 1], [], []>} : vector<128x128xbf16>, vector<128x16xbf16>, vector<128x16xf32> -> vector<128x16xf32>
    %c0_76 = arith.constant 0 : index
    %c0_77 = arith.constant 0 : index
    %136 = vector.load %arg26[%c0_76, %c0_77] : memref<128x1xf32, #tpu.memory_space<vmem>>, vector<128x1xf32>
    %137 = vector.broadcast %136 : vector<128x1xf32> to vector<128x16xf32>
    %138 = arith.addf %135, %137 : vector<128x16xf32>
    %cst_78 = arith.constant 0.000000e+00 : f32
    %139 = vector.broadcast %cst_78 : f32 to vector<128x16xf32>
    %140 = arith.maximumf %138, %139 : vector<128x16xf32>
    %c0_79 = arith.constant 0 : index
    %c0_80 = arith.constant 0 : index
    %141 = vector.load %arg27[%c0_79, %c0_80] : memref<1x128xf32, #tpu.memory_space<vmem>>, vector<1x128xf32>
    %cst_81 = arith.constant dense<0.000000e+00> : vector<1x16xf32>
    %142 = tpu.matmul %141, %140, %cst_81 {dimension_numbers = #tpu.dot_dimension_numbers<[1], [0], [0], [1], [0, 0, 1, 1], [], []>} : vector<1x128xf32>, vector<128x16xf32>, vector<1x16xf32> -> vector<1x16xf32>
    %143 = arith.addf %132, %142 : vector<1x16xf32>
    %c0_82 = arith.constant 0 : index
    %c0_83 = arith.constant 0 : index
    %c0_84 = arith.constant 0 : index
    %144 = vector.load %arg39[%c0_82, %c0_83, %c0_84] : memref<1x1x16xf32, #tpu.memory_space<vmem>>, vector<1x1x16xf32>
    %145 = vector.shape_cast %144 : vector<1x1x16xf32> to vector<1x16xf32>
    %146 = vector.shape_cast %143 : vector<1x16xf32> to vector<1x1x16xf32>
    tpu.vector_store %arg39[%c0_82, %c0_83, %c0_84], %146 {strides = array<i32>} : memref<1x1x16xf32, #tpu.memory_space<vmem>>, vector<1x1x16xf32>,
    %c0_85 = arith.constant 0 : index
    %c0_86 = arith.constant 0 : index
    %c0_87 = arith.constant 0 : index
    %147 = vector.load %arg28[%c0_85, %c0_86, %c0_87] : memref<1x3x4xf32, #tpu.memory_space<vmem>>, vector<1x3x4xf32>
    %148 = vector.shape_cast %147 : vector<1x3x4xf32> to vector<3x4xf32>
    %c0_88 = arith.constant 0 : index
    %c0_89 = arith.constant 0 : index
    %149 = vector.load %arg29[%c0_88, %c0_89] : memref<32x3xf32, #tpu.memory_space<vmem>>, vector<32x3xf32>
    %c0_90 = arith.constant 0 : index
    %c0_91 = arith.constant 0 : index
    %150 = vector.load %arg30[%c0_90, %c0_91] : memref<32x1xf32, #tpu.memory_space<vmem>>, vector<32x1xf32>
    %151 = vector.extract_strided_slice %149 {offsets = [0, 0], sizes = [32, 1], strides = [1, 1]} : vector<32x3xf32> to vector<32x1xf32>
    %152 = vector.extract_strided_slice %148 {offsets = [0, 0], sizes = [1, 4], strides = [1, 1]} : vector<3x4xf32> to vector<1x4xf32>
    %153 = vector.broadcast %151 : vector<32x1xf32> to vector<32x4xf32>
    %154 = vector.broadcast %152 : vector<1x4xf32> to vector<32x4xf32>
    %155 = arith.mulf %153, %154 : vector<32x4xf32>
    %156 = vector.extract_strided_slice %149 {offsets = [0, 1], sizes = [32, 1], strides = [1, 1]} : vector<32x3xf32> to vector<32x1xf32>
    %157 = vector.extract_strided_slice %148 {offsets = [1, 0], sizes = [1, 4], strides = [1, 1]} : vector<3x4xf32> to vector<1x4xf32>
    %158 = vector.broadcast %156 : vector<32x1xf32> to vector<32x4xf32>
    %159 = vector.broadcast %157 : vector<1x4xf32> to vector<32x4xf32>
    %160 = arith.mulf %158, %159 : vector<32x4xf32>
    %161 = arith.addf %155, %160 : vector<32x4xf32>
    %162 = vector.extract_strided_slice %149 {offsets = [0, 2], sizes = [32, 1], strides = [1, 1]} : vector<32x3xf32> to vector<32x1xf32>
    %163 = vector.extract_strided_slice %148 {offsets = [2, 0], sizes = [1, 4], strides = [1, 1]} : vector<3x4xf32> to vector<1x4xf32>
    %164 = vector.broadcast %162 : vector<32x1xf32> to vector<32x4xf32>
    %165 = vector.broadcast %163 : vector<1x4xf32> to vector<32x4xf32>
    %166 = arith.mulf %164, %165 : vector<32x4xf32>
    %167 = arith.addf %161, %166 : vector<32x4xf32>
    %168 = vector.broadcast %150 : vector<32x1xf32> to vector<32x4xf32>
    %169 = arith.addf %167, %168 : vector<32x4xf32>
    %cst_92 = arith.constant 0.000000e+00 : f32
    %170 = vector.broadcast %cst_92 : f32 to vector<32x4xf32>
    %171 = arith.maximumf %169, %170 : vector<32x4xf32>
    %c0_93 = arith.constant 0 : index
    %c0_94 = arith.constant 0 : index
    %172 = vector.load %arg31[%c0_93, %c0_94] : memref<128x32xbf16, #tpu.memory_space<vmem>>, vector<128x32xbf16>
    %173 = arith.truncf %171 : vector<32x4xf32> to vector<32x4xbf16>
    %cst_95 = arith.constant dense<0.000000e+00> : vector<128x4xf32>
    %174 = tpu.matmul %172, %173, %cst_95 {dimension_numbers = #tpu.dot_dimension_numbers<[1], [0], [0], [1], [0, 0, 1, 1], [], []>} : vector<128x32xbf16>, vector<32x4xbf16>, vector<128x4xf32> -> vector<128x4xf32>
    %c0_96 = arith.constant 0 : index
    %c0_97 = arith.constant 0 : index
    %175 = vector.load %arg32[%c0_96, %c0_97] : memref<128x1xf32, #tpu.memory_space<vmem>>, vector<128x1xf32>
    %176 = vector.broadcast %175 : vector<128x1xf32> to vector<128x4xf32>
    %177 = arith.addf %174, %176 : vector<128x4xf32>
    %cst_98 = arith.constant 0.000000e+00 : f32
    %178 = vector.broadcast %cst_98 : f32 to vector<128x4xf32>
    %179 = arith.maximumf %177, %178 : vector<128x4xf32>
    %c0_99 = arith.constant 0 : index
    %c0_100 = arith.constant 0 : index
    %180 = vector.load %arg33[%c0_99, %c0_100] : memref<1x128xf32, #tpu.memory_space<vmem>>, vector<1x128xf32>
    %cst_101 = arith.constant dense<0.000000e+00> : vector<1x4xf32>
    %181 = tpu.matmul %180, %179, %cst_101 {dimension_numbers = #tpu.dot_dimension_numbers<[1], [0], [0], [1], [0, 0, 1, 1], [], []>} : vector<1x128xf32>, vector<128x4xf32>, vector<1x4xf32> -> vector<1x4xf32>
    %c0_102 = arith.constant 0 : index
    %c0_103 = arith.constant 0 : index
    %182 = vector.load %arg34[%c0_102, %c0_103] : memref<128x128xbf16, #tpu.memory_space<vmem>>, vector<128x128xbf16>
    %183 = arith.truncf %179 : vector<128x4xf32> to vector<128x4xbf16>
    %cst_104 = arith.constant dense<0.000000e+00> : vector<128x4xf32>
    %184 = tpu.matmul %182, %183, %cst_104 {dimension_numbers = #tpu.dot_dimension_numbers<[1], [0], [0], [1], [0, 0, 1, 1], [], []>} : vector<128x128xbf16>, vector<128x4xbf16>, vector<128x4xf32> -> vector<128x4xf32>
    %c0_105 = arith.constant 0 : index
    %c0_106 = arith.constant 0 : index
    %185 = vector.load %arg35[%c0_105, %c0_106] : memref<128x1xf32, #tpu.memory_space<vmem>>, vector<128x1xf32>
    %186 = vector.broadcast %185 : vector<128x1xf32> to vector<128x4xf32>
    %187 = arith.addf %184, %186 : vector<128x4xf32>
    %cst_107 = arith.constant 0.000000e+00 : f32
    %188 = vector.broadcast %cst_107 : f32 to vector<128x4xf32>
    %189 = arith.maximumf %187, %188 : vector<128x4xf32>
    %c0_108 = arith.constant 0 : index
    %c0_109 = arith.constant 0 : index
    %190 = vector.load %arg36[%c0_108, %c0_109] : memref<1x128xf32, #tpu.memory_space<vmem>>, vector<1x128xf32>
    %cst_110 = arith.constant dense<0.000000e+00> : vector<1x4xf32>
    %191 = tpu.matmul %190, %189, %cst_110 {dimension_numbers = #tpu.dot_dimension_numbers<[1], [0], [0], [1], [0, 0, 1, 1], [], []>} : vector<1x128xf32>, vector<128x4xf32>, vector<1x4xf32> -> vector<1x4xf32>
    %192 = arith.addf %181, %191 : vector<1x4xf32>
    %c0_111 = arith.constant 0 : index
    %c0_112 = arith.constant 0 : index
    %c0_113 = arith.constant 0 : index
    %193 = vector.load %arg40[%c0_111, %c0_112, %c0_113] : memref<1x1x4xf32, #tpu.memory_space<vmem>>, vector<1x1x4xf32>
    %194 = vector.shape_cast %193 : vector<1x1x4xf32> to vector<1x4xf32>
    %195 = vector.shape_cast %192 : vector<1x4xf32> to vector<1x1x4xf32>
    tpu.vector_store %arg40[%c0_111, %c0_112, %c0_113], %195 {strides = array<i32>} : memref<1x1x4xf32, #tpu.memory_space<vmem>>, vector<1x1x4xf32>,
    return
  }
  func.func @transform_0(%arg0: i32) -> (i32, i32, i32) {
    %c0_i32 = arith.constant 0 : i32
    %c0_i32_0 = arith.constant 0 : i32
    %c0_i32_1 = arith.constant 0 : i32
    return %arg0, %c0_i32, %c0_i32_0 : i32, i32, i32
  }
  func.func @transform_1(%arg0: i32) -> (i32, i32) {
    %c0_i32 = arith.constant 0 : i32
    %c0_i32_0 = arith.constant 0 : i32
    %c0_i32_1 = arith.constant 0 : i32
    return %c0_i32, %c0_i32_0 : i32, i32
  }
  func.func @transform_2(%arg0: i32) -> (i32, i32) {
    %c0_i32 = arith.constant 0 : i32
    %c0_i32_0 = arith.constant 0 : i32
    %c0_i32_1 = arith.constant 0 : i32
    return %c0_i32, %c0_i32_0 : i32, i32
  }
  func.func @transform_3(%arg0: i32) -> (i32, i32) {
    %c0_i32 = arith.constant 0 : i32
    %c0_i32_0 = arith.constant 0 : i32
    %c0_i32_1 = arith.constant 0 : i32
    return %c0_i32, %c0_i32_0 : i32, i32
  }
  func.func @transform_4(%arg0: i32) -> (i32, i32) {
    %c0_i32 = arith.constant 0 : i32
    %c0_i32_0 = arith.constant 0 : i32
    %c0_i32_1 = arith.constant 0 : i32
    return %c0_i32, %c0_i32_0 : i32, i32
  }
  func.func @transform_5(%arg0: i32) -> (i32, i32) {
    %c0_i32 = arith.constant 0 : i32
    %c0_i32_0 = arith.constant 0 : i32
    %c0_i32_1 = arith.constant 0 : i32
    return %c0_i32, %c0_i32_0 : i32, i32
  }
  func.func @transform_6(%arg0: i32) -> (i32, i32) {
    %c0_i32 = arith.constant 0 : i32
    %c0_i32_0 = arith.constant 0 : i32
    %c0_i32_1 = arith.constant 0 : i32
    return %c0_i32, %c0_i32_0 : i32, i32
  }
  func.func @transform_7(%arg0: i32) -> (i32, i32) {
    %c0_i32 = arith.constant 0 : i32
    %c0_i32_0 = arith.constant 0 : i32
    %c0_i32_1 = arith.constant 0 : i32
    return %c0_i32, %c0_i32_0 : i32, i32
  }
  func.func @transform_8(%arg0: i32) -> (i32, i32) {
    %c0_i32 = arith.constant 0 : i32
    %c0_i32_0 = arith.constant 0 : i32
    %c0_i32_1 = arith.constant 0 : i32
    return %c0_i32, %c0_i32_0 : i32, i32
  }
  func.func @transform_9(%arg0: i32) -> (i32, i32, i32) {
    %c0_i32 = arith.constant 0 : i32
    %c0_i32_0 = arith.constant 0 : i32
    %c0_i32_1 = arith.constant 0 : i32
    return %arg0, %c0_i32, %c0_i32_0 : i32, i32, i32
  }
  func.func @transform_10(%arg0: i32) -> (i32, i32) {
    %c0_i32 = arith.constant 0 : i32
    %c0_i32_0 = arith.constant 0 : i32
    %c0_i32_1 = arith.constant 0 : i32
    return %c0_i32, %c0_i32_0 : i32, i32
  }
  func.func @transform_11(%arg0: i32) -> (i32, i32) {
    %c0_i32 = arith.constant 0 : i32
    %c0_i32_0 = arith.constant 0 : i32
    %c0_i32_1 = arith.constant 0 : i32
    return %c0_i32, %c0_i32_0 : i32, i32
  }
  func.func @transform_12(%arg0: i32) -> (i32, i32) {
    %c0_i32 = arith.constant 0 : i32
    %c0_i32_0 = arith.constant 0 : i32
    %c0_i32_1 = arith.constant 0 : i32
    return %c0_i32, %c0_i32_0 : i32, i32
  }
  func.func @transform_13(%arg0: i32) -> (i32, i32) {
    %c0_i32 = arith.constant 0 : i32
    %c0_i32_0 = arith.constant 0 : i32
    %c0_i32_1 = arith.constant 0 : i32
    return %c0_i32, %c0_i32_0 : i32, i32
  }
  func.func @transform_14(%arg0: i32) -> (i32, i32) {
    %c0_i32 = arith.constant 0 : i32
    %c0_i32_0 = arith.constant 0 : i32
    %c0_i32_1 = arith.constant 0 : i32
    return %c0_i32, %c0_i32_0 : i32, i32
  }
  func.func @transform_15(%arg0: i32) -> (i32, i32) {
    %c0_i32 = arith.constant 0 : i32
    %c0_i32_0 = arith.constant 0 : i32
    %c0_i32_1 = arith.constant 0 : i32
    return %c0_i32, %c0_i32_0 : i32, i32
  }
  func.func @transform_16(%arg0: i32) -> (i32, i32) {
    %c0_i32 = arith.constant 0 : i32
    %c0_i32_0 = arith.constant 0 : i32
    %c0_i32_1 = arith.constant 0 : i32
    return %c0_i32, %c0_i32_0 : i32, i32
  }
  func.func @transform_17(%arg0: i32) -> (i32, i32) {
    %c0_i32 = arith.constant 0 : i32
    %c0_i32_0 = arith.constant 0 : i32
    %c0_i32_1 = arith.constant 0 : i32
    return %c0_i32, %c0_i32_0 : i32, i32
  }
  func.func @transform_18(%arg0: i32) -> (i32, i32, i32) {
    %c0_i32 = arith.constant 0 : i32
    %c0_i32_0 = arith.constant 0 : i32
    %c0_i32_1 = arith.constant 0 : i32
    return %arg0, %c0_i32, %c0_i32_0 : i32, i32, i32
  }
  func.func @transform_19(%arg0: i32) -> (i32, i32) {
    %c0_i32 = arith.constant 0 : i32
    %c0_i32_0 = arith.constant 0 : i32
    %c0_i32_1 = arith.constant 0 : i32
    return %c0_i32, %c0_i32_0 : i32, i32
  }
  func.func @transform_20(%arg0: i32) -> (i32, i32) {
    %c0_i32 = arith.constant 0 : i32
    %c0_i32_0 = arith.constant 0 : i32
    %c0_i32_1 = arith.constant 0 : i32
    return %c0_i32, %c0_i32_0 : i32, i32
  }
  func.func @transform_21(%arg0: i32) -> (i32, i32) {
    %c0_i32 = arith.constant 0 : i32
    %c0_i32_0 = arith.constant 0 : i32
    %c0_i32_1 = arith.constant 0 : i32
    return %c0_i32, %c0_i32_0 : i32, i32
  }
  func.func @transform_22(%arg0: i32) -> (i32, i32) {
    %c0_i32 = arith.constant 0 : i32
    %c0_i32_0 = arith.constant 0 : i32
    %c0_i32_1 = arith.constant 0 : i32
    return %c0_i32, %c0_i32_0 : i32, i32
  }
  func.func @transform_23(%arg0: i32) -> (i32, i32) {
    %c0_i32 = arith.constant 0 : i32
    %c0_i32_0 = arith.constant 0 : i32
    %c0_i32_1 = arith.constant 0 : i32
    return %c0_i32, %c0_i32_0 : i32, i32
  }
  func.func @transform_24(%arg0: i32) -> (i32, i32) {
    %c0_i32 = arith.constant 0 : i32
    %c0_i32_0 = arith.constant 0 : i32
    %c0_i32_1 = arith.constant 0 : i32
    return %c0_i32, %c0_i32_0 : i32, i32
  }
  func.func @transform_25(%arg0: i32) -> (i32, i32) {
    %c0_i32 = arith.constant 0 : i32
    %c0_i32_0 = arith.constant 0 : i32
    %c0_i32_1 = arith.constant 0 : i32
    return %c0_i32, %c0_i32_0 : i32, i32
  }
  func.func @transform_26(%arg0: i32) -> (i32, i32) {
    %c0_i32 = arith.constant 0 : i32
    %c0_i32_0 = arith.constant 0 : i32
    %c0_i32_1 = arith.constant 0 : i32
    return %c0_i32, %c0_i32_0 : i32, i32
  }
  func.func @transform_27(%arg0: i32) -> (i32, i32, i32) {
    %c0_i32 = arith.constant 0 : i32
    %c0_i32_0 = arith.constant 0 : i32
    %c0_i32_1 = arith.constant 0 : i32
    return %arg0, %c0_i32, %c0_i32_0 : i32, i32, i32
  }
  func.func @transform_28(%arg0: i32) -> (i32, i32) {
    %c0_i32 = arith.constant 0 : i32
    %c0_i32_0 = arith.constant 0 : i32
    %c0_i32_1 = arith.constant 0 : i32
    return %c0_i32, %c0_i32_0 : i32, i32
  }
  func.func @transform_29(%arg0: i32) -> (i32, i32) {
    %c0_i32 = arith.constant 0 : i32
    %c0_i32_0 = arith.constant 0 : i32
    %c0_i32_1 = arith.constant 0 : i32
    return %c0_i32, %c0_i32_0 : i32, i32
  }
  func.func @transform_30(%arg0: i32) -> (i32, i32) {
    %c0_i32 = arith.constant 0 : i32
    %c0_i32_0 = arith.constant 0 : i32
    %c0_i32_1 = arith.constant 0 : i32
    return %c0_i32, %c0_i32_0 : i32, i32
  }
  func.func @transform_31(%arg0: i32) -> (i32, i32) {
    %c0_i32 = arith.constant 0 : i32
    %c0_i32_0 = arith.constant 0 : i32
    %c0_i32_1 = arith.constant 0 : i32
    return %c0_i32, %c0_i32_0 : i32, i32
  }
  func.func @transform_32(%arg0: i32) -> (i32, i32) {
    %c0_i32 = arith.constant 0 : i32
    %c0_i32_0 = arith.constant 0 : i32
    %c0_i32_1 = arith.constant 0 : i32
    return %c0_i32, %c0_i32_0 : i32, i32
  }
  func.func @transform_33(%arg0: i32) -> (i32, i32) {
    %c0_i32 = arith.constant 0 : i32
    %c0_i32_0 = arith.constant 0 : i32
    %c0_i32_1 = arith.constant 0 : i32
    return %c0_i32, %c0_i32_0 : i32, i32
  }
  func.func @transform_34(%arg0: i32) -> (i32, i32) {
    %c0_i32 = arith.constant 0 : i32
    %c0_i32_0 = arith.constant 0 : i32
    %c0_i32_1 = arith.constant 0 : i32
    return %c0_i32, %c0_i32_0 : i32, i32
  }
  func.func @transform_35(%arg0: i32) -> (i32, i32) {
    %c0_i32 = arith.constant 0 : i32
    %c0_i32_0 = arith.constant 0 : i32
    %c0_i32_1 = arith.constant 0 : i32
    return %c0_i32, %c0_i32_0 : i32, i32
  }
  func.func @transform_36(%arg0: i32) -> (i32, i32, i32) {
    %c0_i32 = arith.constant 0 : i32
    %c0_i32_0 = arith.constant 0 : i32
    %c0_i32_1 = arith.constant 0 : i32
    return %arg0, %c0_i32, %c0_i32_0 : i32, i32, i32
  }
  func.func @transform_37(%arg0: i32) -> (i32, i32, i32) {
    %c0_i32 = arith.constant 0 : i32
    %c0_i32_0 = arith.constant 0 : i32
    %c0_i32_1 = arith.constant 0 : i32
    return %arg0, %c0_i32, %c0_i32_0 : i32, i32, i32
  }
  func.func @transform_38(%arg0: i32) -> (i32, i32, i32) {
    %c0_i32 = arith.constant 0 : i32
    %c0_i32_0 = arith.constant 0 : i32
    %c0_i32_1 = arith.constant 0 : i32
    return %arg0, %c0_i32, %c0_i32_0 : i32, i32, i32
  }
  func.func @transform_39(%arg0: i32) -> (i32, i32, i32) {
    %c0_i32 = arith.constant 0 : i32
    %c0_i32_0 = arith.constant 0 : i32
    %c0_i32_1 = arith.constant 0 : i32
    return %arg0, %c0_i32, %c0_i32_0 : i32, i32, i32
  }
}

</mosaic_0001>

<llo_original>
// kernel: eed_forward.3
$region0: #{eed_forward.3}
  #allocation0 [shape = 'u32[]', space=smem, size = 0x4, offset = 0x4, fixed_abs, tag = 'smem constant byte address 0x4 - core index']
  #allocation1 [shape = 'u32[72,128]{1,0:T(1,128)}', space=vmem, size = 0x9000, scoped, tag = 'internal scratch']
  #allocation2 [shape = 'f32[1]{0:T(128)S(6)}', space=smem, size = 0x200, scoped, tag = 'scoped memory for eed_forward.3']
  %s0 = inlined_call_operand.<no memory space> [shape: f32[1], index: 0, kind: input, shape index: {}]
  %s1 = inlined_call_operand.vmem [shape: f32[2,16,128], index: 1, kind: input, shape index: {}]
  %s2 = inlined_call_operand.vmem [shape: f32[2,8,8], index: 2, kind: input, shape index: {}]
  %s3 = inlined_call_operand.vmem [shape: f32[8,128], index: 3, kind: input, shape index: {}]
  %s4 = inlined_call_operand.vmem [shape: f32[16,8], index: 4, kind: input, shape index: {}]
  %s5 = inlined_call_operand.vmem [shape: f32[2,4,4], index: 5, kind: input, shape index: {}]
  %s6 = inlined_call_operand.vmem [shape: f32[4,128], index: 6, kind: input, shape index: {}]
  %s7 = inlined_call_operand.vmem [shape: f32[16,4], index: 7, kind: input, shape index: {}]
  %s8 = inlined_call_operand.vmem [shape: f32[2,2,2], index: 8, kind: input, shape index: {}]
  %s9 = inlined_call_operand.vmem [shape: f32[2,128], index: 9, kind: input, shape index: {}]
  %s10 = inlined_call_operand.vmem [shape: f32[16,2], index: 10, kind: input, shape index: {}]
  %s11 = inlined_call_operand.vmem [shape: f32[2,16,128], index: 11, kind: output, shape index: {}]
  %s12 = sld [smem:[#allocation0]]
  $region77: #{eed_forward.3} parent=0
    _
  %s14 = ssub.s32 1, %s12
  %s15 = scalar_select 0, %s14, %s12
  %16 = sst [smem:[#allocation2]] %s0
  loop: start=0, step=1, limit=4
  $region2: #{eed_forward.3} parent=0 // loop_pre_header
    _
  $region3: #{eed_forward.3} parent=0 // loop_header
    %s18 = sphi 0, %s22
    %p19 = scmp.ge.s32.totalorder %s18, 4
    %s26 = sphi 0, %s26
    %s28 = sphi 0, %s26
    %s29 = sphi 0, %s28
    %s43 = sphi 0, %s29
    %s49 = sphi 0, %s51
    %s52 = sphi 0, %s49
    %s53 = sphi 0, %s52
    %s69 = sphi 0, %s53
    %s75 = sphi 0, %s77
    %s78 = sphi 0, %s75
    %s79 = sphi 0, %s78
    %s95 = sphi 0, %s79
    %s99 = sphi 0, %s99
    %s101 = sphi 0, %s99
    %s102 = sphi 0, %s101
    %s116 = sphi 0, %s102
    %s120 = sphi 0, %s120
    %s122 = sphi 0, %s120
    %s123 = sphi 0, %s122
    %s137 = sphi 0, %s123
    %s143 = sphi 0, %s145
    %s146 = sphi 0, %s143
    %s147 = sphi 0, %s146
    %s163 = sphi 0, %s147
    %s167 = sphi 0, %s167
    %s169 = sphi 0, %s167
    %s170 = sphi 0, %s169
    %s184 = sphi 0, %s170
    %s188 = sphi 0, %s188
    %s190 = sphi 0, %s188
    %s191 = sphi 0, %s190
    %s205 = sphi 0, %s191
    %s211 = sphi 0, %s213
    %s214 = sphi 0, %s211
    %s215 = sphi 0, %s214
    %s231 = sphi 0, %s215
    %s235 = sphi 0, %s235
    %s237 = sphi 0, %s235
    %s238 = sphi 0, %s237
    %s252 = sphi 0, %s238
    %s256 = sphi 0, %s256
    %s258 = sphi 0, %s256
    %s259 = sphi 0, %s258
    %s273 = sphi 0, %s259
    %s279 = sphi 0, %s281
    %s282 = sphi 0, %s279
    %s283 = sphi 0, %s282
    %s299 = sphi 0, %s283
  $region4: #{eed_forward.3} parent=0 // loop_header_branch
    %21 = sbr.rel (%p19) target = $region8
  $region5: #{eed_forward.3} parent=0 // loop_body
    %s23 = ssub.s32 %s18, 1
    %s24 = ssub.s32 %s18, 2
    %s25 = sadd.s32 %s18, 1
    %s27 = sadd.s32 %s26, 1
    %p30 = scmp.eq.s32.totalorder %s18, 1
    %p31 = scmp.ne.s32.totalorder %s26, %s28
    %p32 = scmp.eq.s32.totalorder %s18, 0
    %p33 = por %p31, %p32
    %p34 = scmp.ne.s32.totalorder %s26, %s28
    %p35 = scmp.eq.s32.totalorder %s23, 1
    %p36 = por %p34, %p35
    %p37 = scmp.ne.s32.totalorder %s28, %s29
    %p38 = scmp.eq.s32.totalorder %s23, 0
    %p39 = por %p37, %p38
    %p40 = scmp.ne.s32.totalorder %s28, %s29
    %p41 = scmp.eq.s32.totalorder %s24, 1
    %p42 = por %p40, %p41
    %p44 = scmp.ne.s32.totalorder %s29, %s43
    %p45 = scmp.eq.s32.totalorder %s24, 0
    %p46 = por %p44, %p45
    %s47 = ssub.s32 %s18, %s25
    %p48 = scmp.eq.s32.totalorder %s47, 0
    %s50 = sadd.s32 %s49, 1
    %s51 = scalar_select %p48, %s49, %s50
    %p54 = pneg %p48
    %p55 = scmp.eq.s32.totalorder %s18, 1
    %p56 = por %p54, %p55
    %p57 = scmp.ne.s32.totalorder %s49, %s52
    %p58 = scmp.eq.s32.totalorder %s18, 0
    %p59 = por %p57, %p58
    %p60 = scmp.ne.s32.totalorder %s49, %s52
    %p61 = scmp.eq.s32.totalorder %s23, 1
    %p62 = por %p60, %p61
    %p63 = scmp.ne.s32.totalorder %s52, %s53
    %p64 = scmp.eq.s32.totalorder %s23, 0
    %p65 = por %p63, %p64
    %p66 = scmp.ne.s32.totalorder %s52, %s53
    %p67 = scmp.eq.s32.totalorder %s24, 1
    %p68 = por %p66, %p67
    %p70 = scmp.ne.s32.totalorder %s53, %s69
    %p71 = scmp.eq.s32.totalorder %s24, 0
    %p72 = por %p70, %p71
    %s73 = ssub.s32 %s18, %s25
    %p74 = scmp.eq.s32.totalorder %s73, 0
    %s76 = sadd.s32 %s75, 1
    %s77 = scalar_select %p74, %s75, %s76
    %p80 = pneg %p74
    %p81 = scmp.eq.s32.totalorder %s18, 1
    %p82 = por %p80, %p81
    %p83 = scmp.ne.s32.totalorder %s75, %s78
    %p84 = scmp.eq.s32.totalorder %s18, 0
    %p85 = por %p83, %p84
    %p86 = scmp.ne.s32.totalorder %s75, %s78
    %p87 = scmp.eq.s32.totalorder %s23, 1
    %p88 = por %p86, %p87
    %p89 = scmp.ne.s32.totalorder %s78, %s79
    %p90 = scmp.eq.s32.totalorder %s23, 0
    %p91 = por %p89, %p90
    %p92 = scmp.ne.s32.totalorder %s78, %s79
    %p93 = scmp.eq.s32.totalorder %s24, 1
    %p94 = por %p92, %p93
    %p96 = scmp.ne.s32.totalorder %s79, %s95
    %p97 = scmp.eq.s32.totalorder %s24, 0
    %p98 = por %p96, %p97
    %s100 = sadd.s32 %s99, 1
    %p103 = scmp.eq.s32.totalorder %s18, 1
    %p104 = scmp.ne.s32.totalorder %s99, %s101
    %p105 = scmp.eq.s32.totalorder %s18, 0
    %p106 = por %p104, %p105
    %p107 = scmp.ne.s32.totalorder %s99, %s101
    %p108 = scmp.eq.s32.totalorder %s23, 1
    %p109 = por %p107, %p108
    %p110 = scmp.ne.s32.totalorder %s101, %s102
    %p111 = scmp.eq.s32.totalorder %s23, 0
    %p112 = por %p110, %p111
    %p113 = scmp.ne.s32.totalorder %s101, %s102
    %p114 = scmp.eq.s32.totalorder %s24, 1
    %p115 = por %p113, %p114
    %p117 = scmp.ne.s32.totalorder %s102, %s116
    %p118 = scmp.eq.s32.totalorder %s24, 0
    %p119 = por %p117, %p118
    %s121 = sadd.s32 %s120, 1
    %p124 = scmp.eq.s32.totalorder %s18, 1
    %p125 = scmp.ne.s32.totalorder %s120, %s122
    %p126 = scmp.eq.s32.totalorder %s18, 0
    %p127 = por %p125, %p126
    %p128 = scmp.ne.s32.totalorder %s120, %s122
    %p129 = scmp.eq.s32.totalorder %s23, 1
    %p130 = por %p128, %p129
    %p131 = scmp.ne.s32.totalorder %s122, %s123
    %p132 = scmp.eq.s32.totalorder %s23, 0
    %p133 = por %p131, %p132
    %p134 = scmp.ne.s32.totalorder %s122, %s123
    %p135 = scmp.eq.s32.totalorder %s24, 1
    %p136 = por %p134, %p135
    %p138 = scmp.ne.s32.totalorder %s123, %s137
    %p139 = scmp.eq.s32.totalorder %s24, 0
    %p140 = por %p138, %p139
    %s141 = ssub.s32 %s18, %s25
    %p142 = scmp.eq.s32.totalorder %s141, 0
    %s144 = sadd.s32 %s143, 1
    %s145 = scalar_select %p142, %s143, %s144
    %p148 = pneg %p142
    %p149 = scmp.eq.s32.totalorder %s18, 1
    %p150 = por %p148, %p149
    %p151 = scmp.ne.s32.totalorder %s143, %s146
    %p152 = scmp.eq.s32.totalorder %s18, 0
    %p153 = por %p151, %p152
    %p154 = scmp.ne.s32.totalorder %s143, %s146
    %p155 = scmp.eq.s32.totalorder %s23, 1
    %p156 = por %p154, %p155
    %p157 = scmp.ne.s32.totalorder %s146, %s147
    %p158 = scmp.eq.s32.totalorder %s23, 0
    %p159 = por %p157, %p158
    %p160 = scmp.ne.s32.totalorder %s146, %s147
    %p161 = scmp.eq.s32.totalorder %s24, 1
    %p162 = por %p160, %p161
    %p164 = scmp.ne.s32.totalorder %s147, %s163
    %p165 = scmp.eq.s32.totalorder %s24, 0
    %p166 = por %p164, %p165
    %s168 = sadd.s32 %s167, 1
    %p171 = scmp.eq.s32.totalorder %s18, 1
    %p172 = scmp.ne.s32.totalorder %s167, %s169
    %p173 = scmp.eq.s32.totalorder %s18, 0
    %p174 = por %p172, %p173
    %p175 = scmp.ne.s32.totalorder %s167, %s169
    %p176 = scmp.eq.s32.totalorder %s23, 1
    %p177 = por %p175, %p176
    %p178 = scmp.ne.s32.totalorder %s169, %s170
    %p179 = scmp.eq.s32.totalorder %s23, 0
    %p180 = por %p178, %p179
    %p181 = scmp.ne.s32.totalorder %s169, %s170
    %p182 = scmp.eq.s32.totalorder %s24, 1
    %p183 = por %p181, %p182
    %p185 = scmp.ne.s32.totalorder %s170, %s184
    %p186 = scmp.eq.s32.totalorder %s24, 0
    %p187 = por %p185, %p186
    %s189 = sadd.s32 %s188, 1
    %p192 = scmp.eq.s32.totalorder %s18, 1
    %p193 = scmp.ne.s32.totalorder %s188, %s190
    %p194 = scmp.eq.s32.totalorder %s18, 0
    %p195 = por %p193, %p194
    %p196 = scmp.ne.s32.totalorder %s188, %s190
    %p197 = scmp.eq.s32.totalorder %s23, 1
    %p198 = por %p196, %p197
    %p199 = scmp.ne.s32.totalorder %s190, %s191
    %p200 = scmp.eq.s32.totalorder %s23, 0
    %p201 = por %p199, %p200
    %p202 = scmp.ne.s32.totalorder %s190, %s191
    %p203 = scmp.eq.s32.totalorder %s24, 1
    %p204 = por %p202, %p203
    %p206 = scmp.ne.s32.totalorder %s191, %s205
    %p207 = scmp.eq.s32.totalorder %s24, 0
    %p208 = por %p206, %p207
    %s209 = ssub.s32 %s18, %s25
    %p210 = scmp.eq.s32.totalorder %s209, 0
    %s212 = sadd.s32 %s211, 1
    %s213 = scalar_select %p210, %s211, %s212
    %p216 = pneg %p210
    %p217 = scmp.eq.s32.totalorder %s18, 1
    %p218 = por %p216, %p217
    %p219 = scmp.ne.s32.totalorder %s211, %s214
    %p220 = scmp.eq.s32.totalorder %s18, 0
    %p221 = por %p219, %p220
    %p222 = scmp.ne.s32.totalorder %s211, %s214
    %p223 = scmp.eq.s32.totalorder %s23, 1
    %p224 = por %p222, %p223
    %p225 = scmp.ne.s32.totalorder %s214, %s215
    %p226 = scmp.eq.s32.totalorder %s23, 0
    %p227 = por %p225, %p226
    %p228 = scmp.ne.s32.totalorder %s214, %s215
    %p229 = scmp.eq.s32.totalorder %s24, 1
    %p230 = por %p228, %p229
    %p232 = scmp.ne.s32.totalorder %s215, %s231
    %p233 = scmp.eq.s32.totalorder %s24, 0
    %p234 = por %p232, %p233
    %s236 = sadd.s32 %s235, 1
    %p239 = scmp.eq.s32.totalorder %s18, 1
    %p240 = scmp.ne.s32.totalorder %s235, %s237
    %p241 = scmp.eq.s32.totalorder %s18, 0
    %p242 = por %p240, %p241
    %p243 = scmp.ne.s32.totalorder %s235, %s237
    %p244 = scmp.eq.s32.totalorder %s23, 1
    %p245 = por %p243, %p244
    %p246 = scmp.ne.s32.totalorder %s237, %s238
    %p247 = scmp.eq.s32.totalorder %s23, 0
    %p248 = por %p246, %p247
    %p249 = scmp.ne.s32.totalorder %s237, %s238
    %p250 = scmp.eq.s32.totalorder %s24, 1
    %p251 = por %p249, %p250
    %p253 = scmp.ne.s32.totalorder %s238, %s252
    %p254 = scmp.eq.s32.totalorder %s24, 0
    %p255 = por %p253, %p254
    %s257 = sadd.s32 %s256, 1
    %p260 = scmp.eq.s32.totalorder %s18, 1
    %p261 = scmp.ne.s32.totalorder %s256, %s258
    %p262 = scmp.eq.s32.totalorder %s18, 0
    %p263 = por %p261, %p262
    %p264 = scmp.ne.s32.totalorder %s256, %s258
    %p265 = scmp.eq.s32.totalorder %s23, 1
    %p266 = por %p264, %p265
    %p267 = scmp.ne.s32.totalorder %s258, %s259
    %p268 = scmp.eq.s32.totalorder %s23, 0
    %p269 = por %p267, %p268
    %p270 = scmp.ne.s32.totalorder %s258, %s259
    %p271 = scmp.eq.s32.totalorder %s24, 1
    %p272 = por %p270, %p271
    %p274 = scmp.ne.s32.totalorder %s259, %s273
    %p275 = scmp.eq.s32.totalorder %s24, 0
    %p276 = por %p274, %p275
    %s277 = ssub.s32 %s18, %s25
    %p278 = scmp.eq.s32.totalorder %s277, 0
    %s280 = sadd.s32 %s279, 1
    %s281 = scalar_select %p278, %s279, %s280
    %p284 = pneg %p278
    %p285 = scmp.eq.s32.totalorder %s18, 1
    %p286 = por %p284, %p285
    %p287 = scmp.ne.s32.totalorder %s279, %s282
    %p288 = scmp.eq.s32.totalorder %s18, 0
    %p289 = por %p287, %p288
    %p290 = scmp.ne.s32.totalorder %s279, %s282
    %p291 = scmp.eq.s32.totalorder %s23, 1
    %p292 = por %p290, %p291
    %p293 = scmp.ne.s32.totalorder %s282, %s283
    %p294 = scmp.eq.s32.totalorder %s23, 0
    %p295 = por %p293, %p294
    %p296 = scmp.ne.s32.totalorder %s282, %s283
    %p297 = scmp.eq.s32.totalorder %s24, 1
    %p298 = por %p296, %p297
    %p300 = scmp.ne.s32.totalorder %s283, %s299
    %p301 = scmp.eq.s32.totalorder %s24, 0
    %p302 = por %p300, %p301
    %p303 = scmp.le.s32.totalorder 1, %s18
    %p304 = scmp.lt.s32.totalorder %s18, 3
    %p305 = pnand %p303, %p304
    %p306 = pneg %p305
    // Predicated region
    $region9: #{eed_forward.3} parent=5 // pred_check
      _
    $region10: #{eed_forward.3} parent=5 // pred_check_branch
      %308 = sbr.rel (%p305) target = $region12
    $region11: #{eed_forward.3} parent=5 // pred_region
      %s309 = ssub.s32 %s18, 1
      // Predicated region
      $region13: #{eed_forward.3} parent=11 // pred_check
        %p310 = pneg %p39
      $region14: #{eed_forward.3} parent=11 // pred_check_branch
        %312 = sbr.rel (%p310) target = $region16
      $region15: #{eed_forward.3} parent=11 // pred_region
        _
      $region16: #{eed_forward.3} parent=11 // pred_fallthru
        _
      // Predicated region
      $region17: #{eed_forward.3} parent=11 // pred_check
        %p313 = pneg %p112
      $region18: #{eed_forward.3} parent=11 // pred_check_branch
        %315 = sbr.rel (%p313) target = $region20
      $region19: #{eed_forward.3} parent=11 // pred_region
        _
      $region20: #{eed_forward.3} parent=11 // pred_fallthru
        _
      // Predicated region
      $region21: #{eed_forward.3} parent=11 // pred_check
        %p316 = pneg %p133
      $region22: #{eed_forward.3} parent=11 // pred_check_branch
        %318 = sbr.rel (%p316) target = $region24
      $region23: #{eed_forward.3} parent=11 // pred_region
        _
      $region24: #{eed_forward.3} parent=11 // pred_fallthru
        _
      // Predicated region
      $region25: #{eed_forward.3} parent=11 // pred_check
        %p319 = pneg %p180
      $region26: #{eed_forward.3} parent=11 // pred_check_branch
        %321 = sbr.rel (%p319) target = $region28
      $region27: #{eed_forward.3} parent=11 // pred_region
        _
      $region28: #{eed_forward.3} parent=11 // pred_fallthru
        _
      // Predicated region
      $region29: #{eed_forward.3} parent=11 // pred_check
        %p322 = pneg %p201
      $region30: #{eed_forward.3} parent=11 // pred_check_branch
        %324 = sbr.rel (%p322) target = $region32
      $region31: #{eed_forward.3} parent=11 // pred_region
        _
      $region32: #{eed_forward.3} parent=11 // pred_fallthru
        _
      // Predicated region
      $region33: #{eed_forward.3} parent=11 // pred_check
        %p325 = pneg %p248
      $region34: #{eed_forward.3} parent=11 // pred_check_branch
        %327 = sbr.rel (%p325) target = $region36
      $region35: #{eed_forward.3} parent=11 // pred_region
        _
      $region36: #{eed_forward.3} parent=11 // pred_fallthru
        _
      // Predicated region
      $region37: #{eed_forward.3} parent=11 // pred_check
        %p328 = pneg %p269
      $region38: #{eed_forward.3} parent=11 // pred_check_branch
        %330 = sbr.rel (%p328) target = $region40
      $region39: #{eed_forward.3} parent=11 // pred_region
        _
      $region40: #{eed_forward.3} parent=11 // pred_fallthru
        _
    $region12: #{eed_forward.3} parent=5 // pred_fallthru
      _
    %p331 = scmp.lt.s32.totalorder %s18, 2
    // Predicated region
    $region41: #{eed_forward.3} parent=5 // pred_check
      %p332 = pneg %p331
    $region42: #{eed_forward.3} parent=5 // pred_check_branch
      %334 = sbr.rel (%p332) target = $region44
    $region43: #{eed_forward.3} parent=5 // pred_region
      // Predicated region
      $region45: #{eed_forward.3} parent=43 // pred_check
        %p335 = pneg %p59
      $region46: #{eed_forward.3} parent=43 // pred_check_branch
        %337 = sbr.rel (%p335) target = $region48
      $region47: #{eed_forward.3} parent=43 // pred_region
        %p338 = scmp.lt.s32.totalorder %s18, 1
        %s339 = scalar_select %p338, %s18, 1
        %s340 = smul.addr %s339, 2
        %s341 = smul.addr %s340, 8
        %s342 = scalar_lea.vmem %s1, %s341
      $region48: #{eed_forward.3} parent=43 // pred_fallthru
        _
      // Predicated region
      $region49: #{eed_forward.3} parent=43 // pred_check
        %p343 = pneg %p85
      $region50: #{eed_forward.3} parent=43 // pred_check_branch
        %345 = sbr.rel (%p343) target = $region52
      $region51: #{eed_forward.3} parent=43 // pred_region
        %p346 = scmp.lt.s32.totalorder %s18, 1
        %s347 = scalar_select %p346, %s18, 1
        %s348 = smul.addr %s347, 8
        %s349 = scalar_lea.vmem %s2, %s348
      $region52: #{eed_forward.3} parent=43 // pred_fallthru
        _
      // Predicated region
      $region53: #{eed_forward.3} parent=43 // pred_check
        %p350 = pneg %p153
      $region54: #{eed_forward.3} parent=43 // pred_check_branch
        %352 = sbr.rel (%p350) target = $region56
      $region55: #{eed_forward.3} parent=43 // pred_region
        %p353 = scmp.lt.s32.totalorder %s18, 1
        %s354 = scalar_select %p353, %s18, 1
        %s355 = smul.addr %s354, 4
        %s356 = scalar_lea.vmem %s5, %s355
      $region56: #{eed_forward.3} parent=43 // pred_fallthru
        _
      // Predicated region
      $region57: #{eed_forward.3} parent=43 // pred_check
        %p357 = pneg %p221
      $region58: #{eed_forward.3} parent=43 // pred_check_branch
        %359 = sbr.rel (%p357) target = $region60
      $region59: #{eed_forward.3} parent=43 // pred_region
        %p360 = scmp.lt.s32.totalorder %s18, 1
        %s361 = scalar_select %p360, %s18, 1
        %s362 = smul.addr %s361, 2
        %s363 = scalar_lea.vmem %s8, %s362
      $region60: #{eed_forward.3} parent=43 // pred_fallthru
        _
    $region44: #{eed_forward.3} parent=5 // pred_fallthru
      _
    %p364 = scmp.le.s32.totalorder 1, %s18
    %p365 = scmp.lt.s32.totalorder %s18, 3
    %p366 = pnand %p364, %p365
    %p367 = pneg %p366
    // Predicated region
    $region61: #{eed_forward.3} parent=5 // pred_check
      _
    $region62: #{eed_forward.3} parent=5 // pred_check_branch
      %369 = sbr.rel (%p366) target = $region64
    $region63: #{eed_forward.3} parent=5 // pred_region
      %s370 = ssub.s32 %s18, 1
      %p371 = pneg %p39
      %p372 = pneg %p36
      %p373 = scmp.lt.s32.totalorder %s23, 1
      %s374 = scalar_select %p373, %s23, 1
      %s375 = smul.addr %s374, 2
      %s376 = smul.addr %s375, 8
      %s377 = scalar_lea.vmem %s1, %s376
      %p378 = pneg %p65
      %p379 = pneg %p62
      %p380 = scmp.lt.s32.totalorder %s23, 1
      %s381 = scalar_select %p380, %s23, 1
      %s382 = smul.addr %s381, 8
      %s383 = scalar_lea.vmem %s2, %s382
      %p384 = pneg %p91
      %p385 = pneg %p88
      %p386 = pneg %p112
      %p387 = pneg %p109
      %p388 = pneg %p133
      %p389 = pneg %p130
      %p390 = scmp.lt.s32.totalorder %s23, 1
      %s391 = scalar_select %p390, %s23, 1
      %s392 = smul.addr %s391, 4
      %s393 = scalar_lea.vmem %s5, %s392
      %p394 = pneg %p159
      %p395 = pneg %p156
      %p396 = pneg %p180
      %p397 = pneg %p177
      %p398 = pneg %p201
      %p399 = pneg %p198
      %p400 = scmp.lt.s32.totalorder %s23, 1
      %s401 = scalar_select %p400, %s23, 1
      %s402 = smul.addr %s401, 2
      %s403 = scalar_lea.vmem %s8, %s402
      %p404 = pneg %p227
      %p405 = pneg %p224
      %p406 = pneg %p248
      %p407 = pneg %p245
      %p408 = pneg %p269
      %p409 = pneg %p266
      %p410 = pneg %p295
      %p411 = pneg %p292
      %p412 = scmp.lt.s32.totalorder %s23, 1
      %s413 = scalar_select %p412, %s23, 1
      %s414 = smul.addr %s413, 2
      %s415 = smul.addr %s414, 8
      %s416 = scalar_lea.vmem %s11, %s415
      %p417 = scmp.lt.s32.totalorder %s23, 1
      %s418 = scalar_select %p417, %s23, 1
      %s419 = smul.addr %s418, 2
      %s420 = smul.addr %s419, 8
      %s421 = scalar_lea.vmem %s1, %s420
      %p422 = scmp.lt.s32.totalorder %s23, 1
      %s423 = scalar_select %p422, %s23, 1
      %s424 = smul.addr %s423, 8
      %s425 = scalar_lea.vmem %s2, %s424
      %p426 = scmp.lt.s32.totalorder %s23, 1
      %s427 = scalar_select %p426, %s23, 1
      %s428 = smul.addr %s427, 4
      %s429 = scalar_lea.vmem %s5, %s428
      %p430 = scmp.lt.s32.totalorder %s23, 1
      %s431 = scalar_select %p430, %s23, 1
      %s432 = smul.addr %s431, 2
      %s433 = scalar_lea.vmem %s8, %s432
      %p434 = scmp.lt.s32.totalorder %s23, 1
      %s435 = scalar_select %p434, %s23, 1
      %s436 = smul.addr %s435, 2
      %s437 = smul.addr %s436, 8
      %s438 = scalar_lea.vmem %s11, %s437
      %v439 = vld [vmem:[%s421] sm:$0xff]
      %v440 = vld [vmem:[%s421 + $0x8] sm:$0xff]
      %v441 = vld [vmem:[%s425] sm:$0xff]
      %v442 = vld [vmem:[%s3] sm:$0xff]
      %vm443 = vcmask 64512
      %v445 = vsel %vm443, %v441, 0
      %447 = vmatpush.msra.mxu0 0.0
      %448 = vmatpush.msra.mxu0 0.0
      %449 = vmatpush.msra.mxu0 0.0
      %450 = vmatpush.msra.mxu0 0.0
      %451 = vmatpush.msra.mxu0 0.0
      %452 = vmatpush.msra.mxu0 0.0
      %453 = vmatpush.msra.mxu0 0.0
      %454 = vmatpush.msra.mxu0 0.0
      %455 = vmatpush.msra.mxu0 0.0
      %456 = vmatpush.msra.mxu0 0.0
      %457 = vmatpush.msra.mxu0 0.0
      %458 = vmatpush.msra.mxu0 0.0
      %459 = vmatpush.msra.mxu0 0.0
      %460 = vmatpush.msra.mxu0 0.0
      %461 = vmatpush.msra.mxu0 0.0
      %462 = vmatpush.msra.mxu0 %v442
      %463 = vmatmul.f32.gmra.mxu0 %v445
      %v464 = vpop.f32.mrf.mxu0
      %v465 = vadd.f32 0.0, %v464
      %466 = vdwg.mxu0
      %v467 = vld [vmem:[%s4] sm:$0xff]
      %v468 = vld [vmem:[%s4 + $0x8] sm:$0xff]
      %v470 = vsel %vm443, %v467, 0
      %v473 = vsel %vm443, %v468, 0
      %475 = vmatpush.msra.mxu0 0.0
      %476 = vmatpush.msra.mxu0 0.0
      %477 = vmatpush.msra.mxu0 0.0
      %478 = vmatpush.msra.mxu0 0.0
      %479 = vmatpush.msra.mxu0 0.0
      %480 = vmatpush.msra.mxu0 0.0
      %481 = vmatpush.msra.mxu0 0.0
      %482 = vmatpush.msra.mxu0 0.0
      %483 = vmatpush.msra.mxu0 0.0
      %484 = vmatpush.msra.mxu0 0.0
      %485 = vmatpush.msra.mxu0 0.0
      %486 = vmatpush.msra.mxu0 0.0
      %487 = vmatpush.msra.mxu0 0.0
      %488 = vmatpush.msra.mxu0 0.0
      %489 = vmatpush.msra.mxu0 0.0
      %490 = vmatpush.msra.mxu0 %v465
      %491 = vmatmul.f32.gmra.mxu0 %v470
      %v492 = vpop.f32.mrf.mxu0
      %v493 = vadd.f32 0.0, %v492
      %494 = vmatmul.f32.gmra.mxu0 %v473
      %v495 = vpop.f32.mrf.mxu0
      %v496 = vadd.f32 0.0, %v495
      %497 = vdwg.mxu0
      %v498 = vadd.f32 %v439, %v493
      %v499 = vadd.f32 %v440, %v496
      %v500 = vld [vmem:[%s429] sm:$0xf]
      %v501 = vld [vmem:[%s6] sm:$0xf]
      %vm502 = vcmask 31744
      %v504 = vsel %vm502, %v500, 0
      %vm506 = vcmask 1043456
      %v508 = vsel %vm506, %v501, 0
      %510 = vmatpush.msra.mxu0 0.0
      %511 = vmatpush.msra.mxu0 0.0
      %512 = vmatpush.msra.mxu0 0.0
      %513 = vmatpush.msra.mxu0 0.0
      %514 = vmatpush.msra.mxu0 0.0
      %515 = vmatpush.msra.mxu0 0.0
      %516 = vmatpush.msra.mxu0 0.0
      %517 = vmatpush.msra.mxu0 0.0
      %518 = vmatpush.msra.mxu0 0.0
      %519 = vmatpush.msra.mxu0 0.0
      %520 = vmatpush.msra.mxu0 0.0
      %521 = vmatpush.msra.mxu0 0.0
      %522 = vmatpush.msra.mxu0 0.0
      %523 = vmatpush.msra.mxu0 0.0
      %524 = vmatpush.msra.mxu0 0.0
      %525 = vmatpush.msra.mxu0 %v508
      %526 = vmatmul.f32.gmra.mxu0 %v504
      %v527 = vpop.f32.mrf.mxu0
      %v528 = vadd.f32 0.0, %v527
      %529 = vdwg.mxu0
      %v530 = vld [vmem:[%s7] sm:$0xff]
      %v531 = vld [vmem:[%s7 + $0x8] sm:$0xff]
      %v533 = vsel %vm502, %v530, 0
      %v536 = vsel %vm502, %v531, 0
      %v539 = vsel %vm506, %v528, 0
      %541 = vmatpush.msra.mxu0 0.0
      %542 = vmatpush.msra.mxu0 0.0
      %543 = vmatpush.msra.mxu0 0.0
      %544 = vmatpush.msra.mxu0 0.0
      %545 = vmatpush.msra.mxu0 0.0
      %546 = vmatpush.msra.mxu0 0.0
      %547 = vmatpush.msra.mxu0 0.0
      %548 = vmatpush.msra.mxu0 0.0
      %549 = vmatpush.msra.mxu0 0.0
      %550 = vmatpush.msra.mxu0 0.0
      %551 = vmatpush.msra.mxu0 0.0
      %552 = vmatpush.msra.mxu0 0.0
      %553 = vmatpush.msra.mxu0 0.0
      %554 = vmatpush.msra.mxu0 0.0
      %555 = vmatpush.msra.mxu0 0.0
      %556 = vmatpush.msra.mxu0 %v539
      %557 = vmatmul.f32.gmra.mxu0 %v533
      %v558 = vpop.f32.mrf.mxu0
      %v559 = vadd.f32 0.0, %v558
      %560 = vmatmul.f32.gmra.mxu0 %v536
      %v561 = vpop.f32.mrf.mxu0
      %v562 = vadd.f32 0.0, %v561
      %563 = vdwg.mxu0
      %v564 = vadd.f32 %v498, %v559
      %v565 = vadd.f32 %v499, %v562
      %v566 = vld [vmem:[%s433] sm:$0x3]
      %v567 = vld [vmem:[%s9] sm:$0x3]
      %vm568 = vcmask 15360
      %v570 = vsel %vm568, %v566, 0
      %vm572 = vcmask 1041408
      %v574 = vsel %vm572, %v567, 0
      %576 = vmatpush.msra.mxu0 0.0
      %577 = vmatpush.msra.mxu0 0.0
      %578 = vmatpush.msra.mxu0 0.0
      %579 = vmatpush.msra.mxu0 0.0
      %580 = vmatpush.msra.mxu0 0.0
      %581 = vmatpush.msra.mxu0 0.0
      %582 = vmatpush.msra.mxu0 0.0
      %583 = vmatpush.msra.mxu0 0.0
      %584 = vmatpush.msra.mxu0 0.0
      %585 = vmatpush.msra.mxu0 0.0
      %586 = vmatpush.msra.mxu0 0.0
      %587 = vmatpush.msra.mxu0 0.0
      %588 = vmatpush.msra.mxu0 0.0
      %589 = vmatpush.msra.mxu0 0.0
      %590 = vmatpush.msra.mxu0 0.0
      %591 = vmatpush.msra.mxu0 %v574
      %592 = vmatmul.f32.gmra.mxu0 %v570
      %v593 = vpop.f32.mrf.mxu0
      %v594 = vadd.f32 0.0, %v593
      %595 = vdwg.mxu0
      %v596 = vld [vmem:[%s10] sm:$0xff]
      %v597 = vld [vmem:[%s10 + $0x8] sm:$0xff]
      %v599 = vsel %vm568, %v596, 0
      %v602 = vsel %vm568, %v597, 0
      %v605 = vsel %vm572, %v594, 0
      %607 = vmatpush.msra.mxu0 0.0
      %608 = vmatpush.msra.mxu0 0.0
      %609 = vmatpush.msra.mxu0 0.0
      %610 = vmatpush.msra.mxu0 0.0
      %611 = vmatpush.msra.mxu0 0.0
      %612 = vmatpush.msra.mxu0 0.0
      %613 = vmatpush.msra.mxu0 0.0
      %614 = vmatpush.msra.mxu0 0.0
      %615 = vmatpush.msra.mxu0 0.0
      %616 = vmatpush.msra.mxu0 0.0
      %617 = vmatpush.msra.mxu0 0.0
      %618 = vmatpush.msra.mxu0 0.0
      %619 = vmatpush.msra.mxu0 0.0
      %620 = vmatpush.msra.mxu0 0.0
      %621 = vmatpush.msra.mxu0 0.0
      %622 = vmatpush.msra.mxu0 %v605
      %623 = vmatmul.f32.gmra.mxu0 %v599
      %v624 = vpop.f32.mrf.mxu0
      %v625 = vadd.f32 0.0, %v624
      %626 = vmatmul.f32.gmra.mxu0 %v602
      %v627 = vpop.f32.mrf.mxu0
      %v628 = vadd.f32 0.0, %v627
      %629 = vdwg.mxu0
      %v630 = vadd.f32 %v564, %v625
      %v631 = vadd.f32 %v565, %v628
      %s632 = sld [smem:[#allocation2]]
      %v633 = vstv %s632
      %v634 = vadd.f32 %v630, %v633
      %v635 = vadd.f32 %v631, %v633
      %636 = vst [vmem:[%s438] sm:$0xff] %v634
      %637 = vst [vmem:[%s438 + $0x8] sm:$0xff] %v635
      %p638 = scmp.lt.s32.totalorder %s23, 1
      %s639 = scalar_select %p638, %s23, 1
      %s640 = smul.addr %s639, 2
      %s641 = smul.addr %s640, 8
      %s642 = scalar_lea.vmem %s11, %s641
      // Predicated region
      $region65: #{eed_forward.3} parent=63 // pred_check
        %p643 = pneg %p292
      $region66: #{eed_forward.3} parent=63 // pred_check_branch
        %645 = sbr.rel (%p643) target = $region68
      $region67: #{eed_forward.3} parent=63 // pred_region
        _
      $region68: #{eed_forward.3} parent=63 // pred_fallthru
        _
    $region64: #{eed_forward.3} parent=5 // pred_fallthru
      _
    %p646 = scmp.le.s32.totalorder 2, %s18
    // Predicated region
    $region69: #{eed_forward.3} parent=5 // pred_check
      %p647 = pneg %p646
    $region70: #{eed_forward.3} parent=5 // pred_check_branch
      %649 = sbr.rel (%p647) target = $region72
    $region71: #{eed_forward.3} parent=5 // pred_region
      %s650 = ssub.s32 %s18, 2
      // Predicated region
      $region73: #{eed_forward.3} parent=71 // pred_check
        %p651 = pneg %p298
      $region74: #{eed_forward.3} parent=71 // pred_check_branch
        %653 = sbr.rel (%p651) target = $region76
      $region75: #{eed_forward.3} parent=71 // pred_region
        %p654 = scmp.lt.s32.totalorder %s24, 1
        %s655 = scalar_select %p654, %s24, 1
        %s656 = smul.addr %s655, 2
        %s657 = smul.addr %s656, 8
        %s658 = scalar_lea.vmem %s11, %s657
      $region76: #{eed_forward.3} parent=71 // pred_fallthru
        _
    $region72: #{eed_forward.3} parent=5 // pred_fallthru
      _
  $region6: #{eed_forward.3} parent=0 // loop_footer
    %s22 = sadd.s32 1, %s18
  $region7: #{eed_forward.3} parent=0 // loop_footer_branch
    %17 = sbr.rel target = $region3
  $region8: #{eed_forward.3} parent=0 // loop_exit
    _

// kernel: eed_forward.2
$region0: #{eed_forward.2}
  #allocation0 [shape = 'u32[]', space=smem, size = 0x4, offset = 0x4, fixed_abs, tag = 'smem constant byte address 0x4 - core index']
  #allocation1 [shape = 'u32[72,128]{1,0:T(1,128)}', space=vmem, size = 0x9000, scoped, tag = 'internal scratch']
  %s0 = inlined_call_operand.smem [shape: u32[40], index: -1, kind: input, shape index: {}]
  %s1 = sld [smem:[%s0]]
  %s2 = scalar_lea.smem %s0, 1
  %s3 = sld [smem:[%s2]]
  %s4 = scalar_lea.smem %s0, 2
  %s5 = sld [smem:[%s4]]
  %s6 = scalar_lea.smem %s0, 3
  %s7 = sld [smem:[%s6]]
  %s8 = scalar_lea.smem %s0, 4
  %s9 = sld [smem:[%s8]]
  %s10 = scalar_lea.smem %s0, 5
  %s11 = sld [smem:[%s10]]
  %s12 = scalar_lea.smem %s0, 6
  %s13 = sld [smem:[%s12]]
  %s14 = scalar_lea.smem %s0, 7
  %s15 = sld [smem:[%s14]]
  %s16 = scalar_lea.smem %s0, 8
  %s17 = sld [smem:[%s16]]
  %s18 = scalar_lea.smem %s0, 9
  %s19 = sld [smem:[%s18]]
  %s20 = scalar_lea.smem %s0, 10
  %s21 = sld [smem:[%s20]]
  %s22 = scalar_lea.smem %s0, 11
  %s23 = sld [smem:[%s22]]
  %s24 = scalar_lea.smem %s0, 12
  %s25 = sld [smem:[%s24]]
  %s26 = scalar_lea.smem %s0, 13
  %s27 = sld [smem:[%s26]]
  %s28 = scalar_lea.smem %s0, 14
  %s29 = sld [smem:[%s28]]
  %s30 = scalar_lea.smem %s0, 15
  %s31 = sld [smem:[%s30]]
  %s32 = scalar_lea.smem %s0, 16
  %s33 = sld [smem:[%s32]]
  %s34 = scalar_lea.smem %s0, 17
  %s35 = sld [smem:[%s34]]
  %s36 = scalar_lea.smem %s0, 18
  %s37 = sld [smem:[%s36]]
  %s38 = scalar_lea.smem %s0, 19
  %s39 = sld [smem:[%s38]]
  %s40 = scalar_lea.smem %s0, 20
  %s41 = sld [smem:[%s40]]
  %s42 = scalar_lea.smem %s0, 21
  %s43 = sld [smem:[%s42]]
  %s44 = scalar_lea.smem %s0, 22
  %s45 = sld [smem:[%s44]]
  %s46 = scalar_lea.smem %s0, 23
  %s47 = sld [smem:[%s46]]
  %s48 = scalar_lea.smem %s0, 24
  %s49 = sld [smem:[%s48]]
  %s50 = scalar_lea.smem %s0, 25
  %s51 = sld [smem:[%s50]]
  %s52 = scalar_lea.smem %s0, 26
  %s53 = sld [smem:[%s52]]
  %s54 = scalar_lea.smem %s0, 27
  %s55 = sld [smem:[%s54]]
  %s56 = scalar_lea.smem %s0, 28
  %s57 = sld [smem:[%s56]]
  %s58 = scalar_lea.smem %s0, 29
  %s59 = sld [smem:[%s58]]
  %s60 = scalar_lea.smem %s0, 30
  %s61 = sld [smem:[%s60]]
  %s62 = scalar_lea.smem %s0, 31
  %s63 = sld [smem:[%s62]]
  %s64 = scalar_lea.smem %s0, 32
  %s65 = sld [smem:[%s64]]
  %s66 = scalar_lea.smem %s0, 33
  %s67 = sld [smem:[%s66]]
  %s68 = scalar_lea.smem %s0, 34
  %s69 = sld [smem:[%s68]]
  %s70 = scalar_lea.smem %s0, 35
  %s71 = sld [smem:[%s70]]
  %s72 = scalar_lea.smem %s0, 36
  %s73 = sld [smem:[%s72]]
  %s74 = scalar_lea.smem %s0, 37
  %s75 = sld [smem:[%s74]]
  %s76 = scalar_lea.smem %s0, 38
  %s77 = sld [smem:[%s76]]
  %s78 = scalar_lea.smem %s0, 39
  %s79 = sld [smem:[%s78]]
  %80 = xla_tuple %s73, %s75, %s77, %s79
  %s81 = sld [smem:[#allocation0]]
  $region201: #{eed_forward.2} parent=0
    _
  %s83 = ssub.s32 1, %s81
  %s84 = scalar_select 0, %s83, %s81
  loop: start=0, step=1, limit=4
  $region2: #{eed_forward.2} parent=0 // loop_pre_header
    _
  $region3: #{eed_forward.2} parent=0 // loop_header
    %s86 = sphi 0, %s90
    %p87 = scmp.ge.s32.totalorder %s86, 4
    %s96 = sphi 0, %s98
    %s99 = sphi 0, %s96
    %s100 = sphi 0, %s99
    %s116 = sphi 0, %s100
    %s120 = sphi 0, %s120
    %s122 = sphi 0, %s120
    %s123 = sphi 0, %s122
    %s137 = sphi 0, %s123
    %s141 = sphi 0, %s141
    %s143 = sphi 0, %s141
    %s144 = sphi 0, %s143
    %s158 = sphi 0, %s144
    %s162 = sphi 0, %s162
    %s164 = sphi 0, %s162
    %s165 = sphi 0, %s164
    %s179 = sphi 0, %s165
    %s183 = sphi 0, %s183
    %s185 = sphi 0, %s183
    %s186 = sphi 0, %s185
    %s200 = sphi 0, %s186
    %s204 = sphi 0, %s204
    %s206 = sphi 0, %s204
    %s207 = sphi 0, %s206
    %s221 = sphi 0, %s207
    %s225 = sphi 0, %s225
    %s227 = sphi 0, %s225
    %s228 = sphi 0, %s227
    %s242 = sphi 0, %s228
    %s246 = sphi 0, %s246
    %s248 = sphi 0, %s246
    %s249 = sphi 0, %s248
    %s263 = sphi 0, %s249
    %s267 = sphi 0, %s267
    %s269 = sphi 0, %s267
    %s270 = sphi 0, %s269
    %s284 = sphi 0, %s270
    %s290 = sphi 0, %s292
    %s293 = sphi 0, %s290
    %s294 = sphi 0, %s293
    %s310 = sphi 0, %s294
    %s314 = sphi 0, %s314
    %s316 = sphi 0, %s314
    %s317 = sphi 0, %s316
    %s331 = sphi 0, %s317
    %s335 = sphi 0, %s335
    %s337 = sphi 0, %s335
    %s338 = sphi 0, %s337
    %s352 = sphi 0, %s338
    %s356 = sphi 0, %s356
    %s358 = sphi 0, %s356
    %s359 = sphi 0, %s358
    %s373 = sphi 0, %s359
    %s377 = sphi 0, %s377
    %s379 = sphi 0, %s377
    %s380 = sphi 0, %s379
    %s394 = sphi 0, %s380
    %s398 = sphi 0, %s398
    %s400 = sphi 0, %s398
    %s401 = sphi 0, %s400
    %s415 = sphi 0, %s401
    %s419 = sphi 0, %s419
    %s421 = sphi 0, %s419
    %s422 = sphi 0, %s421
    %s436 = sphi 0, %s422
    %s440 = sphi 0, %s440
    %s442 = sphi 0, %s440
    %s443 = sphi 0, %s442
    %s457 = sphi 0, %s443
    %s461 = sphi 0, %s461
    %s463 = sphi 0, %s461
    %s464 = sphi 0, %s463
    %s478 = sphi 0, %s464
    %s484 = sphi 0, %s486
    %s487 = sphi 0, %s484
    %s488 = sphi 0, %s487
    %s504 = sphi 0, %s488
    %s508 = sphi 0, %s508
    %s510 = sphi 0, %s508
    %s511 = sphi 0, %s510
    %s525 = sphi 0, %s511
    %s529 = sphi 0, %s529
    %s531 = sphi 0, %s529
    %s532 = sphi 0, %s531
    %s546 = sphi 0, %s532
    %s550 = sphi 0, %s550
    %s552 = sphi 0, %s550
    %s553 = sphi 0, %s552
    %s567 = sphi 0, %s553
    %s571 = sphi 0, %s571
    %s573 = sphi 0, %s571
    %s574 = sphi 0, %s573
    %s588 = sphi 0, %s574
    %s592 = sphi 0, %s592
    %s594 = sphi 0, %s592
    %s595 = sphi 0, %s594
    %s609 = sphi 0, %s595
    %s613 = sphi 0, %s613
    %s615 = sphi 0, %s613
    %s616 = sphi 0, %s615
    %s630 = sphi 0, %s616
    %s634 = sphi 0, %s634
    %s636 = sphi 0, %s634
    %s637 = sphi 0, %s636
    %s651 = sphi 0, %s637
    %s655 = sphi 0, %s655
    %s657 = sphi 0, %s655
    %s658 = sphi 0, %s657
    %s672 = sphi 0, %s658
    %s678 = sphi 0, %s680
    %s681 = sphi 0, %s678
    %s682 = sphi 0, %s681
    %s698 = sphi 0, %s682
    %s702 = sphi 0, %s702
    %s704 = sphi 0, %s702
    %s705 = sphi 0, %s704
    %s719 = sphi 0, %s705
    %s723 = sphi 0, %s723
    %s725 = sphi 0, %s723
    %s726 = sphi 0, %s725
    %s740 = sphi 0, %s726
    %s744 = sphi 0, %s744
    %s746 = sphi 0, %s744
    %s747 = sphi 0, %s746
    %s761 = sphi 0, %s747
    %s765 = sphi 0, %s765
    %s767 = sphi 0, %s765
    %s768 = sphi 0, %s767
    %s782 = sphi 0, %s768
    %s786 = sphi 0, %s786
    %s788 = sphi 0, %s786
    %s789 = sphi 0, %s788
    %s803 = sphi 0, %s789
    %s807 = sphi 0, %s807
    %s809 = sphi 0, %s807
    %s810 = sphi 0, %s809
    %s824 = sphi 0, %s810
    %s828 = sphi 0, %s828
    %s830 = sphi 0, %s828
    %s831 = sphi 0, %s830
    %s845 = sphi 0, %s831
    %s849 = sphi 0, %s849
    %s851 = sphi 0, %s849
    %s852 = sphi 0, %s851
    %s866 = sphi 0, %s852
    %s872 = sphi 0, %s874
    %s875 = sphi 0, %s872
    %s876 = sphi 0, %s875
    %s892 = sphi 0, %s876
    %s898 = sphi 0, %s900
    %s901 = sphi 0, %s898
    %s902 = sphi 0, %s901
    %s918 = sphi 0, %s902
    %s924 = sphi 0, %s926
    %s927 = sphi 0, %s924
    %s928 = sphi 0, %s927
    %s944 = sphi 0, %s928
    %s950 = sphi 0, %s952
    %s953 = sphi 0, %s950
    %s954 = sphi 0, %s953
    %s970 = sphi 0, %s954
  $region4: #{eed_forward.2} parent=0 // loop_header_branch
    %89 = sbr.rel (%p87) target = $region8
  $region5: #{eed_forward.2} parent=0 // loop_body
    %s91 = ssub.s32 %s86, 1
    %s92 = ssub.s32 %s86, 2
    %s93 = sadd.s32 %s86, 1
    %s94 = ssub.s32 %s86, %s93
    %p95 = scmp.eq.s32.totalorder %s94, 0
    %s97 = sadd.s32 %s96, 1
    %s98 = scalar_select %p95, %s96, %s97
    %p101 = pneg %p95
    %p102 = scmp.eq.s32.totalorder %s86, 1
    %p103 = por %p101, %p102
    %p104 = scmp.ne.s32.totalorder %s96, %s99
    %p105 = scmp.eq.s32.totalorder %s86, 0
    %p106 = por %p104, %p105
    %p107 = scmp.ne.s32.totalorder %s96, %s99
    %p108 = scmp.eq.s32.totalorder %s91, 1
    %p109 = por %p107, %p108
    %p110 = scmp.ne.s32.totalorder %s99, %s100
    %p111 = scmp.eq.s32.totalorder %s91, 0
    %p112 = por %p110, %p111
    %p113 = scmp.ne.s32.totalorder %s99, %s100
    %p114 = scmp.eq.s32.totalorder %s92, 1
    %p115 = por %p113, %p114
    %p117 = scmp.ne.s32.totalorder %s100, %s116
    %p118 = scmp.eq.s32.totalorder %s92, 0
    %p119 = por %p117, %p118
    %s121 = sadd.s32 %s120, 1
    %p124 = scmp.eq.s32.totalorder %s86, 1
    %p125 = scmp.ne.s32.totalorder %s120, %s122
    %p126 = scmp.eq.s32.totalorder %s86, 0
    %p127 = por %p125, %p126
    %p128 = scmp.ne.s32.totalorder %s120, %s122
    %p129 = scmp.eq.s32.totalorder %s91, 1
    %p130 = por %p128, %p129
    %p131 = scmp.ne.s32.totalorder %s122, %s123
    %p132 = scmp.eq.s32.totalorder %s91, 0
    %p133 = por %p131, %p132
    %p134 = scmp.ne.s32.totalorder %s122, %s123
    %p135 = scmp.eq.s32.totalorder %s92, 1
    %p136 = por %p134, %p135
    %p138 = scmp.ne.s32.totalorder %s123, %s137
    %p139 = scmp.eq.s32.totalorder %s92, 0
    %p140 = por %p138, %p139
    %s142 = sadd.s32 %s141, 1
    %p145 = scmp.eq.s32.totalorder %s86, 1
    %p146 = scmp.ne.s32.totalorder %s141, %s143
    %p147 = scmp.eq.s32.totalorder %s86, 0
    %p148 = por %p146, %p147
    %p149 = scmp.ne.s32.totalorder %s141, %s143
    %p150 = scmp.eq.s32.totalorder %s91, 1
    %p151 = por %p149, %p150
    %p152 = scmp.ne.s32.totalorder %s143, %s144
    %p153 = scmp.eq.s32.totalorder %s91, 0
    %p154 = por %p152, %p153
    %p155 = scmp.ne.s32.totalorder %s143, %s144
    %p156 = scmp.eq.s32.totalorder %s92, 1
    %p157 = por %p155, %p156
    %p159 = scmp.ne.s32.totalorder %s144, %s158
    %p160 = scmp.eq.s32.totalorder %s92, 0
    %p161 = por %p159, %p160
    %s163 = sadd.s32 %s162, 1
    %p166 = scmp.eq.s32.totalorder %s86, 1
    %p167 = scmp.ne.s32.totalorder %s162, %s164
    %p168 = scmp.eq.s32.totalorder %s86, 0
    %p169 = por %p167, %p168
    %p170 = scmp.ne.s32.totalorder %s162, %s164
    %p171 = scmp.eq.s32.totalorder %s91, 1
    %p172 = por %p170, %p171
    %p173 = scmp.ne.s32.totalorder %s164, %s165
    %p174 = scmp.eq.s32.totalorder %s91, 0
    %p175 = por %p173, %p174
    %p176 = scmp.ne.s32.totalorder %s164, %s165
    %p177 = scmp.eq.s32.totalorder %s92, 1
    %p178 = por %p176, %p177
    %p180 = scmp.ne.s32.totalorder %s165, %s179
    %p181 = scmp.eq.s32.totalorder %s92, 0
    %p182 = por %p180, %p181
    %s184 = sadd.s32 %s183, 1
    %p187 = scmp.eq.s32.totalorder %s86, 1
    %p188 = scmp.ne.s32.totalorder %s183, %s185
    %p189 = scmp.eq.s32.totalorder %s86, 0
    %p190 = por %p188, %p189
    %p191 = scmp.ne.s32.totalorder %s183, %s185
    %p192 = scmp.eq.s32.totalorder %s91, 1
    %p193 = por %p191, %p192
    %p194 = scmp.ne.s32.totalorder %s185, %s186
    %p195 = scmp.eq.s32.totalorder %s91, 0
    %p196 = por %p194, %p195
    %p197 = scmp.ne.s32.totalorder %s185, %s186
    %p198 = scmp.eq.s32.totalorder %s92, 1
    %p199 = por %p197, %p198
    %p201 = scmp.ne.s32.totalorder %s186, %s200
    %p202 = scmp.eq.s32.totalorder %s92, 0
    %p203 = por %p201, %p202
    %s205 = sadd.s32 %s204, 1
    %p208 = scmp.eq.s32.totalorder %s86, 1
    %p209 = scmp.ne.s32.totalorder %s204, %s206
    %p210 = scmp.eq.s32.totalorder %s86, 0
    %p211 = por %p209, %p210
    %p212 = scmp.ne.s32.totalorder %s204, %s206
    %p213 = scmp.eq.s32.totalorder %s91, 1
    %p214 = por %p212, %p213
    %p215 = scmp.ne.s32.totalorder %s206, %s207
    %p216 = scmp.eq.s32.totalorder %s91, 0
    %p217 = por %p215, %p216
    %p218 = scmp.ne.s32.totalorder %s206, %s207
    %p219 = scmp.eq.s32.totalorder %s92, 1
    %p220 = por %p218, %p219
    %p222 = scmp.ne.s32.totalorder %s207, %s221
    %p223 = scmp.eq.s32.totalorder %s92, 0
    %p224 = por %p222, %p223
    %s226 = sadd.s32 %s225, 1
    %p229 = scmp.eq.s32.totalorder %s86, 1
    %p230 = scmp.ne.s32.totalorder %s225, %s227
    %p231 = scmp.eq.s32.totalorder %s86, 0
    %p232 = por %p230, %p231
    %p233 = scmp.ne.s32.totalorder %s225, %s227
    %p234 = scmp.eq.s32.totalorder %s91, 1
    %p235 = por %p233, %p234
    %p236 = scmp.ne.s32.totalorder %s227, %s228
    %p237 = scmp.eq.s32.totalorder %s91, 0
    %p238 = por %p236, %p237
    %p239 = scmp.ne.s32.totalorder %s227, %s228
    %p240 = scmp.eq.s32.totalorder %s92, 1
    %p241 = por %p239, %p240
    %p243 = scmp.ne.s32.totalorder %s228, %s242
    %p244 = scmp.eq.s32.totalorder %s92, 0
    %p245 = por %p243, %p244
    %s247 = sadd.s32 %s246, 1
    %p250 = scmp.eq.s32.totalorder %s86, 1
    %p251 = scmp.ne.s32.totalorder %s246, %s248
    %p252 = scmp.eq.s32.totalorder %s86, 0
    %p253 = por %p251, %p252
    %p254 = scmp.ne.s32.totalorder %s246, %s248
    %p255 = scmp.eq.s32.totalorder %s91, 1
    %p256 = por %p254, %p255
    %p257 = scmp.ne.s32.totalorder %s248, %s249
    %p258 = scmp.eq.s32.totalorder %s91, 0
    %p259 = por %p257, %p258
    %p260 = scmp.ne.s32.totalorder %s248, %s249
    %p261 = scmp.eq.s32.totalorder %s92, 1
    %p262 = por %p260, %p261
    %p264 = scmp.ne.s32.totalorder %s249, %s263
    %p265 = scmp.eq.s32.totalorder %s92, 0
    %p266 = por %p264, %p265
    %s268 = sadd.s32 %s267, 1
    %p271 = scmp.eq.s32.totalorder %s86, 1
    %p272 = scmp.ne.s32.totalorder %s267, %s269
    %p273 = scmp.eq.s32.totalorder %s86, 0
    %p274 = por %p272, %p273
    %p275 = scmp.ne.s32.totalorder %s267, %s269
    %p276 = scmp.eq.s32.totalorder %s91, 1
    %p277 = por %p275, %p276
    %p278 = scmp.ne.s32.totalorder %s269, %s270
    %p279 = scmp.eq.s32.totalorder %s91, 0
    %p280 = por %p278, %p279
    %p281 = scmp.ne.s32.totalorder %s269, %s270
    %p282 = scmp.eq.s32.totalorder %s92, 1
    %p283 = por %p281, %p282
    %p285 = scmp.ne.s32.totalorder %s270, %s284
    %p286 = scmp.eq.s32.totalorder %s92, 0
    %p287 = por %p285, %p286
    %s288 = ssub.s32 %s86, %s93
    %p289 = scmp.eq.s32.totalorder %s288, 0
    %s291 = sadd.s32 %s290, 1
    %s292 = scalar_select %p289, %s290, %s291
    %p295 = pneg %p289
    %p296 = scmp.eq.s32.totalorder %s86, 1
    %p297 = por %p295, %p296
    %p298 = scmp.ne.s32.totalorder %s290, %s293
    %p299 = scmp.eq.s32.totalorder %s86, 0
    %p300 = por %p298, %p299
    %p301 = scmp.ne.s32.totalorder %s290, %s293
    %p302 = scmp.eq.s32.totalorder %s91, 1
    %p303 = por %p301, %p302
    %p304 = scmp.ne.s32.totalorder %s293, %s294
    %p305 = scmp.eq.s32.totalorder %s91, 0
    %p306 = por %p304, %p305
    %p307 = scmp.ne.s32.totalorder %s293, %s294
    %p308 = scmp.eq.s32.totalorder %s92, 1
    %p309 = por %p307, %p308
    %p311 = scmp.ne.s32.totalorder %s294, %s310
    %p312 = scmp.eq.s32.totalorder %s92, 0
    %p313 = por %p311, %p312
    %s315 = sadd.s32 %s314, 1
    %p318 = scmp.eq.s32.totalorder %s86, 1
    %p319 = scmp.ne.s32.totalorder %s314, %s316
    %p320 = scmp.eq.s32.totalorder %s86, 0
    %p321 = por %p319, %p320
    %p322 = scmp.ne.s32.totalorder %s314, %s316
    %p323 = scmp.eq.s32.totalorder %s91, 1
    %p324 = por %p322, %p323
    %p325 = scmp.ne.s32.totalorder %s316, %s317
    %p326 = scmp.eq.s32.totalorder %s91, 0
    %p327 = por %p325, %p326
    %p328 = scmp.ne.s32.totalorder %s316, %s317
    %p329 = scmp.eq.s32.totalorder %s92, 1
    %p330 = por %p328, %p329
    %p332 = scmp.ne.s32.totalorder %s317, %s331
    %p333 = scmp.eq.s32.totalorder %s92, 0
    %p334 = por %p332, %p333
    %s336 = sadd.s32 %s335, 1
    %p339 = scmp.eq.s32.totalorder %s86, 1
    %p340 = scmp.ne.s32.totalorder %s335, %s337
    %p341 = scmp.eq.s32.totalorder %s86, 0
    %p342 = por %p340, %p341
    %p343 = scmp.ne.s32.totalorder %s335, %s337
    %p344 = scmp.eq.s32.totalorder %s91, 1
    %p345 = por %p343, %p344
    %p346 = scmp.ne.s32.totalorder %s337, %s338
    %p347 = scmp.eq.s32.totalorder %s91, 0
    %p348 = por %p346, %p347
    %p349 = scmp.ne.s32.totalorder %s337, %s338
    %p350 = scmp.eq.s32.totalorder %s92, 1
    %p351 = por %p349, %p350
    %p353 = scmp.ne.s32.totalorder %s338, %s352
    %p354 = scmp.eq.s32.totalorder %s92, 0
    %p355 = por %p353, %p354
    %s357 = sadd.s32 %s356, 1
    %p360 = scmp.eq.s32.totalorder %s86, 1
    %p361 = scmp.ne.s32.totalorder %s356, %s358
    %p362 = scmp.eq.s32.totalorder %s86, 0
    %p363 = por %p361, %p362
    %p364 = scmp.ne.s32.totalorder %s356, %s358
    %p365 = scmp.eq.s32.totalorder %s91, 1
    %p366 = por %p364, %p365
    %p367 = scmp.ne.s32.totalorder %s358, %s359
    %p368 = scmp.eq.s32.totalorder %s91, 0
    %p369 = por %p367, %p368
    %p370 = scmp.ne.s32.totalorder %s358, %s359
    %p371 = scmp.eq.s32.totalorder %s92, 1
    %p372 = por %p370, %p371
    %p374 = scmp.ne.s32.totalorder %s359, %s373
    %p375 = scmp.eq.s32.totalorder %s92, 0
    %p376 = por %p374, %p375
    %s378 = sadd.s32 %s377, 1
    %p381 = scmp.eq.s32.totalorder %s86, 1
    %p382 = scmp.ne.s32.totalorder %s377, %s379
    %p383 = scmp.eq.s32.totalorder %s86, 0
    %p384 = por %p382, %p383
    %p385 = scmp.ne.s32.totalorder %s377, %s379
    %p386 = scmp.eq.s32.totalorder %s91, 1
    %p387 = por %p385, %p386
    %p388 = scmp.ne.s32.totalorder %s379, %s380
    %p389 = scmp.eq.s32.totalorder %s91, 0
    %p390 = por %p388, %p389
    %p391 = scmp.ne.s32.totalorder %s379, %s380
    %p392 = scmp.eq.s32.totalorder %s92, 1
    %p393 = por %p391, %p392
    %p395 = scmp.ne.s32.totalorder %s380, %s394
    %p396 = scmp.eq.s32.totalorder %s92, 0
    %p397 = por %p395, %p396
    %s399 = sadd.s32 %s398, 1
    %p402 = scmp.eq.s32.totalorder %s86, 1
    %p403 = scmp.ne.s32.totalorder %s398, %s400
    %p404 = scmp.eq.s32.totalorder %s86, 0
    %p405 = por %p403, %p404
    %p406 = scmp.ne.s32.totalorder %s398, %s400
    %p407 = scmp.eq.s32.totalorder %s91, 1
    %p408 = por %p406, %p407
    %p409 = scmp.ne.s32.totalorder %s400, %s401
    %p410 = scmp.eq.s32.totalorder %s91, 0
    %p411 = por %p409, %p410
    %p412 = scmp.ne.s32.totalorder %s400, %s401
    %p413 = scmp.eq.s32.totalorder %s92, 1
    %p414 = por %p412, %p413
    %p416 = scmp.ne.s32.totalorder %s401, %s415
    %p417 = scmp.eq.s32.totalorder %s92, 0
    %p418 = por %p416, %p417
    %s420 = sadd.s32 %s419, 1
    %p423 = scmp.eq.s32.totalorder %s86, 1
    %p424 = scmp.ne.s32.totalorder %s419, %s421
    %p425 = scmp.eq.s32.totalorder %s86, 0
    %p426 = por %p424, %p425
    %p427 = scmp.ne.s32.totalorder %s419, %s421
    %p428 = scmp.eq.s32.totalorder %s91, 1
    %p429 = por %p427, %p428
    %p430 = scmp.ne.s32.totalorder %s421, %s422
    %p431 = scmp.eq.s32.totalorder %s91, 0
    %p432 = por %p430, %p431
    %p433 = scmp.ne.s32.totalorder %s421, %s422
    %p434 = scmp.eq.s32.totalorder %s92, 1
    %p435 = por %p433, %p434
    %p437 = scmp.ne.s32.totalorder %s422, %s436
    %p438 = scmp.eq.s32.totalorder %s92, 0
    %p439 = por %p437, %p438
    %s441 = sadd.s32 %s440, 1
    %p444 = scmp.eq.s32.totalorder %s86, 1
    %p445 = scmp.ne.s32.totalorder %s440, %s442
    %p446 = scmp.eq.s32.totalorder %s86, 0
    %p447 = por %p445, %p446
    %p448 = scmp.ne.s32.totalorder %s440, %s442
    %p449 = scmp.eq.s32.totalorder %s91, 1
    %p450 = por %p448, %p449
    %p451 = scmp.ne.s32.totalorder %s442, %s443
    %p452 = scmp.eq.s32.totalorder %s91, 0
    %p453 = por %p451, %p452
    %p454 = scmp.ne.s32.totalorder %s442, %s443
    %p455 = scmp.eq.s32.totalorder %s92, 1
    %p456 = por %p454, %p455
    %p458 = scmp.ne.s32.totalorder %s443, %s457
    %p459 = scmp.eq.s32.totalorder %s92, 0
    %p460 = por %p458, %p459
    %s462 = sadd.s32 %s461, 1
    %p465 = scmp.eq.s32.totalorder %s86, 1
    %p466 = scmp.ne.s32.totalorder %s461, %s463
    %p467 = scmp.eq.s32.totalorder %s86, 0
    %p468 = por %p466, %p467
    %p469 = scmp.ne.s32.totalorder %s461, %s463
    %p470 = scmp.eq.s32.totalorder %s91, 1
    %p471 = por %p469, %p470
    %p472 = scmp.ne.s32.totalorder %s463, %s464
    %p473 = scmp.eq.s32.totalorder %s91, 0
    %p474 = por %p472, %p473
    %p475 = scmp.ne.s32.totalorder %s463, %s464
    %p476 = scmp.eq.s32.totalorder %s92, 1
    %p477 = por %p475, %p476
    %p479 = scmp.ne.s32.totalorder %s464, %s478
    %p480 = scmp.eq.s32.totalorder %s92, 0
    %p481 = por %p479, %p480
    %s482 = ssub.s32 %s86, %s93
    %p483 = scmp.eq.s32.totalorder %s482, 0
    %s485 = sadd.s32 %s484, 1
    %s486 = scalar_select %p483, %s484, %s485
    %p489 = pneg %p483
    %p490 = scmp.eq.s32.totalorder %s86, 1
    %p491 = por %p489, %p490
    %p492 = scmp.ne.s32.totalorder %s484, %s487
    %p493 = scmp.eq.s32.totalorder %s86, 0
    %p494 = por %p492, %p493
    %p495 = scmp.ne.s32.totalorder %s484, %s487
    %p496 = scmp.eq.s32.totalorder %s91, 1
    %p497 = por %p495, %p496
    %p498 = scmp.ne.s32.totalorder %s487, %s488
    %p499 = scmp.eq.s32.totalorder %s91, 0
    %p500 = por %p498, %p499
    %p501 = scmp.ne.s32.totalorder %s487, %s488
    %p502 = scmp.eq.s32.totalorder %s92, 1
    %p503 = por %p501, %p502
    %p505 = scmp.ne.s32.totalorder %s488, %s504
    %p506 = scmp.eq.s32.totalorder %s92, 0
    %p507 = por %p505, %p506
    %s509 = sadd.s32 %s508, 1
    %p512 = scmp.eq.s32.totalorder %s86, 1
    %p513 = scmp.ne.s32.totalorder %s508, %s510
    %p514 = scmp.eq.s32.totalorder %s86, 0
    %p515 = por %p513, %p514
    %p516 = scmp.ne.s32.totalorder %s508, %s510
    %p517 = scmp.eq.s32.totalorder %s91, 1
    %p518 = por %p516, %p517
    %p519 = scmp.ne.s32.totalorder %s510, %s511
    %p520 = scmp.eq.s32.totalorder %s91, 0
    %p521 = por %p519, %p520
    %p522 = scmp.ne.s32.totalorder %s510, %s511
    %p523 = scmp.eq.s32.totalorder %s92, 1
    %p524 = por %p522, %p523
    %p526 = scmp.ne.s32.totalorder %s511, %s525
    %p527 = scmp.eq.s32.totalorder %s92, 0
    %p528 = por %p526, %p527
    %s530 = sadd.s32 %s529, 1
    %p533 = scmp.eq.s32.totalorder %s86, 1
    %p534 = scmp.ne.s32.totalorder %s529, %s531
    %p535 = scmp.eq.s32.totalorder %s86, 0
    %p536 = por %p534, %p535
    %p537 = scmp.ne.s32.totalorder %s529, %s531
    %p538 = scmp.eq.s32.totalorder %s91, 1
    %p539 = por %p537, %p538
    %p540 = scmp.ne.s32.totalorder %s531, %s532
    %p541 = scmp.eq.s32.totalorder %s91, 0
    %p542 = por %p540, %p541
    %p543 = scmp.ne.s32.totalorder %s531, %s532
    %p544 = scmp.eq.s32.totalorder %s92, 1
    %p545 = por %p543, %p544
    %p547 = scmp.ne.s32.totalorder %s532, %s546
    %p548 = scmp.eq.s32.totalorder %s92, 0
    %p549 = por %p547, %p548
    %s551 = sadd.s32 %s550, 1
    %p554 = scmp.eq.s32.totalorder %s86, 1
    %p555 = scmp.ne.s32.totalorder %s550, %s552
    %p556 = scmp.eq.s32.totalorder %s86, 0
    %p557 = por %p555, %p556
    %p558 = scmp.ne.s32.totalorder %s550, %s552
    %p559 = scmp.eq.s32.totalorder %s91, 1
    %p560 = por %p558, %p559
    %p561 = scmp.ne.s32.totalorder %s552, %s553
    %p562 = scmp.eq.s32.totalorder %s91, 0
    %p563 = por %p561, %p562
    %p564 = scmp.ne.s32.totalorder %s552, %s553
    %p565 = scmp.eq.s32.totalorder %s92, 1
    %p566 = por %p564, %p565
    %p568 = scmp.ne.s32.totalorder %s553, %s567
    %p569 = scmp.eq.s32.totalorder %s92, 0
    %p570 = por %p568, %p569
    %s572 = sadd.s32 %s571, 1
    %p575 = scmp.eq.s32.totalorder %s86, 1
    %p576 = scmp.ne.s32.totalorder %s571, %s573
    %p577 = scmp.eq.s32.totalorder %s86, 0
    %p578 = por %p576, %p577
    %p579 = scmp.ne.s32.totalorder %s571, %s573
    %p580 = scmp.eq.s32.totalorder %s91, 1
    %p581 = por %p579, %p580
    %p582 = scmp.ne.s32.totalorder %s573, %s574
    %p583 = scmp.eq.s32.totalorder %s91, 0
    %p584 = por %p582, %p583
    %p585 = scmp.ne.s32.totalorder %s573, %s574
    %p586 = scmp.eq.s32.totalorder %s92, 1
    %p587 = por %p585, %p586
    %p589 = scmp.ne.s32.totalorder %s574, %s588
    %p590 = scmp.eq.s32.totalorder %s92, 0
    %p591 = por %p589, %p590
    %s593 = sadd.s32 %s592, 1
    %p596 = scmp.eq.s32.totalorder %s86, 1
    %p597 = scmp.ne.s32.totalorder %s592, %s594
    %p598 = scmp.eq.s32.totalorder %s86, 0
    %p599 = por %p597, %p598
    %p600 = scmp.ne.s32.totalorder %s592, %s594
    %p601 = scmp.eq.s32.totalorder %s91, 1
    %p602 = por %p600, %p601
    %p603 = scmp.ne.s32.totalorder %s594, %s595
    %p604 = scmp.eq.s32.totalorder %s91, 0
    %p605 = por %p603, %p604
    %p606 = scmp.ne.s32.totalorder %s594, %s595
    %p607 = scmp.eq.s32.totalorder %s92, 1
    %p608 = por %p606, %p607
    %p610 = scmp.ne.s32.totalorder %s595, %s609
    %p611 = scmp.eq.s32.totalorder %s92, 0
    %p612 = por %p610, %p611
    %s614 = sadd.s32 %s613, 1
    %p617 = scmp.eq.s32.totalorder %s86, 1
    %p618 = scmp.ne.s32.totalorder %s613, %s615
    %p619 = scmp.eq.s32.totalorder %s86, 0
    %p620 = por %p618, %p619
    %p621 = scmp.ne.s32.totalorder %s613, %s615
    %p622 = scmp.eq.s32.totalorder %s91, 1
    %p623 = por %p621, %p622
    %p624 = scmp.ne.s32.totalorder %s615, %s616
    %p625 = scmp.eq.s32.totalorder %s91, 0
    %p626 = por %p624, %p625
    %p627 = scmp.ne.s32.totalorder %s615, %s616
    %p628 = scmp.eq.s32.totalorder %s92, 1
    %p629 = por %p627, %p628
    %p631 = scmp.ne.s32.totalorder %s616, %s630
    %p632 = scmp.eq.s32.totalorder %s92, 0
    %p633 = por %p631, %p632
    %s635 = sadd.s32 %s634, 1
    %p638 = scmp.eq.s32.totalorder %s86, 1
    %p639 = scmp.ne.s32.totalorder %s634, %s636
    %p640 = scmp.eq.s32.totalorder %s86, 0
    %p641 = por %p639, %p640
    %p642 = scmp.ne.s32.totalorder %s634, %s636
    %p643 = scmp.eq.s32.totalorder %s91, 1
    %p644 = por %p642, %p643
    %p645 = scmp.ne.s32.totalorder %s636, %s637
    %p646 = scmp.eq.s32.totalorder %s91, 0
    %p647 = por %p645, %p646
    %p648 = scmp.ne.s32.totalorder %s636, %s637
    %p649 = scmp.eq.s32.totalorder %s92, 1
    %p650 = por %p648, %p649
    %p652 = scmp.ne.s32.totalorder %s637, %s651
    %p653 = scmp.eq.s32.totalorder %s92, 0
    %p654 = por %p652, %p653
    %s656 = sadd.s32 %s655, 1
    %p659 = scmp.eq.s32.totalorder %s86, 1
    %p660 = scmp.ne.s32.totalorder %s655, %s657
    %p661 = scmp.eq.s32.totalorder %s86, 0
    %p662 = por %p660, %p661
    %p663 = scmp.ne.s32.totalorder %s655, %s657
    %p664 = scmp.eq.s32.totalorder %s91, 1
    %p665 = por %p663, %p664
    %p666 = scmp.ne.s32.totalorder %s657, %s658
    %p667 = scmp.eq.s32.totalorder %s91, 0
    %p668 = por %p666, %p667
    %p669 = scmp.ne.s32.totalorder %s657, %s658
    %p670 = scmp.eq.s32.totalorder %s92, 1
    %p671 = por %p669, %p670
    %p673 = scmp.ne.s32.totalorder %s658, %s672
    %p674 = scmp.eq.s32.totalorder %s92, 0
    %p675 = por %p673, %p674
    %s676 = ssub.s32 %s86, %s93
    %p677 = scmp.eq.s32.totalorder %s676, 0
    %s679 = sadd.s32 %s678, 1
    %s680 = scalar_select %p677, %s678, %s679
    %p683 = pneg %p677
    %p684 = scmp.eq.s32.totalorder %s86, 1
    %p685 = por %p683, %p684
    %p686 = scmp.ne.s32.totalorder %s678, %s681
    %p687 = scmp.eq.s32.totalorder %s86, 0
    %p688 = por %p686, %p687
    %p689 = scmp.ne.s32.totalorder %s678, %s681
    %p690 = scmp.eq.s32.totalorder %s91, 1
    %p691 = por %p689, %p690
    %p692 = scmp.ne.s32.totalorder %s681, %s682
    %p693 = scmp.eq.s32.totalorder %s91, 0
    %p694 = por %p692, %p693
    %p695 = scmp.ne.s32.totalorder %s681, %s682
    %p696 = scmp.eq.s32.totalorder %s92, 1
    %p697 = por %p695, %p696
    %p699 = scmp.ne.s32.totalorder %s682, %s698
    %p700 = scmp.eq.s32.totalorder %s92, 0
    %p701 = por %p699, %p700
    %s703 = sadd.s32 %s702, 1
    %p706 = scmp.eq.s32.totalorder %s86, 1
    %p707 = scmp.ne.s32.totalorder %s702, %s704
    %p708 = scmp.eq.s32.totalorder %s86, 0
    %p709 = por %p707, %p708
    %p710 = scmp.ne.s32.totalorder %s702, %s704
    %p711 = scmp.eq.s32.totalorder %s91, 1
    %p712 = por %p710, %p711
    %p713 = scmp.ne.s32.totalorder %s704, %s705
    %p714 = scmp.eq.s32.totalorder %s91, 0
    %p715 = por %p713, %p714
    %p716 = scmp.ne.s32.totalorder %s704, %s705
    %p717 = scmp.eq.s32.totalorder %s92, 1
    %p718 = por %p716, %p717
    %p720 = scmp.ne.s32.totalorder %s705, %s719
    %p721 = scmp.eq.s32.totalorder %s92, 0
    %p722 = por %p720, %p721
    %s724 = sadd.s32 %s723, 1
    %p727 = scmp.eq.s32.totalorder %s86, 1
    %p728 = scmp.ne.s32.totalorder %s723, %s725
    %p729 = scmp.eq.s32.totalorder %s86, 0
    %p730 = por %p728, %p729
    %p731 = scmp.ne.s32.totalorder %s723, %s725
    %p732 = scmp.eq.s32.totalorder %s91, 1
    %p733 = por %p731, %p732
    %p734 = scmp.ne.s32.totalorder %s725, %s726
    %p735 = scmp.eq.s32.totalorder %s91, 0
    %p736 = por %p734, %p735
    %p737 = scmp.ne.s32.totalorder %s725, %s726
    %p738 = scmp.eq.s32.totalorder %s92, 1
    %p739 = por %p737, %p738
    %p741 = scmp.ne.s32.totalorder %s726, %s740
    %p742 = scmp.eq.s32.totalorder %s92, 0
    %p743 = por %p741, %p742
    %s745 = sadd.s32 %s744, 1
    %p748 = scmp.eq.s32.totalorder %s86, 1
    %p749 = scmp.ne.s32.totalorder %s744, %s746
    %p750 = scmp.eq.s32.totalorder %s86, 0
    %p751 = por %p749, %p750
    %p752 = scmp.ne.s32.totalorder %s744, %s746
    %p753 = scmp.eq.s32.totalorder %s91, 1
    %p754 = por %p752, %p753
    %p755 = scmp.ne.s32.totalorder %s746, %s747
    %p756 = scmp.eq.s32.totalorder %s91, 0
    %p757 = por %p755, %p756
    %p758 = scmp.ne.s32.totalorder %s746, %s747
    %p759 = scmp.eq.s32.totalorder %s92, 1
    %p760 = por %p758, %p759
    %p762 = scmp.ne.s32.totalorder %s747, %s761
    %p763 = scmp.eq.s32.totalorder %s92, 0
    %p764 = por %p762, %p763
    %s766 = sadd.s32 %s765, 1
    %p769 = scmp.eq.s32.totalorder %s86, 1
    %p770 = scmp.ne.s32.totalorder %s765, %s767
    %p771 = scmp.eq.s32.totalorder %s86, 0
    %p772 = por %p770, %p771
    %p773 = scmp.ne.s32.totalorder %s765, %s767
    %p774 = scmp.eq.s32.totalorder %s91, 1
    %p775 = por %p773, %p774
    %p776 = scmp.ne.s32.totalorder %s767, %s768
    %p777 = scmp.eq.s32.totalorder %s91, 0
    %p778 = por %p776, %p777
    %p779 = scmp.ne.s32.totalorder %s767, %s768
    %p780 = scmp.eq.s32.totalorder %s92, 1
    %p781 = por %p779, %p780
    %p783 = scmp.ne.s32.totalorder %s768, %s782
    %p784 = scmp.eq.s32.totalorder %s92, 0
    %p785 = por %p783, %p784
    %s787 = sadd.s32 %s786, 1
    %p790 = scmp.eq.s32.totalorder %s86, 1
    %p791 = scmp.ne.s32.totalorder %s786, %s788
    %p792 = scmp.eq.s32.totalorder %s86, 0
    %p793 = por %p791, %p792
    %p794 = scmp.ne.s32.totalorder %s786, %s788
    %p795 = scmp.eq.s32.totalorder %s91, 1
    %p796 = por %p794, %p795
    %p797 = scmp.ne.s32.totalorder %s788, %s789
    %p798 = scmp.eq.s32.totalorder %s91, 0
    %p799 = por %p797, %p798
    %p800 = scmp.ne.s32.totalorder %s788, %s789
    %p801 = scmp.eq.s32.totalorder %s92, 1
    %p802 = por %p800, %p801
    %p804 = scmp.ne.s32.totalorder %s789, %s803
    %p805 = scmp.eq.s32.totalorder %s92, 0
    %p806 = por %p804, %p805
    %s808 = sadd.s32 %s807, 1
    %p811 = scmp.eq.s32.totalorder %s86, 1
    %p812 = scmp.ne.s32.totalorder %s807, %s809
    %p813 = scmp.eq.s32.totalorder %s86, 0
    %p814 = por %p812, %p813
    %p815 = scmp.ne.s32.totalorder %s807, %s809
    %p816 = scmp.eq.s32.totalorder %s91, 1
    %p817 = por %p815, %p816
    %p818 = scmp.ne.s32.totalorder %s809, %s810
    %p819 = scmp.eq.s32.totalorder %s91, 0
    %p820 = por %p818, %p819
    %p821 = scmp.ne.s32.totalorder %s809, %s810
    %p822 = scmp.eq.s32.totalorder %s92, 1
    %p823 = por %p821, %p822
    %p825 = scmp.ne.s32.totalorder %s810, %s824
    %p826 = scmp.eq.s32.totalorder %s92, 0
    %p827 = por %p825, %p826
    %s829 = sadd.s32 %s828, 1
    %p832 = scmp.eq.s32.totalorder %s86, 1
    %p833 = scmp.ne.s32.totalorder %s828, %s830
    %p834 = scmp.eq.s32.totalorder %s86, 0
    %p835 = por %p833, %p834
    %p836 = scmp.ne.s32.totalorder %s828, %s830
    %p837 = scmp.eq.s32.totalorder %s91, 1
    %p838 = por %p836, %p837
    %p839 = scmp.ne.s32.totalorder %s830, %s831
    %p840 = scmp.eq.s32.totalorder %s91, 0
    %p841 = por %p839, %p840
    %p842 = scmp.ne.s32.totalorder %s830, %s831
    %p843 = scmp.eq.s32.totalorder %s92, 1
    %p844 = por %p842, %p843
    %p846 = scmp.ne.s32.totalorder %s831, %s845
    %p847 = scmp.eq.s32.totalorder %s92, 0
    %p848 = por %p846, %p847
    %s850 = sadd.s32 %s849, 1
    %p853 = scmp.eq.s32.totalorder %s86, 1
    %p854 = scmp.ne.s32.totalorder %s849, %s851
    %p855 = scmp.eq.s32.totalorder %s86, 0
    %p856 = por %p854, %p855
    %p857 = scmp.ne.s32.totalorder %s849, %s851
    %p858 = scmp.eq.s32.totalorder %s91, 1
    %p859 = por %p857, %p858
    %p860 = scmp.ne.s32.totalorder %s851, %s852
    %p861 = scmp.eq.s32.totalorder %s91, 0
    %p862 = por %p860, %p861
    %p863 = scmp.ne.s32.totalorder %s851, %s852
    %p864 = scmp.eq.s32.totalorder %s92, 1
    %p865 = por %p863, %p864
    %p867 = scmp.ne.s32.totalorder %s852, %s866
    %p868 = scmp.eq.s32.totalorder %s92, 0
    %p869 = por %p867, %p868
    %s870 = ssub.s32 %s86, %s93
    %p871 = scmp.eq.s32.totalorder %s870, 0
    %s873 = sadd.s32 %s872, 1
    %s874 = scalar_select %p871, %s872, %s873
    %p877 = pneg %p871
    %p878 = scmp.eq.s32.totalorder %s86, 1
    %p879 = por %p877, %p878
    %p880 = scmp.ne.s32.totalorder %s872, %s875
    %p881 = scmp.eq.s32.totalorder %s86, 0
    %p882 = por %p880, %p881
    %p883 = scmp.ne.s32.totalorder %s872, %s875
    %p884 = scmp.eq.s32.totalorder %s91, 1
    %p885 = por %p883, %p884
    %p886 = scmp.ne.s32.totalorder %s875, %s876
    %p887 = scmp.eq.s32.totalorder %s91, 0
    %p888 = por %p886, %p887
    %p889 = scmp.ne.s32.totalorder %s875, %s876
    %p890 = scmp.eq.s32.totalorder %s92, 1
    %p891 = por %p889, %p890
    %p893 = scmp.ne.s32.totalorder %s876, %s892
    %p894 = scmp.eq.s32.totalorder %s92, 0
    %p895 = por %p893, %p894
    %s896 = ssub.s32 %s86, %s93
    %p897 = scmp.eq.s32.totalorder %s896, 0
    %s899 = sadd.s32 %s898, 1
    %s900 = scalar_select %p897, %s898, %s899
    %p903 = pneg %p897
    %p904 = scmp.eq.s32.totalorder %s86, 1
    %p905 = por %p903, %p904
    %p906 = scmp.ne.s32.totalorder %s898, %s901
    %p907 = scmp.eq.s32.totalorder %s86, 0
    %p908 = por %p906, %p907
    %p909 = scmp.ne.s32.totalorder %s898, %s901
    %p910 = scmp.eq.s32.totalorder %s91, 1
    %p911 = por %p909, %p910
    %p912 = scmp.ne.s32.totalorder %s901, %s902
    %p913 = scmp.eq.s32.totalorder %s91, 0
    %p914 = por %p912, %p913
    %p915 = scmp.ne.s32.totalorder %s901, %s902
    %p916 = scmp.eq.s32.totalorder %s92, 1
    %p917 = por %p915, %p916
    %p919 = scmp.ne.s32.totalorder %s902, %s918
    %p920 = scmp.eq.s32.totalorder %s92, 0
    %p921 = por %p919, %p920
    %s922 = ssub.s32 %s86, %s93
    %p923 = scmp.eq.s32.totalorder %s922, 0
    %s925 = sadd.s32 %s924, 1
    %s926 = scalar_select %p923, %s924, %s925
    %p929 = pneg %p923
    %p930 = scmp.eq.s32.totalorder %s86, 1
    %p931 = por %p929, %p930
    %p932 = scmp.ne.s32.totalorder %s924, %s927
    %p933 = scmp.eq.s32.totalorder %s86, 0
    %p934 = por %p932, %p933
    %p935 = scmp.ne.s32.totalorder %s924, %s927
    %p936 = scmp.eq.s32.totalorder %s91, 1
    %p937 = por %p935, %p936
    %p938 = scmp.ne.s32.totalorder %s927, %s928
    %p939 = scmp.eq.s32.totalorder %s91, 0
    %p940 = por %p938, %p939
    %p941 = scmp.ne.s32.totalorder %s927, %s928
    %p942 = scmp.eq.s32.totalorder %s92, 1
    %p943 = por %p941, %p942
    %p945 = scmp.ne.s32.totalorder %s928, %s944
    %p946 = scmp.eq.s32.totalorder %s92, 0
    %p947 = por %p945, %p946
    %s948 = ssub.s32 %s86, %s93
    %p949 = scmp.eq.s32.totalorder %s948, 0
    %s951 = sadd.s32 %s950, 1
    %s952 = scalar_select %p949, %s950, %s951
    %p955 = pneg %p949
    %p956 = scmp.eq.s32.totalorder %s86, 1
    %p957 = por %p955, %p956
    %p958 = scmp.ne.s32.totalorder %s950, %s953
    %p959 = scmp.eq.s32.totalorder %s86, 0
    %p960 = por %p958, %p959
    %p961 = scmp.ne.s32.totalorder %s950, %s953
    %p962 = scmp.eq.s32.totalorder %s91, 1
    %p963 = por %p961, %p962
    %p964 = scmp.ne.s32.totalorder %s953, %s954
    %p965 = scmp.eq.s32.totalorder %s91, 0
    %p966 = por %p964, %p965
    %p967 = scmp.ne.s32.totalorder %s953, %s954
    %p968 = scmp.eq.s32.totalorder %s92, 1
    %p969 = por %p967, %p968
    %p971 = scmp.ne.s32.totalorder %s954, %s970
    %p972 = scmp.eq.s32.totalorder %s92, 0
    %p973 = por %p971, %p972
    %p974 = scmp.le.s32.totalorder 1, %s86
    %p975 = scmp.lt.s32.totalorder %s86, 3
    %p976 = pnand %p974, %p975
    %p977 = pneg %p976
    // Predicated region
    $region9: #{eed_forward.2} parent=5 // pred_check
      _
    $region10: #{eed_forward.2} parent=5 // pred_check_branch
      %979 = sbr.rel (%p976) target = $region12
    $region11: #{eed_forward.2} parent=5 // pred_region
      %s980 = ssub.s32 %s86, 1
      // Predicated region
      $region13: #{eed_forward.2} parent=11 // pred_check
        %p981 = pneg %p133
      $region14: #{eed_forward.2} parent=11 // pred_check_branch
        %983 = sbr.rel (%p981) target = $region16
      $region15: #{eed_forward.2} parent=11 // pred_region
        _
      $region16: #{eed_forward.2} parent=11 // pred_fallthru
        _
      // Predicated region
      $region17: #{eed_forward.2} parent=11 // pred_check
        %p984 = pneg %p154
      $region18: #{eed_forward.2} parent=11 // pred_check_branch
        %986 = sbr.rel (%p984) target = $region20
      $region19: #{eed_forward.2} parent=11 // pred_region
        _
      $region20: #{eed_forward.2} parent=11 // pred_fallthru
        _
      // Predicated region
      $region21: #{eed_forward.2} parent=11 // pred_check
        %p987 = pneg %p175
      $region22: #{eed_forward.2} parent=11 // pred_check_branch
        %989 = sbr.rel (%p987) target = $region24
      $region23: #{eed_forward.2} parent=11 // pred_region
        _
      $region24: #{eed_forward.2} parent=11 // pred_fallthru
        _
      // Predicated region
      $region25: #{eed_forward.2} parent=11 // pred_check
        %p990 = pneg %p196
      $region26: #{eed_forward.2} parent=11 // pred_check_branch
        %992 = sbr.rel (%p990) target = $region28
      $region27: #{eed_forward.2} parent=11 // pred_region
        _
      $region28: #{eed_forward.2} parent=11 // pred_fallthru
        _
      // Predicated region
      $region29: #{eed_forward.2} parent=11 // pred_check
        %p993 = pneg %p217
      $region30: #{eed_forward.2} parent=11 // pred_check_branch
        %995 = sbr.rel (%p993) target = $region32
      $region31: #{eed_forward.2} parent=11 // pred_region
        _
      $region32: #{eed_forward.2} parent=11 // pred_fallthru
        _
      // Predicated region
      $region33: #{eed_forward.2} parent=11 // pred_check
        %p996 = pneg %p238
      $region34: #{eed_forward.2} parent=11 // pred_check_branch
        %998 = sbr.rel (%p996) target = $region36
      $region35: #{eed_forward.2} parent=11 // pred_region
        _
      $region36: #{eed_forward.2} parent=11 // pred_fallthru
        _
      // Predicated region
      $region37: #{eed_forward.2} parent=11 // pred_check
        %p999 = pneg %p259
      $region38: #{eed_forward.2} parent=11 // pred_check_branch
        %1001 = sbr.rel (%p999) target = $region40
      $region39: #{eed_forward.2} parent=11 // pred_region
        _
      $region40: #{eed_forward.2} parent=11 // pred_fallthru
        _
      // Predicated region
      $region41: #{eed_forward.2} parent=11 // pred_check
        %p1002 = pneg %p280
      $region42: #{eed_forward.2} parent=11 // pred_check_branch
        %1004 = sbr.rel (%p1002) target = $region44
      $region43: #{eed_forward.2} parent=11 // pred_region
        _
      $region44: #{eed_forward.2} parent=11 // pred_fallthru
        _
      // Predicated region
      $region45: #{eed_forward.2} parent=11 // pred_check
        %p1005 = pneg %p327
      $region46: #{eed_forward.2} parent=11 // pred_check_branch
        %1007 = sbr.rel (%p1005) target = $region48
      $region47: #{eed_forward.2} parent=11 // pred_region
        _
      $region48: #{eed_forward.2} parent=11 // pred_fallthru
        _
      // Predicated region
      $region49: #{eed_forward.2} parent=11 // pred_check
        %p1008 = pneg %p348
      $region50: #{eed_forward.2} parent=11 // pred_check_branch
        %1010 = sbr.rel (%p1008) target = $region52
      $region51: #{eed_forward.2} parent=11 // pred_region
        _
      $region52: #{eed_forward.2} parent=11 // pred_fallthru
        _
      // Predicated region
      $region53: #{eed_forward.2} parent=11 // pred_check
        %p1011 = pneg %p369
      $region54: #{eed_forward.2} parent=11 // pred_check_branch
        %1013 = sbr.rel (%p1011) target = $region56
      $region55: #{eed_forward.2} parent=11 // pred_region
        _
      $region56: #{eed_forward.2} parent=11 // pred_fallthru
        _
      // Predicated region
      $region57: #{eed_forward.2} parent=11 // pred_check
        %p1014 = pneg %p390
      $region58: #{eed_forward.2} parent=11 // pred_check_branch
        %1016 = sbr.rel (%p1014) target = $region60
      $region59: #{eed_forward.2} parent=11 // pred_region
        _
      $region60: #{eed_forward.2} parent=11 // pred_fallthru
        _
      // Predicated region
      $region61: #{eed_forward.2} parent=11 // pred_check
        %p1017 = pneg %p411
      $region62: #{eed_forward.2} parent=11 // pred_check_branch
        %1019 = sbr.rel (%p1017) target = $region64
      $region63: #{eed_forward.2} parent=11 // pred_region
        _
      $region64: #{eed_forward.2} parent=11 // pred_fallthru
        _
      // Predicated region
      $region65: #{eed_forward.2} parent=11 // pred_check
        %p1020 = pneg %p432
      $region66: #{eed_forward.2} parent=11 // pred_check_branch
        %1022 = sbr.rel (%p1020) target = $region68
      $region67: #{eed_forward.2} parent=11 // pred_region
        _
      $region68: #{eed_forward.2} parent=11 // pred_fallthru
        _
      // Predicated region
      $region69: #{eed_forward.2} parent=11 // pred_check
        %p1023 = pneg %p453
      $region70: #{eed_forward.2} parent=11 // pred_check_branch
        %1025 = sbr.rel (%p1023) target = $region72
      $region71: #{eed_forward.2} parent=11 // pred_region
        _
      $region72: #{eed_forward.2} parent=11 // pred_fallthru
        _
      // Predicated region
      $region73: #{eed_forward.2} parent=11 // pred_check
        %p1026 = pneg %p474
      $region74: #{eed_forward.2} parent=11 // pred_check_branch
        %1028 = sbr.rel (%p1026) target = $region76
      $region75: #{eed_forward.2} parent=11 // pred_region
        _
      $region76: #{eed_forward.2} parent=11 // pred_fallthru
        _
      // Predicated region
      $region77: #{eed_forward.2} parent=11 // pred_check
        %p1029 = pneg %p521
      $region78: #{eed_forward.2} parent=11 // pred_check_branch
        %1031 = sbr.rel (%p1029) target = $region80
      $region79: #{eed_forward.2} parent=11 // pred_region
        _
      $region80: #{eed_forward.2} parent=11 // pred_fallthru
        _
      // Predicated region
      $region81: #{eed_forward.2} parent=11 // pred_check
        %p1032 = pneg %p542
      $region82: #{eed_forward.2} parent=11 // pred_check_branch
        %1034 = sbr.rel (%p1032) target = $region84
      $region83: #{eed_forward.2} parent=11 // pred_region
        _
      $region84: #{eed_forward.2} parent=11 // pred_fallthru
        _
      // Predicated region
      $region85: #{eed_forward.2} parent=11 // pred_check
        %p1035 = pneg %p563
      $region86: #{eed_forward.2} parent=11 // pred_check_branch
        %1037 = sbr.rel (%p1035) target = $region88
      $region87: #{eed_forward.2} parent=11 // pred_region
        _
      $region88: #{eed_forward.2} parent=11 // pred_fallthru
        _
      // Predicated region
      $region89: #{eed_forward.2} parent=11 // pred_check
        %p1038 = pneg %p584
      $region90: #{eed_forward.2} parent=11 // pred_check_branch
        %1040 = sbr.rel (%p1038) target = $region92
      $region91: #{eed_forward.2} parent=11 // pred_region
        _
      $region92: #{eed_forward.2} parent=11 // pred_fallthru
        _
      // Predicated region
      $region93: #{eed_forward.2} parent=11 // pred_check
        %p1041 = pneg %p605
      $region94: #{eed_forward.2} parent=11 // pred_check_branch
        %1043 = sbr.rel (%p1041) target = $region96
      $region95: #{eed_forward.2} parent=11 // pred_region
        _
      $region96: #{eed_forward.2} parent=11 // pred_fallthru
        _
      // Predicated region
      $region97: #{eed_forward.2} parent=11 // pred_check
        %p1044 = pneg %p626
      $region98: #{eed_forward.2} parent=11 // pred_check_branch
        %1046 = sbr.rel (%p1044) target = $region100
      $region99: #{eed_forward.2} parent=11 // pred_region
        _
      $region100: #{eed_forward.2} parent=11 // pred_fallthru
        _
      // Predicated region
      $region101: #{eed_forward.2} parent=11 // pred_check
        %p1047 = pneg %p647
      $region102: #{eed_forward.2} parent=11 // pred_check_branch
        %1049 = sbr.rel (%p1047) target = $region104
      $region103: #{eed_forward.2} parent=11 // pred_region
        _
      $region104: #{eed_forward.2} parent=11 // pred_fallthru
        _
      // Predicated region
      $region105: #{eed_forward.2} parent=11 // pred_check
        %p1050 = pneg %p668
      $region106: #{eed_forward.2} parent=11 // pred_check_branch
        %1052 = sbr.rel (%p1050) target = $region108
      $region107: #{eed_forward.2} parent=11 // pred_region
        _
      $region108: #{eed_forward.2} parent=11 // pred_fallthru
        _
      // Predicated region
      $region109: #{eed_forward.2} parent=11 // pred_check
        %p1053 = pneg %p715
      $region110: #{eed_forward.2} parent=11 // pred_check_branch
        %1055 = sbr.rel (%p1053) target = $region112
      $region111: #{eed_forward.2} parent=11 // pred_region
        _
      $region112: #{eed_forward.2} parent=11 // pred_fallthru
        _
      // Predicated region
      $region113: #{eed_forward.2} parent=11 // pred_check
        %p1056 = pneg %p736
      $region114: #{eed_forward.2} parent=11 // pred_check_branch
        %1058 = sbr.rel (%p1056) target = $region116
      $region115: #{eed_forward.2} parent=11 // pred_region
        _
      $region116: #{eed_forward.2} parent=11 // pred_fallthru
        _
      // Predicated region
      $region117: #{eed_forward.2} parent=11 // pred_check
        %p1059 = pneg %p757
      $region118: #{eed_forward.2} parent=11 // pred_check_branch
        %1061 = sbr.rel (%p1059) target = $region120
      $region119: #{eed_forward.2} parent=11 // pred_region
        _
      $region120: #{eed_forward.2} parent=11 // pred_fallthru
        _
      // Predicated region
      $region121: #{eed_forward.2} parent=11 // pred_check
        %p1062 = pneg %p778
      $region122: #{eed_forward.2} parent=11 // pred_check_branch
        %1064 = sbr.rel (%p1062) target = $region124
      $region123: #{eed_forward.2} parent=11 // pred_region
        _
      $region124: #{eed_forward.2} parent=11 // pred_fallthru
        _
      // Predicated region
      $region125: #{eed_forward.2} parent=11 // pred_check
        %p1065 = pneg %p799
      $region126: #{eed_forward.2} parent=11 // pred_check_branch
        %1067 = sbr.rel (%p1065) target = $region128
      $region127: #{eed_forward.2} parent=11 // pred_region
        _
      $region128: #{eed_forward.2} parent=11 // pred_fallthru
        _
      // Predicated region
      $region129: #{eed_forward.2} parent=11 // pred_check
        %p1068 = pneg %p820
      $region130: #{eed_forward.2} parent=11 // pred_check_branch
        %1070 = sbr.rel (%p1068) target = $region132
      $region131: #{eed_forward.2} parent=11 // pred_region
        _
      $region132: #{eed_forward.2} parent=11 // pred_fallthru
        _
      // Predicated region
      $region133: #{eed_forward.2} parent=11 // pred_check
        %p1071 = pneg %p841
      $region134: #{eed_forward.2} parent=11 // pred_check_branch
        %1073 = sbr.rel (%p1071) target = $region136
      $region135: #{eed_forward.2} parent=11 // pred_region
        _
      $region136: #{eed_forward.2} parent=11 // pred_fallthru
        _
      // Predicated region
      $region137: #{eed_forward.2} parent=11 // pred_check
        %p1074 = pneg %p862
      $region138: #{eed_forward.2} parent=11 // pred_check_branch
        %1076 = sbr.rel (%p1074) target = $region140
      $region139: #{eed_forward.2} parent=11 // pred_region
        _
      $region140: #{eed_forward.2} parent=11 // pred_fallthru
        _
    $region12: #{eed_forward.2} parent=5 // pred_fallthru
      _
    %p1077 = scmp.lt.s32.totalorder %s86, 2
    // Predicated region
    $region141: #{eed_forward.2} parent=5 // pred_check
      %p1078 = pneg %p1077
    $region142: #{eed_forward.2} parent=5 // pred_check_branch
      %1080 = sbr.rel (%p1078) target = $region144
    $region143: #{eed_forward.2} parent=5 // pred_region
      // Predicated region
      $region145: #{eed_forward.2} parent=143 // pred_check
        %p1081 = pneg %p106
      $region146: #{eed_forward.2} parent=143 // pred_check_branch
        %1083 = sbr.rel (%p1081) target = $region148
      $region147: #{eed_forward.2} parent=143 // pred_region
        %p1084 = scmp.lt.s32.totalorder %s86, 1
        %s1085 = scalar_select %p1084, %s86, 1
        %s1086 = smul.addr %s1085, 2
        %s1087 = smul.addr %s1086, 4
        %s1088 = scalar_lea.vmem %s1, %s1087
      $region148: #{eed_forward.2} parent=143 // pred_fallthru
        _
      // Predicated region
      $region149: #{eed_forward.2} parent=143 // pred_check
        %p1089 = pneg %p300
      $region150: #{eed_forward.2} parent=143 // pred_check_branch
        %1091 = sbr.rel (%p1089) target = $region152
      $region151: #{eed_forward.2} parent=143 // pred_region
        %p1092 = scmp.lt.s32.totalorder %s86, 1
        %s1093 = scalar_select %p1092, %s86, 1
        %s1094 = smul.addr %s1093, 4
        %s1095 = scalar_lea.vmem %s19, %s1094
      $region152: #{eed_forward.2} parent=143 // pred_fallthru
        _
      // Predicated region
      $region153: #{eed_forward.2} parent=143 // pred_check
        %p1096 = pneg %p494
      $region154: #{eed_forward.2} parent=143 // pred_check_branch
        %1098 = sbr.rel (%p1096) target = $region156
      $region155: #{eed_forward.2} parent=143 // pred_region
        %p1099 = scmp.lt.s32.totalorder %s86, 1
        %s1100 = scalar_select %p1099, %s86, 1
        %s1101 = smul.addr %s1100, 4
        %s1102 = scalar_lea.vmem %s37, %s1101
      $region156: #{eed_forward.2} parent=143 // pred_fallthru
        _
      // Predicated region
      $region157: #{eed_forward.2} parent=143 // pred_check
        %p1103 = pneg %p688
      $region158: #{eed_forward.2} parent=143 // pred_check_branch
        %1105 = sbr.rel (%p1103) target = $region160
      $region159: #{eed_forward.2} parent=143 // pred_region
        %p1106 = scmp.lt.s32.totalorder %s86, 1
        %s1107 = scalar_select %p1106, %s86, 1
        %s1108 = smul.addr %s1107, 4
        %s1109 = scalar_lea.vmem %s55, %s1108
      $region160: #{eed_forward.2} parent=143 // pred_fallthru
        _
    $region144: #{eed_forward.2} parent=5 // pred_fallthru
      _
    %p1110 = scmp.le.s32.totalorder 1, %s86
    %p1111 = scmp.lt.s32.totalorder %s86, 3
    %p1112 = pnand %p1110, %p1111
    %p1113 = pneg %p1112
    // Predicated region
    $region161: #{eed_forward.2} parent=5 // pred_check
      _
    $region162: #{eed_forward.2} parent=5 // pred_check_branch
      %1115 = sbr.rel (%p1112) target = $region164
    $region163: #{eed_forward.2} parent=5 // pred_region
      %s1116 = ssub.s32 %s86, 1
      %p1117 = scmp.lt.s32.totalorder %s91, 1
      %s1118 = scalar_select %p1117, %s91, 1
      %s1119 = smul.addr %s1118, 2
      %s1120 = smul.addr %s1119, 4
      %s1121 = scalar_lea.vmem %s1, %s1120
      %p1122 = pneg %p112
      %p1123 = pneg %p109
      %p1124 = pneg %p133
      %p1125 = pneg %p130
      %p1126 = pneg %p154
      %p1127 = pneg %p151
      %p1128 = pneg %p175
      %p1129 = pneg %p172
      %p1130 = pneg %p196
      %p1131 = pneg %p193
      %p1132 = pneg %p217
      %p1133 = pneg %p214
      %p1134 = pneg %p238
      %p1135 = pneg %p235
      %p1136 = pneg %p259
      %p1137 = pneg %p256
      %p1138 = pneg %p280
      %p1139 = pneg %p277
      %p1140 = scmp.lt.s32.totalorder %s91, 1
      %s1141 = scalar_select %p1140, %s91, 1
      %s1142 = smul.addr %s1141, 4
      %s1143 = scalar_lea.vmem %s19, %s1142
      %p1144 = pneg %p306
      %p1145 = pneg %p303
      %p1146 = pneg %p327
      %p1147 = pneg %p324
      %p1148 = pneg %p348
      %p1149 = pneg %p345
      %p1150 = pneg %p369
      %p1151 = pneg %p366
      %p1152 = pneg %p390
      %p1153 = pneg %p387
      %p1154 = pneg %p411
      %p1155 = pneg %p408
      %p1156 = pneg %p432
      %p1157 = pneg %p429
      %p1158 = pneg %p453
      %p1159 = pneg %p450
      %p1160 = pneg %p474
      %p1161 = pneg %p471
      %p1162 = scmp.lt.s32.totalorder %s91, 1
      %s1163 = scalar_select %p1162, %s91, 1
      %s1164 = smul.addr %s1163, 4
      %s1165 = scalar_lea.vmem %s37, %s1164
      %p1166 = pneg %p500
      %p1167 = pneg %p497
      %p1168 = pneg %p521
      %p1169 = pneg %p518
      %p1170 = pneg %p542
      %p1171 = pneg %p539
      %p1172 = pneg %p563
      %p1173 = pneg %p560
      %p1174 = pneg %p584
      %p1175 = pneg %p581
      %p1176 = pneg %p605
      %p1177 = pneg %p602
      %p1178 = pneg %p626
      %p1179 = pneg %p623
      %p1180 = pneg %p647
      %p1181 = pneg %p644
      %p1182 = pneg %p668
      %p1183 = pneg %p665
      %p1184 = scmp.lt.s32.totalorder %s91, 1
      %s1185 = scalar_select %p1184, %s91, 1
      %s1186 = smul.addr %s1185, 4
      %s1187 = scalar_lea.vmem %s55, %s1186
      %p1188 = pneg %p694
      %p1189 = pneg %p691
      %p1190 = pneg %p715
      %p1191 = pneg %p712
      %p1192 = pneg %p736
      %p1193 = pneg %p733
      %p1194 = pneg %p757
      %p1195 = pneg %p754
      %p1196 = pneg %p778
      %p1197 = pneg %p775
      %p1198 = pneg %p799
      %p1199 = pneg %p796
      %p1200 = pneg %p820
      %p1201 = pneg %p817
      %p1202 = pneg %p841
      %p1203 = pneg %p838
      %p1204 = pneg %p862
      %p1205 = pneg %p859
      %p1206 = pneg %p888
      %p1207 = pneg %p885
      %p1208 = scmp.lt.s32.totalorder %s91, 1
      %s1209 = scalar_select %p1208, %s91, 1
      %s1210 = smul.addr %s1209, 2
      %s1211 = scalar_lea.vmem %s73, %s1210
      %p1212 = pneg %p914
      %p1213 = pneg %p911
      %p1214 = scmp.lt.s32.totalorder %s91, 1
      %s1215 = scalar_select %p1214, %s91, 1
      %s1216 = scalar_lea.vmem %s75, %s1215
      %p1217 = pneg %p940
      %p1218 = pneg %p937
      %p1219 = scmp.lt.s32.totalorder %s91, 1
      %s1220 = scalar_select %p1219, %s91, 1
      %s1221 = scalar_lea.vmem %s77, %s1220
      %p1222 = pneg %p966
      %p1223 = pneg %p963
      %p1224 = scmp.lt.s32.totalorder %s91, 1
      %s1225 = scalar_select %p1224, %s91, 1
      %s1226 = scalar_lea.vmem %s79, %s1225
      %p1227 = scmp.lt.s32.totalorder %s91, 1
      %s1228 = scalar_select %p1227, %s91, 1
      %s1229 = smul.addr %s1228, 2
      %s1230 = smul.addr %s1229, 4
      %s1231 = scalar_lea.vmem %s1, %s1230
      %p1232 = scmp.lt.s32.totalorder %s91, 1
      %s1233 = scalar_select %p1232, %s91, 1
      %s1234 = smul.addr %s1233, 4
      %s1235 = scalar_lea.vmem %s19, %s1234
      %p1236 = scmp.lt.s32.totalorder %s91, 1
      %s1237 = scalar_select %p1236, %s91, 1
      %s1238 = smul.addr %s1237, 4
      %s1239 = scalar_lea.vmem %s37, %s1238
      %p1240 = scmp.lt.s32.totalorder %s91, 1
      %s1241 = scalar_select %p1240, %s91, 1
      %s1242 = smul.addr %s1241, 4
      %s1243 = scalar_lea.vmem %s55, %s1242
      %p1244 = scmp.lt.s32.totalorder %s91, 1
      %s1245 = scalar_select %p1244, %s91, 1
      %s1246 = smul.addr %s1245, 2
      %s1247 = scalar_lea.vmem %s73, %s1246
      %p1248 = scmp.lt.s32.totalorder %s91, 1
      %s1249 = scalar_select %p1248, %s91, 1
      %s1250 = scalar_lea.vmem %s75, %s1249
      %p1251 = scmp.lt.s32.totalorder %s91, 1
      %s1252 = scalar_select %p1251, %s91, 1
      %s1253 = scalar_lea.vmem %s77, %s1252
      %p1254 = scmp.lt.s32.totalorder %s91, 1
      %s1255 = scalar_select %p1254, %s91, 1
      %s1256 = scalar_lea.vmem %s79, %s1255
      %v1258 = vld [vmem:[%s1231] sm:$0x77]
      %v1259 = vld [vmem:[%s3] sm:$0xff]
      %v1260 = vld [vmem:[%s5] sm:$0xff]
      %1262 = vset.pattern.permute.xlu0 0
      %1263 = vperm.xlu0 %1262, %v1259
      %v1264 = vpop.permute.xlu0 %1263
      %v1267 = vperm.slane %v1258, 0
      %v1268 = vperm.slane %v1258, 4
      %v1271 = vperm.slane %v1267, 0
      %v1272 = vperm.slane %v1268, 0
      %v1273 = vmul.f32 %v1264, %v1271
      %v1274 = vmul.f32 %v1264, %v1272
      %1275 = vset.pattern.permute.xlu0 1
      %1276 = vperm.xlu0 %1275, %v1259
      %v1277 = vpop.permute.xlu0 %1276
      %v1279 = vperm.slane %v1258, 1
      %v1280 = vperm.slane %v1258, 5
      %v1283 = vperm.slane %v1279, 1
      %v1284 = vperm.slane %v1280, 1
      %v1285 = vmul.f32 %v1277, %v1283
      %v1286 = vmul.f32 %v1277, %v1284
      %v1287 = vadd.f32 %v1273, %v1285
      %v1288 = vadd.f32 %v1274, %v1286
      %1289 = vset.pattern.permute.xlu0 2
      %1290 = vperm.xlu0 %1289, %v1259
      %v1291 = vpop.permute.xlu0 %1290
      %v1293 = vperm.slane %v1258, 2
      %v1294 = vperm.slane %v1258, 6
      %v1297 = vperm.slane %v1293, 2
      %v1298 = vperm.slane %v1294, 2
      %v1299 = vmul.f32 %v1291, %v1297
      %v1300 = vmul.f32 %v1291, %v1298
      %v1301 = vadd.f32 %v1287, %v1299
      %v1302 = vadd.f32 %v1288, %v1300
      %1304 = vset.pattern.permute.xlu0 0
      %1305 = vperm.xlu0 %1304, %v1260
      %v1306 = vpop.permute.xlu0 %1305
      %v1308 = vadd.f32 %v1301, %v1306
      %v1309 = vadd.f32 %v1302, %v1306
      %v1310 = vmax.f32 %v1308, 0.0
      %v1311 = vmax.f32 %v1309, 0.0
      %v1312 = vld [vmem:[%s7] sm:$0xf]
      %v1313 = vld [vmem:[%s7 + $0x4] sm:$0xf]
      %v1314 = vld [vmem:[%s7 + $0x8] sm:$0xf]
      %v1315 = vld [vmem:[%s7 + $0xc] sm:$0xf]
      %v1316 = vld [vmem:[%s7 + $0x10] sm:$0xf]
      %v1317 = vld [vmem:[%s7 + $0x14] sm:$0xf]
      %v1318 = vld [vmem:[%s7 + $0x18] sm:$0xf]
      %v1319 = vld [vmem:[%s7 + $0x1c] sm:$0xf]
      %v1320 = vld [vmem:[%s7 + $0x20] sm:$0xf]
      %v1321 = vld [vmem:[%s7 + $0x24] sm:$0xf]
      %v1322 = vld [vmem:[%s7 + $0x28] sm:$0xf]
      %v1323 = vld [vmem:[%s7 + $0x2c] sm:$0xf]
      %v1324 = vld [vmem:[%s7 + $0x30] sm:$0xf]
      %v1325 = vld [vmem:[%s7 + $0x34] sm:$0xf]
      %v1326 = vld [vmem:[%s7 + $0x38] sm:$0xf]
      %v1327 = vld [vmem:[%s7 + $0x3c] sm:$0xf]
      %v1328 = vpack.c.bf16 %v1310, %v1310
      %v1329 = vpack.c.bf16 %v1311, %v1311
      %v1330 = vld [vmem:[%s9] sm:$0xff]
      %v1331 = vld [vmem:[%s9 + $0x8] sm:$0xff]
      %v1332 = vld [vmem:[%s9 + $0x10] sm:$0xff]
      %v1333 = vld [vmem:[%s9 + $0x18] sm:$0xff]
      %v1334 = vld [vmem:[%s9 + $0x20] sm:$0xff]
      %v1335 = vld [vmem:[%s9 + $0x28] sm:$0xff]
      %v1336 = vld [vmem:[%s9 + $0x30] sm:$0xff]
      %v1337 = vld [vmem:[%s9 + $0x38] sm:$0xff]
      %v1338 = vld [vmem:[%s9 + $0x40] sm:$0xff]
      %v1339 = vld [vmem:[%s9 + $0x48] sm:$0xff]
      %v1340 = vld [vmem:[%s9 + $0x50] sm:$0xff]
      %v1341 = vld [vmem:[%s9 + $0x58] sm:$0xff]
      %v1342 = vld [vmem:[%s9 + $0x60] sm:$0xff]
      %v1343 = vld [vmem:[%s9 + $0x68] sm:$0xff]
      %v1344 = vld [vmem:[%s9 + $0x70] sm:$0xff]
      %v1345 = vld [vmem:[%s9 + $0x78] sm:$0xff]
      %1347 = vset.pattern.permute.xlu0 0
      %1348 = vperm.xlu0 %1347, %v1330
      %v1349 = vpop.permute.xlu0 %1348
      %1352 = vset.pattern.permute.xlu0 0
      %1353 = vperm.xlu0 %1352, %v1331
      %v1354 = vpop.permute.xlu0 %1353
      %1357 = vset.pattern.permute.xlu0 0
      %1358 = vperm.xlu0 %1357, %v1332
      %v1359 = vpop.permute.xlu0 %1358
      %1362 = vset.pattern.permute.xlu0 0
      %1363 = vperm.xlu0 %1362, %v1333
      %v1364 = vpop.permute.xlu0 %1363
      %1367 = vset.pattern.permute.xlu0 0
      %1368 = vperm.xlu0 %1367, %v1334
      %v1369 = vpop.permute.xlu0 %1368
      %1372 = vset.pattern.permute.xlu0 0
      %1373 = vperm.xlu0 %1372, %v1335
      %v1374 = vpop.permute.xlu0 %1373
      %1377 = vset.pattern.permute.xlu0 0
      %1378 = vperm.xlu0 %1377, %v1336
      %v1379 = vpop.permute.xlu0 %1378
      %1382 = vset.pattern.permute.xlu0 0
      %1383 = vperm.xlu0 %1382, %v1337
      %v1384 = vpop.permute.xlu0 %1383
      %1387 = vset.pattern.permute.xlu0 0
      %1388 = vperm.xlu0 %1387, %v1338
      %v1389 = vpop.permute.xlu0 %1388
      %1392 = vset.pattern.permute.xlu0 0
      %1393 = vperm.xlu0 %1392, %v1339
      %v1394 = vpop.permute.xlu0 %1393
      %1397 = vset.pattern.permute.xlu0 0
      %1398 = vperm.xlu0 %1397, %v1340
      %v1399 = vpop.permute.xlu0 %1398
      %1402 = vset.pattern.permute.xlu0 0
      %1403 = vperm.xlu0 %1402, %v1341
      %v1404 = vpop.permute.xlu0 %1403
      %1407 = vset.pattern.permute.xlu0 0
      %1408 = vperm.xlu0 %1407, %v1342
      %v1409 = vpop.permute.xlu0 %1408
      %1412 = vset.pattern.permute.xlu0 0
      %1413 = vperm.xlu0 %1412, %v1343
      %v1414 = vpop.permute.xlu0 %1413
      %1417 = vset.pattern.permute.xlu0 0
      %1418 = vperm.xlu0 %1417, %v1344
      %v1419 = vpop.permute.xlu0 %1418
      %1422 = vset.pattern.permute.xlu0 0
      %1423 = vperm.xlu0 %1422, %v1345
      %v1424 = vpop.permute.xlu0 %1423
      %v1442 = vunpack.c.l.b16 %v1312
      %v1443 = vunpack.c.l.b16 %v1313
      %v1444 = vunpack.c.l.b16 %v1314
      %v1445 = vunpack.c.l.b16 %v1315
      %v1446 = vunpack.c.l.b16 %v1316
      %v1447 = vunpack.c.l.b16 %v1317
      %v1448 = vunpack.c.l.b16 %v1318
      %v1449 = vunpack.c.l.b16 %v1319
      %v1450 = vunpack.c.l.b16 %v1320
      %v1451 = vunpack.c.l.b16 %v1321
      %v1452 = vunpack.c.l.b16 %v1322
      %v1453 = vunpack.c.l.b16 %v1323
      %v1454 = vunpack.c.l.b16 %v1324
      %v1455 = vunpack.c.l.b16 %v1325
      %v1456 = vunpack.c.l.b16 %v1326
      %v1457 = vunpack.c.l.b16 %v1327
      %v1458 = vpack.c.b16 %v1443, %v1442
      %v1459 = vpack.c.b16 %v1445, %v1444
      %v1460 = vpack.c.b16 %v1447, %v1446
      %v1461 = vpack.c.b16 %v1449, %v1448
      %v1462 = vpack.c.b16 %v1451, %v1450
      %v1463 = vpack.c.b16 %v1453, %v1452
      %v1464 = vpack.c.b16 %v1455, %v1454
      %v1465 = vpack.c.b16 %v1457, %v1456
      %vm1466 = vcmask 64512
      %v1468 = vsel %vm1466, %v1458, 0
      %v1471 = vsel %vm1466, %v1459, 0
      %v1474 = vsel %vm1466, %v1460, 0
      %v1477 = vsel %vm1466, %v1461, 0
      %v1480 = vsel %vm1466, %v1462, 0
      %v1483 = vsel %vm1466, %v1463, 0
      %v1486 = vsel %vm1466, %v1464, 0
      %v1489 = vsel %vm1466, %v1465, 0
      %vm1491 = vcmask 1043456
      %v1493 = vsel %vm1491, %v1328, 0
      %v1496 = vsel %vm1491, %v1329, 0
      %1498 = vmatpush.bf16.msra.mxu0 0
      %1499 = vmatpush.bf16.msra.mxu0 0
      %1500 = vmatpush.bf16.msra.mxu0 0
      %1501 = vmatpush.bf16.msra.mxu0 0
      %1502 = vmatpush.bf16.msra.mxu0 0
      %1503 = vmatpush.bf16.msra.mxu0 0
      %1504 = vmatpush.bf16.msra.mxu0 0
      %1505 = vmatpush.bf16.msra.mxu0 %v1493
      %1506 = vmatmul.bf16.gmra.mxu0 %v1468
      %v1507 = vpop.f32.mrf.mxu0
      %v1508 = vadd.f32 %v1349, %v1507
      %v1509 = vpop.f32.mrf.mxu0
      %v1510 = vadd.f32 %v1354, %v1509
      %1511 = vmatmul.bf16.gmra.mxu0 %v1471
      %v1512 = vpop.f32.mrf.mxu0
      %v1513 = vadd.f32 %v1359, %v1512
      %v1514 = vpop.f32.mrf.mxu0
      %v1515 = vadd.f32 %v1364, %v1514
      %1516 = vmatmul.bf16.gmra.mxu0 %v1474
      %v1517 = vpop.f32.mrf.mxu0
      %v1518 = vadd.f32 %v1369, %v1517
      %v1519 = vpop.f32.mrf.mxu0
      %v1520 = vadd.f32 %v1374, %v1519
      %1521 = vmatmul.bf16.gmra.mxu0 %v1477
      %v1522 = vpop.f32.mrf.mxu0
      %v1523 = vadd.f32 %v1379, %v1522
      %v1524 = vpop.f32.mrf.mxu0
      %v1525 = vadd.f32 %v1384, %v1524
      %1526 = vmatmul.bf16.gmra.mxu0 %v1480
      %v1527 = vpop.f32.mrf.mxu0
      %v1528 = vadd.f32 %v1389, %v1527
      %v1529 = vpop.f32.mrf.mxu0
      %v1530 = vadd.f32 %v1394, %v1529
      %1531 = vmatmul.bf16.gmra.mxu0 %v1483
      %v1532 = vpop.f32.mrf.mxu0
      %v1533 = vadd.f32 %v1399, %v1532
      %v1534 = vpop.f32.mrf.mxu0
      %v1535 = vadd.f32 %v1404, %v1534
      %1536 = vmatmul.bf16.gmra.mxu0 %v1486
      %v1537 = vpop.f32.mrf.mxu0
      %v1538 = vadd.f32 %v1409, %v1537
      %v1539 = vpop.f32.mrf.mxu0
      %v1540 = vadd.f32 %v1414, %v1539
      %1541 = vmatmul.bf16.gmra.mxu0 %v1489
      %v1542 = vpop.f32.mrf.mxu0
      %v1543 = vadd.f32 %v1419, %v1542
      %v1544 = vpop.f32.mrf.mxu0
      %v1545 = vadd.f32 %v1424, %v1544
      %1546 = vdwg.mxu0
      %1547 = vmatpush.bf16.msra.mxu0 0
      %1548 = vmatpush.bf16.msra.mxu0 0
      %1549 = vmatpush.bf16.msra.mxu0 0
      %1550 = vmatpush.bf16.msra.mxu0 0
      %1551 = vmatpush.bf16.msra.mxu0 0
      %1552 = vmatpush.bf16.msra.mxu0 0
      %1553 = vmatpush.bf16.msra.mxu0 0
      %1554 = vmatpush.bf16.msra.mxu0 %v1496
      %1555 = vmatmul.bf16.gmra.mxu0 %v1468
      %v1556 = vpop.f32.mrf.mxu0
      %v1557 = vadd.f32 %v1349, %v1556
      %v1558 = vpop.f32.mrf.mxu0
      %v1559 = vadd.f32 %v1354, %v1558
      %1560 = vmatmul.bf16.gmra.mxu0 %v1471
      %v1561 = vpop.f32.mrf.mxu0
      %v1562 = vadd.f32 %v1359, %v1561
      %v1563 = vpop.f32.mrf.mxu0
      %v1564 = vadd.f32 %v1364, %v1563
      %1565 = vmatmul.bf16.gmra.mxu0 %v1474
      %v1566 = vpop.f32.mrf.mxu0
      %v1567 = vadd.f32 %v1369, %v1566
      %v1568 = vpop.f32.mrf.mxu0
      %v1569 = vadd.f32 %v1374, %v1568
      %1570 = vmatmul.bf16.gmra.mxu0 %v1477
      %v1571 = vpop.f32.mrf.mxu0
      %v1572 = vadd.f32 %v1379, %v1571
      %v1573 = vpop.f32.mrf.mxu0
      %v1574 = vadd.f32 %v1384, %v1573
      %1575 = vmatmul.bf16.gmra.mxu0 %v1480
      %v1576 = vpop.f32.mrf.mxu0
      %v1577 = vadd.f32 %v1389, %v1576
      %v1578 = vpop.f32.mrf.mxu0
      %v1579 = vadd.f32 %v1394, %v1578
      %1580 = vmatmul.bf16.gmra.mxu0 %v1483
      %v1581 = vpop.f32.mrf.mxu0
      %v1582 = vadd.f32 %v1399, %v1581
      %v1583 = vpop.f32.mrf.mxu0
      %v1584 = vadd.f32 %v1404, %v1583
      %1585 = vmatmul.bf16.gmra.mxu0 %v1486
      %v1586 = vpop.f32.mrf.mxu0
      %v1587 = vadd.f32 %v1409, %v1586
      %v1588 = vpop.f32.mrf.mxu0
      %v1589 = vadd.f32 %v1414, %v1588
      %1590 = vmatmul.bf16.gmra.mxu0 %v1489
      %v1591 = vpop.f32.mrf.mxu0
      %v1592 = vadd.f32 %v1419, %v1591
      %v1593 = vpop.f32.mrf.mxu0
      %v1594 = vadd.f32 %v1424, %v1593
      %1595 = vdwg.mxu0
      %v1596 = vmax.f32 %v1508, 0.0
      %v1597 = vmax.f32 %v1557, 0.0
      %v1598 = vmax.f32 %v1510, 0.0
      %v1599 = vmax.f32 %v1559, 0.0
      %v1600 = vmax.f32 %v1513, 0.0
      %v1601 = vmax.f32 %v1562, 0.0
      %v1602 = vmax.f32 %v1515, 0.0
      %v1603 = vmax.f32 %v1564, 0.0
      %v1604 = vmax.f32 %v1518, 0.0
      %v1605 = vmax.f32 %v1567, 0.0
      %v1606 = vmax.f32 %v1520, 0.0
      %v1607 = vmax.f32 %v1569, 0.0
      %v1608 = vmax.f32 %v1523, 0.0
      %v1609 = vmax.f32 %v1572, 0.0
      %v1610 = vmax.f32 %v1525, 0.0
      %v1611 = vmax.f32 %v1574, 0.0
      %v1612 = vmax.f32 %v1528, 0.0
      %v1613 = vmax.f32 %v1577, 0.0
      %v1614 = vmax.f32 %v1530, 0.0
      %v1615 = vmax.f32 %v1579, 0.0
      %v1616 = vmax.f32 %v1533, 0.0
      %v1617 = vmax.f32 %v1582, 0.0
      %v1618 = vmax.f32 %v1535, 0.0
      %v1619 = vmax.f32 %v1584, 0.0
      %v1620 = vmax.f32 %v1538, 0.0
      %v1621 = vmax.f32 %v1587, 0.0
      %v1622 = vmax.f32 %v1540, 0.0
      %v1623 = vmax.f32 %v1589, 0.0
      %v1624 = vmax.f32 %v1543, 0.0
      %v1625 = vmax.f32 %v1592, 0.0
      %v1626 = vmax.f32 %v1545, 0.0
      %v1627 = vmax.f32 %v1594, 0.0
      %v1628 = vld [vmem:[%s11] sm:$0x1]
      %v1629 = vld [vmem:[%s13] sm:$0xf]
      %v1630 = vld [vmem:[%s13 + $0x4] sm:$0xf]
      %v1631 = vld [vmem:[%s13 + $0x8] sm:$0xf]
      %v1632 = vld [vmem:[%s13 + $0xc] sm:$0xf]
      %v1633 = vld [vmem:[%s13 + $0x10] sm:$0xf]
      %v1634 = vld [vmem:[%s13 + $0x14] sm:$0xf]
      %v1635 = vld [vmem:[%s13 + $0x18] sm:$0xf]
      %v1636 = vld [vmem:[%s13 + $0x1c] sm:$0xf]
      %v1637 = vld [vmem:[%s13 + $0x20] sm:$0xf]
      %v1638 = vld [vmem:[%s13 + $0x24] sm:$0xf]
      %v1639 = vld [vmem:[%s13 + $0x28] sm:$0xf]
      %v1640 = vld [vmem:[%s13 + $0x2c] sm:$0xf]
      %v1641 = vld [vmem:[%s13 + $0x30] sm:$0xf]
      %v1642 = vld [vmem:[%s13 + $0x34] sm:$0xf]
      %v1643 = vld [vmem:[%s13 + $0x38] sm:$0xf]
      %v1644 = vld [vmem:[%s13 + $0x3c] sm:$0xf]
      %v1645 = vpack.c.bf16 %v1598, %v1596
      %v1646 = vpack.c.bf16 %v1599, %v1597
      %v1647 = vpack.c.bf16 %v1602, %v1600
      %v1648 = vpack.c.bf16 %v1603, %v1601
      %v1649 = vpack.c.bf16 %v1606, %v1604
      %v1650 = vpack.c.bf16 %v1607, %v1605
      %v1651 = vpack.c.bf16 %v1610, %v1608
      %v1652 = vpack.c.bf16 %v1611, %v1609
      %v1653 = vpack.c.bf16 %v1614, %v1612
      %v1654 = vpack.c.bf16 %v1615, %v1613
      %v1655 = vpack.c.bf16 %v1618, %v1616
      %v1656 = vpack.c.bf16 %v1619, %v1617
      %v1657 = vpack.c.bf16 %v1622, %v1620
      %v1658 = vpack.c.bf16 %v1623, %v1621
      %v1659 = vpack.c.bf16 %v1626, %v1624
      %v1660 = vpack.c.bf16 %v1627, %v1625
      %v1661 = vld [vmem:[%s15] sm:$0xff]
      %v1662 = vld [vmem:[%s15 + $0x8] sm:$0xff]
      %v1663 = vld [vmem:[%s15 + $0x10] sm:$0xff]
      %v1664 = vld [vmem:[%s15 + $0x18] sm:$0xff]
      %v1665 = vld [vmem:[%s15 + $0x20] sm:$0xff]
      %v1666 = vld [vmem:[%s15 + $0x28] sm:$0xff]
      %v1667 = vld [vmem:[%s15 + $0x30] sm:$0xff]
      %v1668 = vld [vmem:[%s15 + $0x38] sm:$0xff]
      %v1669 = vld [vmem:[%s15 + $0x40] sm:$0xff]
      %v1670 = vld [vmem:[%s15 + $0x48] sm:$0xff]
      %v1671 = vld [vmem:[%s15 + $0x50] sm:$0xff]
      %v1672 = vld [vmem:[%s15 + $0x58] sm:$0xff]
      %v1673 = vld [vmem:[%s15 + $0x60] sm:$0xff]
      %v1674 = vld [vmem:[%s15 + $0x68] sm:$0xff]
      %v1675 = vld [vmem:[%s15 + $0x70] sm:$0xff]
      %v1676 = vld [vmem:[%s15 + $0x78] sm:$0xff]
      %1678 = vset.pattern.permute.xlu0 0
      %1679 = vperm.xlu0 %1678, %v1661
      %v1680 = vpop.permute.xlu0 %1679
      %1683 = vset.pattern.permute.xlu0 0
      %1684 = vperm.xlu0 %1683, %v1662
      %v1685 = vpop.permute.xlu0 %1684
      %1688 = vset.pattern.permute.xlu0 0
      %1689 = vperm.xlu0 %1688, %v1663
      %v1690 = vpop.permute.xlu0 %1689
      %1693 = vset.pattern.permute.xlu0 0
      %1694 = vperm.xlu0 %1693, %v1664
      %v1695 = vpop.permute.xlu0 %1694
      %1698 = vset.pattern.permute.xlu0 0
      %1699 = vperm.xlu0 %1698, %v1665
      %v1700 = vpop.permute.xlu0 %1699
      %1703 = vset.pattern.permute.xlu0 0
      %1704 = vperm.xlu0 %1703, %v1666
      %v1705 = vpop.permute.xlu0 %1704
      %1708 = vset.pattern.permute.xlu0 0
      %1709 = vperm.xlu0 %1708, %v1667
      %v1710 = vpop.permute.xlu0 %1709
      %1713 = vset.pattern.permute.xlu0 0
      %1714 = vperm.xlu0 %1713, %v1668
      %v1715 = vpop.permute.xlu0 %1714
      %1718 = vset.pattern.permute.xlu0 0
      %1719 = vperm.xlu0 %1718, %v1669
      %v1720 = vpop.permute.xlu0 %1719
      %1723 = vset.pattern.permute.xlu0 0
      %1724 = vperm.xlu0 %1723, %v1670
      %v1725 = vpop.permute.xlu0 %1724
      %1728 = vset.pattern.permute.xlu0 0
      %1729 = vperm.xlu0 %1728, %v1671
      %v1730 = vpop.permute.xlu0 %1729
      %1733 = vset.pattern.permute.xlu0 0
      %1734 = vperm.xlu0 %1733, %v1672
      %v1735 = vpop.permute.xlu0 %1734
      %1738 = vset.pattern.permute.xlu0 0
      %1739 = vperm.xlu0 %1738, %v1673
      %v1740 = vpop.permute.xlu0 %1739
      %1743 = vset.pattern.permute.xlu0 0
      %1744 = vperm.xlu0 %1743, %v1674
      %v1745 = vpop.permute.xlu0 %1744
      %1748 = vset.pattern.permute.xlu0 0
      %1749 = vperm.xlu0 %1748, %v1675
      %v1750 = vpop.permute.xlu0 %1749
      %1753 = vset.pattern.permute.xlu0 0
      %1754 = vperm.xlu0 %1753, %v1676
      %v1755 = vpop.permute.xlu0 %1754
      %v1773 = vunpack.c.l.b16 %v1629
      %v1774 = vunpack.c.l.b16 %v1630
      %v1775 = vunpack.c.l.b16 %v1631
      %v1776 = vunpack.c.l.b16 %v1632
      %v1777 = vunpack.c.l.b16 %v1633
      %v1778 = vunpack.c.l.b16 %v1634
      %v1779 = vunpack.c.l.b16 %v1635
      %v1780 = vunpack.c.l.b16 %v1636
      %v1781 = vunpack.c.l.b16 %v1637
      %v1782 = vunpack.c.l.b16 %v1638
      %v1783 = vunpack.c.l.b16 %v1639
      %v1784 = vunpack.c.l.b16 %v1640
      %v1785 = vunpack.c.l.b16 %v1641
      %v1786 = vunpack.c.l.b16 %v1642
      %v1787 = vunpack.c.l.b16 %v1643
      %v1788 = vunpack.c.l.b16 %v1644
      %v1789 = vpack.c.b16 %v1774, %v1773
      %v1790 = vpack.c.b16 %v1776, %v1775
      %v1791 = vpack.c.b16 %v1778, %v1777
      %v1792 = vpack.c.b16 %v1780, %v1779
      %v1793 = vpack.c.b16 %v1782, %v1781
      %v1794 = vpack.c.b16 %v1784, %v1783
      %v1795 = vpack.c.b16 %v1786, %v1785
      %v1796 = vpack.c.b16 %v1788, %v1787
      %1805 = vmatpush.bf16.msra.mxu0 %v1659
      %1806 = vmatpush.bf16.msra.mxu0 %v1657
      %1807 = vmatpush.bf16.msra.mxu0 %v1655
      %1808 = vmatpush.bf16.msra.mxu0 %v1653
      %1809 = vmatpush.bf16.msra.mxu0 %v1651
      %1810 = vmatpush.bf16.msra.mxu0 %v1649
      %1811 = vmatpush.bf16.msra.mxu0 %v1647
      %1812 = vmatpush.bf16.msra.mxu0 %v1645
      %1813 = vmatmul.bf16.gmra.mxu0 %v1789
      %v1814 = vpop.f32.mrf.mxu0
      %v1815 = vadd.f32 %v1680, %v1814
      %v1816 = vpop.f32.mrf.mxu0
      %v1817 = vadd.f32 %v1685, %v1816
      %1818 = vmatmul.bf16.gmra.mxu0 %v1790
      %v1819 = vpop.f32.mrf.mxu0
      %v1820 = vadd.f32 %v1690, %v1819
      %v1821 = vpop.f32.mrf.mxu0
      %v1822 = vadd.f32 %v1695, %v1821
      %1823 = vmatmul.bf16.gmra.mxu0 %v1791
      %v1824 = vpop.f32.mrf.mxu0
      %v1825 = vadd.f32 %v1700, %v1824
      %v1826 = vpop.f32.mrf.mxu0
      %v1827 = vadd.f32 %v1705, %v1826
      %1828 = vmatmul.bf16.gmra.mxu0 %v1792
      %v1829 = vpop.f32.mrf.mxu0
      %v1830 = vadd.f32 %v1710, %v1829
      %v1831 = vpop.f32.mrf.mxu0
      %v1832 = vadd.f32 %v1715, %v1831
      %1833 = vmatmul.bf16.gmra.mxu0 %v1793
      %v1834 = vpop.f32.mrf.mxu0
      %v1835 = vadd.f32 %v1720, %v1834
      %v1836 = vpop.f32.mrf.mxu0
      %v1837 = vadd.f32 %v1725, %v1836
      %1838 = vmatmul.bf16.gmra.mxu0 %v1794
      %v1839 = vpop.f32.mrf.mxu0
      %v1840 = vadd.f32 %v1730, %v1839
      %v1841 = vpop.f32.mrf.mxu0
      %v1842 = vadd.f32 %v1735, %v1841
      %1843 = vmatmul.bf16.gmra.mxu0 %v1795
      %v1844 = vpop.f32.mrf.mxu0
      %v1845 = vadd.f32 %v1740, %v1844
      %v1846 = vpop.f32.mrf.mxu0
      %v1847 = vadd.f32 %v1745, %v1846
      %1848 = vmatmul.bf16.gmra.mxu0 %v1796
      %v1849 = vpop.f32.mrf.mxu0
      %v1850 = vadd.f32 %v1750, %v1849
      %v1851 = vpop.f32.mrf.mxu0
      %v1852 = vadd.f32 %v1755, %v1851
      %1853 = vdwg.mxu0
      %1854 = vmatpush.bf16.msra.mxu0 %v1660
      %1855 = vmatpush.bf16.msra.mxu0 %v1658
      %1856 = vmatpush.bf16.msra.mxu0 %v1656
      %1857 = vmatpush.bf16.msra.mxu0 %v1654
      %1858 = vmatpush.bf16.msra.mxu0 %v1652
      %1859 = vmatpush.bf16.msra.mxu0 %v1650
      %1860 = vmatpush.bf16.msra.mxu0 %v1648
      %1861 = vmatpush.bf16.msra.mxu0 %v1646
      %1862 = vmatmul.bf16.gmra.mxu0 %v1789
      %v1863 = vpop.f32.mrf.mxu0
      %v1864 = vadd.f32 %v1680, %v1863
      %v1865 = vpop.f32.mrf.mxu0
      %v1866 = vadd.f32 %v1685, %v1865
      %1867 = vmatmul.bf16.gmra.mxu0 %v1790
      %v1868 = vpop.f32.mrf.mxu0
      %v1869 = vadd.f32 %v1690, %v1868
      %v1870 = vpop.f32.mrf.mxu0
      %v1871 = vadd.f32 %v1695, %v1870
      %1872 = vmatmul.bf16.gmra.mxu0 %v1791
      %v1873 = vpop.f32.mrf.mxu0
      %v1874 = vadd.f32 %v1700, %v1873
      %v1875 = vpop.f32.mrf.mxu0
      %v1876 = vadd.f32 %v1705, %v1875
      %1877 = vmatmul.bf16.gmra.mxu0 %v1792
      %v1878 = vpop.f32.mrf.mxu0
      %v1879 = vadd.f32 %v1710, %v1878
      %v1880 = vpop.f32.mrf.mxu0
      %v1881 = vadd.f32 %v1715, %v1880
      %1882 = vmatmul.bf16.gmra.mxu0 %v1793
      %v1883 = vpop.f32.mrf.mxu0
      %v1884 = vadd.f32 %v1720, %v1883
      %v1885 = vpop.f32.mrf.mxu0
      %v1886 = vadd.f32 %v1725, %v1885
      %1887 = vmatmul.bf16.gmra.mxu0 %v1794
      %v1888 = vpop.f32.mrf.mxu0
      %v1889 = vadd.f32 %v1730, %v1888
      %v1890 = vpop.f32.mrf.mxu0
      %v1891 = vadd.f32 %v1735, %v1890
      %1892 = vmatmul.bf16.gmra.mxu0 %v1795
      %v1893 = vpop.f32.mrf.mxu0
      %v1894 = vadd.f32 %v1740, %v1893
      %v1895 = vpop.f32.mrf.mxu0
      %v1896 = vadd.f32 %v1745, %v1895
      %1897 = vmatmul.bf16.gmra.mxu0 %v1796
      %v1898 = vpop.f32.mrf.mxu0
      %v1899 = vadd.f32 %v1750, %v1898
      %v1900 = vpop.f32.mrf.mxu0
      %v1901 = vadd.f32 %v1755, %v1900
      %1902 = vdwg.mxu0
      %v1903 = vmax.f32 %v1815, 0.0
      %v1904 = vmax.f32 %v1864, 0.0
      %v1905 = vmax.f32 %v1817, 0.0
      %v1906 = vmax.f32 %v1866, 0.0
      %v1907 = vmax.f32 %v1820, 0.0
      %v1908 = vmax.f32 %v1869, 0.0
      %v1909 = vmax.f32 %v1822, 0.0
      %v1910 = vmax.f32 %v1871, 0.0
      %v1911 = vmax.f32 %v1825, 0.0
      %v1912 = vmax.f32 %v1874, 0.0
      %v1913 = vmax.f32 %v1827, 0.0
      %v1914 = vmax.f32 %v1876, 0.0
      %v1915 = vmax.f32 %v1830, 0.0
      %v1916 = vmax.f32 %v1879, 0.0
      %v1917 = vmax.f32 %v1832, 0.0
      %v1918 = vmax.f32 %v1881, 0.0
      %v1919 = vmax.f32 %v1835, 0.0
      %v1920 = vmax.f32 %v1884, 0.0
      %v1921 = vmax.f32 %v1837, 0.0
      %v1922 = vmax.f32 %v1886, 0.0
      %v1923 = vmax.f32 %v1840, 0.0
      %v1924 = vmax.f32 %v1889, 0.0
      %v1925 = vmax.f32 %v1842, 0.0
      %v1926 = vmax.f32 %v1891, 0.0
      %v1927 = vmax.f32 %v1845, 0.0
      %v1928 = vmax.f32 %v1894, 0.0
      %v1929 = vmax.f32 %v1847, 0.0
      %v1930 = vmax.f32 %v1896, 0.0
      %v1931 = vmax.f32 %v1850, 0.0
      %v1932 = vmax.f32 %v1899, 0.0
      %v1933 = vmax.f32 %v1852, 0.0
      %v1934 = vmax.f32 %v1901, 0.0
      %v1935 = vld [vmem:[%s17] sm:$0x1]
      %1936 = vmatpush.msra.mxu0 %v1933
      %1937 = vmatpush.msra.mxu0 %v1931
      %1938 = vmatpush.msra.mxu0 %v1929
      %1939 = vmatpush.msra.mxu0 %v1927
      %1940 = vmatpush.msra.mxu0 %v1925
      %1941 = vmatpush.msra.mxu0 %v1923
      %1942 = vmatpush.msra.mxu0 %v1921
      %1943 = vmatpush.msra.mxu0 %v1919
      %1944 = vmatpush.msra.mxu0 %v1917
      %1945 = vmatpush.msra.mxu0 %v1915
      %1946 = vmatpush.msra.mxu0 %v1913
      %1947 = vmatpush.msra.mxu0 %v1911
      %1948 = vmatpush.msra.mxu0 %v1909
      %1949 = vmatpush.msra.mxu0 %v1907
      %1950 = vmatpush.msra.mxu0 %v1905
      %1951 = vmatpush.msra.mxu0 %v1903
      %1952 = vmatmul.f32.gmra.mxu0 %v1935
      %v1953 = vpop.f32.mrf.mxu0
      %v1954 = vadd.f32 0.0, %v1953
      %1955 = vdwg.mxu0
      %1956 = vmatpush.msra.mxu0 %v1934
      %1957 = vmatpush.msra.mxu0 %v1932
      %1958 = vmatpush.msra.mxu0 %v1930
      %1959 = vmatpush.msra.mxu0 %v1928
      %1960 = vmatpush.msra.mxu0 %v1926
      %1961 = vmatpush.msra.mxu0 %v1924
      %1962 = vmatpush.msra.mxu0 %v1922
      %1963 = vmatpush.msra.mxu0 %v1920
      %1964 = vmatpush.msra.mxu0 %v1918
      %1965 = vmatpush.msra.mxu0 %v1916
      %1966 = vmatpush.msra.mxu0 %v1914
      %1967 = vmatpush.msra.mxu0 %v1912
      %1968 = vmatpush.msra.mxu0 %v1910
      %1969 = vmatpush.msra.mxu0 %v1908
      %1970 = vmatpush.msra.mxu0 %v1906
      %1971 = vmatpush.msra.mxu0 %v1904
      %1972 = vmatmul.f32.gmra.mxu0 %v1935
      %v1973 = vpop.f32.mrf.mxu0
      %v1974 = vadd.f32 0.0, %v1973
      %1975 = vdwg.mxu0
      %1976 = vmatpush.msra.mxu0 %v1626
      %1977 = vmatpush.msra.mxu0 %v1624
      %1978 = vmatpush.msra.mxu0 %v1622
      %1979 = vmatpush.msra.mxu0 %v1620
      %1980 = vmatpush.msra.mxu0 %v1618
      %1981 = vmatpush.msra.mxu0 %v1616
      %1982 = vmatpush.msra.mxu0 %v1614
      %1983 = vmatpush.msra.mxu0 %v1612
      %1984 = vmatpush.msra.mxu0 %v1610
      %1985 = vmatpush.msra.mxu0 %v1608
      %1986 = vmatpush.msra.mxu0 %v1606
      %1987 = vmatpush.msra.mxu0 %v1604
      %1988 = vmatpush.msra.mxu0 %v1602
      %1989 = vmatpush.msra.mxu0 %v1600
      %1990 = vmatpush.msra.mxu0 %v1598
      %1991 = vmatpush.msra.mxu0 %v1596
      %1992 = vmatmul.f32.gmra.mxu0 %v1628
      %v1993 = vpop.f32.mrf.mxu0
      %v1994 = vadd.f32 %v1954, %v1993
      %1995 = vdwg.mxu0
      %1996 = vmatpush.msra.mxu0 %v1627
      %1997 = vmatpush.msra.mxu0 %v1625
      %1998 = vmatpush.msra.mxu0 %v1623
      %1999 = vmatpush.msra.mxu0 %v1621
      %2000 = vmatpush.msra.mxu0 %v1619
      %2001 = vmatpush.msra.mxu0 %v1617
      %2002 = vmatpush.msra.mxu0 %v1615
      %2003 = vmatpush.msra.mxu0 %v1613
      %2004 = vmatpush.msra.mxu0 %v1611
      %2005 = vmatpush.msra.mxu0 %v1609
      %2006 = vmatpush.msra.mxu0 %v1607
      %2007 = vmatpush.msra.mxu0 %v1605
      %2008 = vmatpush.msra.mxu0 %v1603
      %2009 = vmatpush.msra.mxu0 %v1601
      %2010 = vmatpush.msra.mxu0 %v1599
      %2011 = vmatpush.msra.mxu0 %v1597
      %2012 = vmatmul.f32.gmra.mxu0 %v1628
      %v2013 = vpop.f32.mrf.mxu0
      %v2014 = vadd.f32 %v1974, %v2013
      %2015 = vdwg.mxu0
      %v2018 = vrot.slane %v2014, 7
      %vm2019 = vcmask 1040384
      %v2020 = vsel %vm2019, %v1994, %v2018
      %v2022 = vlaneseq
      %vm2023 = vcmp.ge.s32.totalorder %v2022, 0
      %vm2024 = vcmp.lt.s32.totalorder %v2022, 256
      %vm2025 = vmand %vm2023, %vm2024
      %2026 = vst.msk [vmem:[%s1247] sm:$0x3] %vm2025, %v2020
      %v2027 = vld [vmem:[%s1235] sm:$0x7]
      %v2028 = vld [vmem:[%s21] sm:$0xff]
      %v2029 = vld [vmem:[%s21 + $0x8] sm:$0xff]
      %v2030 = vld [vmem:[%s23] sm:$0xff]
      %v2031 = vld [vmem:[%s23 + $0x8] sm:$0xff]
      %2033 = vset.pattern.permute.xlu0 0
      %2034 = vperm.xlu0 %2033, %v2028
      %v2035 = vpop.permute.xlu0 %2034
      %2038 = vset.pattern.permute.xlu0 0
      %2039 = vperm.xlu0 %2038, %v2029
      %v2040 = vpop.permute.xlu0 %2039
      %v2042 = vperm.slane %v2027, 0
      %v2043 = vmul.f32 %v2035, %v2042
      %v2044 = vmul.f32 %v2040, %v2042
      %2045 = vset.pattern.permute.xlu0 1
      %2046 = vperm.xlu0 %2045, %v2028
      %v2047 = vpop.permute.xlu0 %2046
      %2049 = vset.pattern.permute.xlu0 1
      %2050 = vperm.xlu0 %2049, %v2029
      %v2051 = vpop.permute.xlu0 %2050
      %v2053 = vperm.slane %v2027, 1
      %v2054 = vmul.f32 %v2047, %v2053
      %v2055 = vmul.f32 %v2051, %v2053
      %v2056 = vadd.f32 %v2043, %v2054
      %v2057 = vadd.f32 %v2044, %v2055
      %2058 = vset.pattern.permute.xlu0 2
      %2059 = vperm.xlu0 %2058, %v2028
      %v2060 = vpop.permute.xlu0 %2059
      %2062 = vset.pattern.permute.xlu0 2
      %2063 = vperm.xlu0 %2062, %v2029
      %v2064 = vpop.permute.xlu0 %2063
      %v2066 = vperm.slane %v2027, 2
      %v2067 = vmul.f32 %v2060, %v2066
      %v2068 = vmul.f32 %v2064, %v2066
      %v2069 = vadd.f32 %v2056, %v2067
      %v2070 = vadd.f32 %v2057, %v2068
      %2072 = vset.pattern.permute.xlu0 0
      %2073 = vperm.xlu0 %2072, %v2030
      %v2074 = vpop.permute.xlu0 %2073
      %2077 = vset.pattern.permute.xlu0 0
      %2078 = vperm.xlu0 %2077, %v2031
      %v2079 = vpop.permute.xlu0 %2078
      %v2081 = vadd.f32 %v2069, %v2074
      %v2082 = vadd.f32 %v2070, %v2079
      %v2083 = vmax.f32 %v2081, 0.0
      %v2084 = vmax.f32 %v2082, 0.0
      %v2085 = vld [vmem:[%s25] sm:$0xf]
      %v2086 = vld [vmem:[%s25 + $0x4] sm:$0xf]
      %v2087 = vld [vmem:[%s25 + $0x8] sm:$0xf]
      %v2088 = vld [vmem:[%s25 + $0xc] sm:$0xf]
      %v2089 = vld [vmem:[%s25 + $0x10] sm:$0xf]
      %v2090 = vld [vmem:[%s25 + $0x14] sm:$0xf]
      %v2091 = vld [vmem:[%s25 + $0x18] sm:$0xf]
      %v2092 = vld [vmem:[%s25 + $0x1c] sm:$0xf]
      %v2093 = vld [vmem:[%s25 + $0x20] sm:$0xf]
      %v2094 = vld [vmem:[%s25 + $0x24] sm:$0xf]
      %v2095 = vld [vmem:[%s25 + $0x28] sm:$0xf]
      %v2096 = vld [vmem:[%s25 + $0x2c] sm:$0xf]
      %v2097 = vld [vmem:[%s25 + $0x30] sm:$0xf]
      %v2098 = vld [vmem:[%s25 + $0x34] sm:$0xf]
      %v2099 = vld [vmem:[%s25 + $0x38] sm:$0xf]
      %v2100 = vld [vmem:[%s25 + $0x3c] sm:$0xf]
      %v2101 = vpack.c.bf16 %v2084, %v2083
      %v2102 = vld [vmem:[%s27] sm:$0xff]
      %v2103 = vld [vmem:[%s27 + $0x8] sm:$0xff]
      %v2104 = vld [vmem:[%s27 + $0x10] sm:$0xff]
      %v2105 = vld [vmem:[%s27 + $0x18] sm:$0xff]
      %v2106 = vld [vmem:[%s27 + $0x20] sm:$0xff]
      %v2107 = vld [vmem:[%s27 + $0x28] sm:$0xff]
      %v2108 = vld [vmem:[%s27 + $0x30] sm:$0xff]
      %v2109 = vld [vmem:[%s27 + $0x38] sm:$0xff]
      %v2110 = vld [vmem:[%s27 + $0x40] sm:$0xff]
      %v2111 = vld [vmem:[%s27 + $0x48] sm:$0xff]
      %v2112 = vld [vmem:[%s27 + $0x50] sm:$0xff]
      %v2113 = vld [vmem:[%s27 + $0x58] sm:$0xff]
      %v2114 = vld [vmem:[%s27 + $0x60] sm:$0xff]
      %v2115 = vld [vmem:[%s27 + $0x68] sm:$0xff]
      %v2116 = vld [vmem:[%s27 + $0x70] sm:$0xff]
      %v2117 = vld [vmem:[%s27 + $0x78] sm:$0xff]
      %2119 = vset.pattern.permute.xlu0 0
      %2120 = vperm.xlu0 %2119, %v2102
      %v2121 = vpop.permute.xlu0 %2120
      %2124 = vset.pattern.permute.xlu0 0
      %2125 = vperm.xlu0 %2124, %v2103
      %v2126 = vpop.permute.xlu0 %2125
      %2129 = vset.pattern.permute.xlu0 0
      %2130 = vperm.xlu0 %2129, %v2104
      %v2131 = vpop.permute.xlu0 %2130
      %2134 = vset.pattern.permute.xlu0 0
      %2135 = vperm.xlu0 %2134, %v2105
      %v2136 = vpop.permute.xlu0 %2135
      %2139 = vset.pattern.permute.xlu0 0
      %2140 = vperm.xlu0 %2139, %v2106
      %v2141 = vpop.permute.xlu0 %2140
      %2144 = vset.pattern.permute.xlu0 0
      %2145 = vperm.xlu0 %2144, %v2107
      %v2146 = vpop.permute.xlu0 %2145
      %2149 = vset.pattern.permute.xlu0 0
      %2150 = vperm.xlu0 %2149, %v2108
      %v2151 = vpop.permute.xlu0 %2150
      %2154 = vset.pattern.permute.xlu0 0
      %2155 = vperm.xlu0 %2154, %v2109
      %v2156 = vpop.permute.xlu0 %2155
      %2159 = vset.pattern.permute.xlu0 0
      %2160 = vperm.xlu0 %2159, %v2110
      %v2161 = vpop.permute.xlu0 %2160
      %2164 = vset.pattern.permute.xlu0 0
      %2165 = vperm.xlu0 %2164, %v2111
      %v2166 = vpop.permute.xlu0 %2165
      %2169 = vset.pattern.permute.xlu0 0
      %2170 = vperm.xlu0 %2169, %v2112
      %v2171 = vpop.permute.xlu0 %2170
      %2174 = vset.pattern.permute.xlu0 0
      %2175 = vperm.xlu0 %2174, %v2113
      %v2176 = vpop.permute.xlu0 %2175
      %2179 = vset.pattern.permute.xlu0 0
      %2180 = vperm.xlu0 %2179, %v2114
      %v2181 = vpop.permute.xlu0 %2180
      %2184 = vset.pattern.permute.xlu0 0
      %2185 = vperm.xlu0 %2184, %v2115
      %v2186 = vpop.permute.xlu0 %2185
      %2189 = vset.pattern.permute.xlu0 0
      %2190 = vperm.xlu0 %2189, %v2116
      %v2191 = vpop.permute.xlu0 %2190
      %2194 = vset.pattern.permute.xlu0 0
      %2195 = vperm.xlu0 %2194, %v2117
      %v2196 = vpop.permute.xlu0 %2195
      %v2214 = vunpack.c.l.b16 %v2085
      %v2215 = vunpack.c.l.b16 %v2086
      %v2216 = vunpack.c.l.b16 %v2087
      %v2217 = vunpack.c.l.b16 %v2088
      %v2218 = vunpack.c.l.b16 %v2089
      %v2219 = vunpack.c.l.b16 %v2090
      %v2220 = vunpack.c.l.b16 %v2091
      %v2221 = vunpack.c.l.b16 %v2092
      %v2222 = vunpack.c.l.b16 %v2093
      %v2223 = vunpack.c.l.b16 %v2094
      %v2224 = vunpack.c.l.b16 %v2095
      %v2225 = vunpack.c.l.b16 %v2096
      %v2226 = vunpack.c.l.b16 %v2097
      %v2227 = vunpack.c.l.b16 %v2098
      %v2228 = vunpack.c.l.b16 %v2099
      %v2229 = vunpack.c.l.b16 %v2100
      %v2230 = vpack.c.b16 %v2215, %v2214
      %v2231 = vpack.c.b16 %v2217, %v2216
      %v2232 = vpack.c.b16 %v2219, %v2218
      %v2233 = vpack.c.b16 %v2221, %v2220
      %v2234 = vpack.c.b16 %v2223, %v2222
      %v2235 = vpack.c.b16 %v2225, %v2224
      %v2236 = vpack.c.b16 %v2227, %v2226
      %v2237 = vpack.c.b16 %v2229, %v2228
      %vm2238 = vcmask 130048
      %v2240 = vsel %vm2238, %v2230, 0
      %v2243 = vsel %vm2238, %v2231, 0
      %v2246 = vsel %vm2238, %v2232, 0
      %v2249 = vsel %vm2238, %v2233, 0
      %v2252 = vsel %vm2238, %v2234, 0
      %v2255 = vsel %vm2238, %v2235, 0
      %v2258 = vsel %vm2238, %v2236, 0
      %v2261 = vsel %vm2238, %v2237, 0
      %2263 = vmatpush.bf16.msra.mxu0 0
      %2264 = vmatpush.bf16.msra.mxu0 0
      %2265 = vmatpush.bf16.msra.mxu0 0
      %2266 = vmatpush.bf16.msra.mxu0 0
      %2267 = vmatpush.bf16.msra.mxu0 0
      %2268 = vmatpush.bf16.msra.mxu0 0
      %2269 = vmatpush.bf16.msra.mxu0 0
      %2270 = vmatpush.bf16.msra.mxu0 %v2101
      %2271 = vmatmul.bf16.gmra.mxu0 %v2240
      %v2272 = vpop.f32.mrf.mxu0
      %v2273 = vadd.f32 %v2121, %v2272
      %v2274 = vpop.f32.mrf.mxu0
      %v2275 = vadd.f32 %v2126, %v2274
      %2276 = vmatmul.bf16.gmra.mxu0 %v2243
      %v2277 = vpop.f32.mrf.mxu0
      %v2278 = vadd.f32 %v2131, %v2277
      %v2279 = vpop.f32.mrf.mxu0
      %v2280 = vadd.f32 %v2136, %v2279
      %2281 = vmatmul.bf16.gmra.mxu0 %v2246
      %v2282 = vpop.f32.mrf.mxu0
      %v2283 = vadd.f32 %v2141, %v2282
      %v2284 = vpop.f32.mrf.mxu0
      %v2285 = vadd.f32 %v2146, %v2284
      %2286 = vmatmul.bf16.gmra.mxu0 %v2249
      %v2287 = vpop.f32.mrf.mxu0
      %v2288 = vadd.f32 %v2151, %v2287
      %v2289 = vpop.f32.mrf.mxu0
      %v2290 = vadd.f32 %v2156, %v2289
      %2291 = vmatmul.bf16.gmra.mxu0 %v2252
      %v2292 = vpop.f32.mrf.mxu0
      %v2293 = vadd.f32 %v2161, %v2292
      %v2294 = vpop.f32.mrf.mxu0
      %v2295 = vadd.f32 %v2166, %v2294
      %2296 = vmatmul.bf16.gmra.mxu0 %v2255
      %v2297 = vpop.f32.mrf.mxu0
      %v2298 = vadd.f32 %v2171, %v2297
      %v2299 = vpop.f32.mrf.mxu0
      %v2300 = vadd.f32 %v2176, %v2299
      %2301 = vmatmul.bf16.gmra.mxu0 %v2258
      %v2302 = vpop.f32.mrf.mxu0
      %v2303 = vadd.f32 %v2181, %v2302
      %v2304 = vpop.f32.mrf.mxu0
      %v2305 = vadd.f32 %v2186, %v2304
      %2306 = vmatmul.bf16.gmra.mxu0 %v2261
      %v2307 = vpop.f32.mrf.mxu0
      %v2308 = vadd.f32 %v2191, %v2307
      %v2309 = vpop.f32.mrf.mxu0
      %v2310 = vadd.f32 %v2196, %v2309
      %2311 = vdwg.mxu0
      %v2312 = vmax.f32 %v2273, 0.0
      %v2313 = vmax.f32 %v2275, 0.0
      %v2314 = vmax.f32 %v2278, 0.0
      %v2315 = vmax.f32 %v2280, 0.0
      %v2316 = vmax.f32 %v2283, 0.0
      %v2317 = vmax.f32 %v2285, 0.0
      %v2318 = vmax.f32 %v2288, 0.0
      %v2319 = vmax.f32 %v2290, 0.0
      %v2320 = vmax.f32 %v2293, 0.0
      %v2321 = vmax.f32 %v2295, 0.0
      %v2322 = vmax.f32 %v2298, 0.0
      %v2323 = vmax.f32 %v2300, 0.0
      %v2324 = vmax.f32 %v2303, 0.0
      %v2325 = vmax.f32 %v2305, 0.0
      %v2326 = vmax.f32 %v2308, 0.0
      %v2327 = vmax.f32 %v2310, 0.0
      %v2328 = vld [vmem:[%s29] sm:$0x1]
      %v2329 = vld [vmem:[%s31] sm:$0xf]
      %v2330 = vld [vmem:[%s31 + $0x4] sm:$0xf]
      %v2331 = vld [vmem:[%s31 + $0x8] sm:$0xf]
      %v2332 = vld [vmem:[%s31 + $0xc] sm:$0xf]
      %v2333 = vld [vmem:[%s31 + $0x10] sm:$0xf]
      %v2334 = vld [vmem:[%s31 + $0x14] sm:$0xf]
      %v2335 = vld [vmem:[%s31 + $0x18] sm:$0xf]
      %v2336 = vld [vmem:[%s31 + $0x1c] sm:$0xf]
      %v2337 = vld [vmem:[%s31 + $0x20] sm:$0xf]
      %v2338 = vld [vmem:[%s31 + $0x24] sm:$0xf]
      %v2339 = vld [vmem:[%s31 + $0x28] sm:$0xf]
      %v2340 = vld [vmem:[%s31 + $0x2c] sm:$0xf]
      %v2341 = vld [vmem:[%s31 + $0x30] sm:$0xf]
      %v2342 = vld [vmem:[%s31 + $0x34] sm:$0xf]
      %v2343 = vld [vmem:[%s31 + $0x38] sm:$0xf]
      %v2344 = vld [vmem:[%s31 + $0x3c] sm:$0xf]
      %v2345 = vpack.c.bf16 %v2313, %v2312
      %v2346 = vpack.c.bf16 %v2315, %v2314
      %v2347 = vpack.c.bf16 %v2317, %v2316
      %v2348 = vpack.c.bf16 %v2319, %v2318
      %v2349 = vpack.c.bf16 %v2321, %v2320
      %v2350 = vpack.c.bf16 %v2323, %v2322
      %v2351 = vpack.c.bf16 %v2325, %v2324
      %v2352 = vpack.c.bf16 %v2327, %v2326
      %v2353 = vld [vmem:[%s33] sm:$0xff]
      %v2354 = vld [vmem:[%s33 + $0x8] sm:$0xff]
      %v2355 = vld [vmem:[%s33 + $0x10] sm:$0xff]
      %v2356 = vld [vmem:[%s33 + $0x18] sm:$0xff]
      %v2357 = vld [vmem:[%s33 + $0x20] sm:$0xff]
      %v2358 = vld [vmem:[%s33 + $0x28] sm:$0xff]
      %v2359 = vld [vmem:[%s33 + $0x30] sm:$0xff]
      %v2360 = vld [vmem:[%s33 + $0x38] sm:$0xff]
      %v2361 = vld [vmem:[%s33 + $0x40] sm:$0xff]
      %v2362 = vld [vmem:[%s33 + $0x48] sm:$0xff]
      %v2363 = vld [vmem:[%s33 + $0x50] sm:$0xff]
      %v2364 = vld [vmem:[%s33 + $0x58] sm:$0xff]
      %v2365 = vld [vmem:[%s33 + $0x60] sm:$0xff]
      %v2366 = vld [vmem:[%s33 + $0x68] sm:$0xff]
      %v2367 = vld [vmem:[%s33 + $0x70] sm:$0xff]
      %v2368 = vld [vmem:[%s33 + $0x78] sm:$0xff]
      %2370 = vset.pattern.permute.xlu0 0
      %2371 = vperm.xlu0 %2370, %v2353
      %v2372 = vpop.permute.xlu0 %2371
      %2375 = vset.pattern.permute.xlu0 0
      %2376 = vperm.xlu0 %2375, %v2354
      %v2377 = vpop.permute.xlu0 %2376
      %2380 = vset.pattern.permute.xlu0 0
      %2381 = vperm.xlu0 %2380, %v2355
      %v2382 = vpop.permute.xlu0 %2381
      %2385 = vset.pattern.permute.xlu0 0
      %2386 = vperm.xlu0 %2385, %v2356
      %v2387 = vpop.permute.xlu0 %2386
      %2390 = vset.pattern.permute.xlu0 0
      %2391 = vperm.xlu0 %2390, %v2357
      %v2392 = vpop.permute.xlu0 %2391
      %2395 = vset.pattern.permute.xlu0 0
      %2396 = vperm.xlu0 %2395, %v2358
      %v2397 = vpop.permute.xlu0 %2396
      %2400 = vset.pattern.permute.xlu0 0
      %2401 = vperm.xlu0 %2400, %v2359
      %v2402 = vpop.permute.xlu0 %2401
      %2405 = vset.pattern.permute.xlu0 0
      %2406 = vperm.xlu0 %2405, %v2360
      %v2407 = vpop.permute.xlu0 %2406
      %2410 = vset.pattern.permute.xlu0 0
      %2411 = vperm.xlu0 %2410, %v2361
      %v2412 = vpop.permute.xlu0 %2411
      %2415 = vset.pattern.permute.xlu0 0
      %2416 = vperm.xlu0 %2415, %v2362
      %v2417 = vpop.permute.xlu0 %2416
      %2420 = vset.pattern.permute.xlu0 0
      %2421 = vperm.xlu0 %2420, %v2363
      %v2422 = vpop.permute.xlu0 %2421
      %2425 = vset.pattern.permute.xlu0 0
      %2426 = vperm.xlu0 %2425, %v2364
      %v2427 = vpop.permute.xlu0 %2426
      %2430 = vset.pattern.permute.xlu0 0
      %2431 = vperm.xlu0 %2430, %v2365
      %v2432 = vpop.permute.xlu0 %2431
      %2435 = vset.pattern.permute.xlu0 0
      %2436 = vperm.xlu0 %2435, %v2366
      %v2437 = vpop.permute.xlu0 %2436
      %2440 = vset.pattern.permute.xlu0 0
      %2441 = vperm.xlu0 %2440, %v2367
      %v2442 = vpop.permute.xlu0 %2441
      %2445 = vset.pattern.permute.xlu0 0
      %2446 = vperm.xlu0 %2445, %v2368
      %v2447 = vpop.permute.xlu0 %2446
      %v2465 = vunpack.c.l.b16 %v2329
      %v2466 = vunpack.c.l.b16 %v2330
      %v2467 = vunpack.c.l.b16 %v2331
      %v2468 = vunpack.c.l.b16 %v2332
      %v2469 = vunpack.c.l.b16 %v2333
      %v2470 = vunpack.c.l.b16 %v2334
      %v2471 = vunpack.c.l.b16 %v2335
      %v2472 = vunpack.c.l.b16 %v2336
      %v2473 = vunpack.c.l.b16 %v2337
      %v2474 = vunpack.c.l.b16 %v2338
      %v2475 = vunpack.c.l.b16 %v2339
      %v2476 = vunpack.c.l.b16 %v2340
      %v2477 = vunpack.c.l.b16 %v2341
      %v2478 = vunpack.c.l.b16 %v2342
      %v2479 = vunpack.c.l.b16 %v2343
      %v2480 = vunpack.c.l.b16 %v2344
      %v2481 = vpack.c.b16 %v2466, %v2465
      %v2482 = vpack.c.b16 %v2468, %v2467
      %v2483 = vpack.c.b16 %v2470, %v2469
      %v2484 = vpack.c.b16 %v2472, %v2471
      %v2485 = vpack.c.b16 %v2474, %v2473
      %v2486 = vpack.c.b16 %v2476, %v2475
      %v2487 = vpack.c.b16 %v2478, %v2477
      %v2488 = vpack.c.b16 %v2480, %v2479
      %2497 = vmatpush.bf16.msra.mxu0 %v2352
      %2498 = vmatpush.bf16.msra.mxu0 %v2351
      %2499 = vmatpush.bf16.msra.mxu0 %v2350
      %2500 = vmatpush.bf16.msra.mxu0 %v2349
      %2501 = vmatpush.bf16.msra.mxu0 %v2348
      %2502 = vmatpush.bf16.msra.mxu0 %v2347
      %2503 = vmatpush.bf16.msra.mxu0 %v2346
      %2504 = vmatpush.bf16.msra.mxu0 %v2345
      %2505 = vmatmul.bf16.gmra.mxu0 %v2481
      %v2506 = vpop.f32.mrf.mxu0
      %v2507 = vadd.f32 %v2372, %v2506
      %v2508 = vpop.f32.mrf.mxu0
      %v2509 = vadd.f32 %v2377, %v2508
      %2510 = vmatmul.bf16.gmra.mxu0 %v2482
      %v2511 = vpop.f32.mrf.mxu0
      %v2512 = vadd.f32 %v2382, %v2511
      %v2513 = vpop.f32.mrf.mxu0
      %v2514 = vadd.f32 %v2387, %v2513
      %2515 = vmatmul.bf16.gmra.mxu0 %v2483
      %v2516 = vpop.f32.mrf.mxu0
      %v2517 = vadd.f32 %v2392, %v2516
      %v2518 = vpop.f32.mrf.mxu0
      %v2519 = vadd.f32 %v2397, %v2518
      %2520 = vmatmul.bf16.gmra.mxu0 %v2484
      %v2521 = vpop.f32.mrf.mxu0
      %v2522 = vadd.f32 %v2402, %v2521
      %v2523 = vpop.f32.mrf.mxu0
      %v2524 = vadd.f32 %v2407, %v2523
      %2525 = vmatmul.bf16.gmra.mxu0 %v2485
      %v2526 = vpop.f32.mrf.mxu0
      %v2527 = vadd.f32 %v2412, %v2526
      %v2528 = vpop.f32.mrf.mxu0
      %v2529 = vadd.f32 %v2417, %v2528
      %2530 = vmatmul.bf16.gmra.mxu0 %v2486
      %v2531 = vpop.f32.mrf.mxu0
      %v2532 = vadd.f32 %v2422, %v2531
      %v2533 = vpop.f32.mrf.mxu0
      %v2534 = vadd.f32 %v2427, %v2533
      %2535 = vmatmul.bf16.gmra.mxu0 %v2487
      %v2536 = vpop.f32.mrf.mxu0
      %v2537 = vadd.f32 %v2432, %v2536
      %v2538 = vpop.f32.mrf.mxu0
      %v2539 = vadd.f32 %v2437, %v2538
      %2540 = vmatmul.bf16.gmra.mxu0 %v2488
      %v2541 = vpop.f32.mrf.mxu0
      %v2542 = vadd.f32 %v2442, %v2541
      %v2543 = vpop.f32.mrf.mxu0
      %v2544 = vadd.f32 %v2447, %v2543
      %2545 = vdwg.mxu0
      %v2546 = vmax.f32 %v2507, 0.0
      %v2547 = vmax.f32 %v2509, 0.0
      %v2548 = vmax.f32 %v2512, 0.0
      %v2549 = vmax.f32 %v2514, 0.0
      %v2550 = vmax.f32 %v2517, 0.0
      %v2551 = vmax.f32 %v2519, 0.0
      %v2552 = vmax.f32 %v2522, 0.0
      %v2553 = vmax.f32 %v2524, 0.0
      %v2554 = vmax.f32 %v2527, 0.0
      %v2555 = vmax.f32 %v2529, 0.0
      %v2556 = vmax.f32 %v2532, 0.0
      %v2557 = vmax.f32 %v2534, 0.0
      %v2558 = vmax.f32 %v2537, 0.0
      %v2559 = vmax.f32 %v2539, 0.0
      %v2560 = vmax.f32 %v2542, 0.0
      %v2561 = vmax.f32 %v2544, 0.0
      %v2562 = vld [vmem:[%s35] sm:$0x1]
      %2563 = vmatpush.msra.mxu0 %v2561
      %2564 = vmatpush.msra.mxu0 %v2560
      %2565 = vmatpush.msra.mxu0 %v2559
      %2566 = vmatpush.msra.mxu0 %v2558
      %2567 = vmatpush.msra.mxu0 %v2557
      %2568 = vmatpush.msra.mxu0 %v2556
      %2569 = vmatpush.msra.mxu0 %v2555
      %2570 = vmatpush.msra.mxu0 %v2554
      %2571 = vmatpush.msra.mxu0 %v2553
      %2572 = vmatpush.msra.mxu0 %v2552
      %2573 = vmatpush.msra.mxu0 %v2551
      %2574 = vmatpush.msra.mxu0 %v2550
      %2575 = vmatpush.msra.mxu0 %v2549
      %2576 = vmatpush.msra.mxu0 %v2548
      %2577 = vmatpush.msra.mxu0 %v2547
      %2578 = vmatpush.msra.mxu0 %v2546
      %2579 = vmatmul.f32.gmra.mxu0 %v2562
      %v2580 = vpop.f32.mrf.mxu0
      %v2581 = vadd.f32 0.0, %v2580
      %2582 = vdwg.mxu0
      %2583 = vmatpush.msra.mxu0 %v2327
      %2584 = vmatpush.msra.mxu0 %v2326
      %2585 = vmatpush.msra.mxu0 %v2325
      %2586 = vmatpush.msra.mxu0 %v2324
      %2587 = vmatpush.msra.mxu0 %v2323
      %2588 = vmatpush.msra.mxu0 %v2322
      %2589 = vmatpush.msra.mxu0 %v2321
      %2590 = vmatpush.msra.mxu0 %v2320
      %2591 = vmatpush.msra.mxu0 %v2319
      %2592 = vmatpush.msra.mxu0 %v2318
      %2593 = vmatpush.msra.mxu0 %v2317
      %2594 = vmatpush.msra.mxu0 %v2316
      %2595 = vmatpush.msra.mxu0 %v2315
      %2596 = vmatpush.msra.mxu0 %v2314
      %2597 = vmatpush.msra.mxu0 %v2313
      %2598 = vmatpush.msra.mxu0 %v2312
      %2599 = vmatmul.f32.gmra.mxu0 %v2328
      %v2600 = vpop.f32.mrf.mxu0
      %v2601 = vadd.f32 %v2581, %v2600
      %2602 = vdwg.mxu0
      %vm2603 = vcmask 516096
      %2604 = vst.msk [vmem:[%s1250] sm:$0x1] %vm2603, %v2601
      %v2605 = vld [vmem:[%s1239] sm:$0x7]
      %v2606 = vld [vmem:[%s39] sm:$0xff]
      %v2607 = vld [vmem:[%s39 + $0x8] sm:$0xff]
      %v2608 = vld [vmem:[%s39 + $0x10] sm:$0xff]
      %v2609 = vld [vmem:[%s39 + $0x18] sm:$0xff]
      %v2610 = vld [vmem:[%s41] sm:$0xff]
      %v2611 = vld [vmem:[%s41 + $0x8] sm:$0xff]
      %v2612 = vld [vmem:[%s41 + $0x10] sm:$0xff]
      %v2613 = vld [vmem:[%s41 + $0x18] sm:$0xff]
      %2615 = vset.pattern.permute.xlu0 0
      %2616 = vperm.xlu0 %2615, %v2606
      %v2617 = vpop.permute.xlu0 %2616
      %2620 = vset.pattern.permute.xlu0 0
      %2621 = vperm.xlu0 %2620, %v2607
      %v2622 = vpop.permute.xlu0 %2621
      %2625 = vset.pattern.permute.xlu0 0
      %2626 = vperm.xlu0 %2625, %v2608
      %v2627 = vpop.permute.xlu0 %2626
      %2630 = vset.pattern.permute.xlu0 0
      %2631 = vperm.xlu0 %2630, %v2609
      %v2632 = vpop.permute.xlu0 %2631
      %v2634 = vperm.slane %v2605, 0
      %v2635 = vmul.f32 %v2617, %v2634
      %v2636 = vmul.f32 %v2622, %v2634
      %v2637 = vmul.f32 %v2627, %v2634
      %v2638 = vmul.f32 %v2632, %v2634
      %2639 = vset.pattern.permute.xlu0 1
      %2640 = vperm.xlu0 %2639, %v2606
      %v2641 = vpop.permute.xlu0 %2640
      %2643 = vset.pattern.permute.xlu0 1
      %2644 = vperm.xlu0 %2643, %v2607
      %v2645 = vpop.permute.xlu0 %2644
      %2647 = vset.pattern.permute.xlu0 1
      %2648 = vperm.xlu0 %2647, %v2608
      %v2649 = vpop.permute.xlu0 %2648
      %2651 = vset.pattern.permute.xlu0 1
      %2652 = vperm.xlu0 %2651, %v2609
      %v2653 = vpop.permute.xlu0 %2652
      %v2655 = vperm.slane %v2605, 1
      %v2656 = vmul.f32 %v2641, %v2655
      %v2657 = vmul.f32 %v2645, %v2655
      %v2658 = vmul.f32 %v2649, %v2655
      %v2659 = vmul.f32 %v2653, %v2655
      %v2660 = vadd.f32 %v2635, %v2656
      %v2661 = vadd.f32 %v2636, %v2657
      %v2662 = vadd.f32 %v2637, %v2658
      %v2663 = vadd.f32 %v2638, %v2659
      %2664 = vset.pattern.permute.xlu0 2
      %2665 = vperm.xlu0 %2664, %v2606
      %v2666 = vpop.permute.xlu0 %2665
      %2668 = vset.pattern.permute.xlu0 2
      %2669 = vperm.xlu0 %2668, %v2607
      %v2670 = vpop.permute.xlu0 %2669
      %2672 = vset.pattern.permute.xlu0 2
      %2673 = vperm.xlu0 %2672, %v2608
      %v2674 = vpop.permute.xlu0 %2673
      %2676 = vset.pattern.permute.xlu0 2
      %2677 = vperm.xlu0 %2676, %v2609
      %v2678 = vpop.permute.xlu0 %2677
      %v2680 = vperm.slane %v2605, 2
      %v2681 = vmul.f32 %v2666, %v2680
      %v2682 = vmul.f32 %v2670, %v2680
      %v2683 = vmul.f32 %v2674, %v2680
      %v2684 = vmul.f32 %v2678, %v2680
      %v2685 = vadd.f32 %v2660, %v2681
      %v2686 = vadd.f32 %v2661, %v2682
      %v2687 = vadd.f32 %v2662, %v2683
      %v2688 = vadd.f32 %v2663, %v2684
      %2690 = vset.pattern.permute.xlu0 0
      %2691 = vperm.xlu0 %2690, %v2610
      %v2692 = vpop.permute.xlu0 %2691
      %2695 = vset.pattern.permute.xlu0 0
      %2696 = vperm.xlu0 %2695, %v2611
      %v2697 = vpop.permute.xlu0 %2696
      %2700 = vset.pattern.permute.xlu0 0
      %2701 = vperm.xlu0 %2700, %v2612
      %v2702 = vpop.permute.xlu0 %2701
      %2705 = vset.pattern.permute.xlu0 0
      %2706 = vperm.xlu0 %2705, %v2613
      %v2707 = vpop.permute.xlu0 %2706
      %v2709 = vadd.f32 %v2685, %v2692
      %v2710 = vadd.f32 %v2686, %v2697
      %v2711 = vadd.f32 %v2687, %v2702
      %v2712 = vadd.f32 %v2688, %v2707
      %v2713 = vmax.f32 %v2709, 0.0
      %v2714 = vmax.f32 %v2710, 0.0
      %v2715 = vmax.f32 %v2711, 0.0
      %v2716 = vmax.f32 %v2712, 0.0
      %v2717 = vld [vmem:[%s43] sm:$0xf]
      %v2718 = vld [vmem:[%s43 + $0x4] sm:$0xf]
      %v2719 = vld [vmem:[%s43 + $0x8] sm:$0xf]
      %v2720 = vld [vmem:[%s43 + $0xc] sm:$0xf]
      %v2721 = vld [vmem:[%s43 + $0x10] sm:$0xf]
      %v2722 = vld [vmem:[%s43 + $0x14] sm:$0xf]
      %v2723 = vld [vmem:[%s43 + $0x18] sm:$0xf]
      %v2724 = vld [vmem:[%s43 + $0x1c] sm:$0xf]
      %v2725 = vld [vmem:[%s43 + $0x20] sm:$0xf]
      %v2726 = vld [vmem:[%s43 + $0x24] sm:$0xf]
      %v2727 = vld [vmem:[%s43 + $0x28] sm:$0xf]
      %v2728 = vld [vmem:[%s43 + $0x2c] sm:$0xf]
      %v2729 = vld [vmem:[%s43 + $0x30] sm:$0xf]
      %v2730 = vld [vmem:[%s43 + $0x34] sm:$0xf]
      %v2731 = vld [vmem:[%s43 + $0x38] sm:$0xf]
      %v2732 = vld [vmem:[%s43 + $0x3c] sm:$0xf]
      %v2733 = vpack.c.bf16 %v2714, %v2713
      %v2734 = vpack.c.bf16 %v2716, %v2715
      %v2735 = vld [vmem:[%s45] sm:$0xff]
      %v2736 = vld [vmem:[%s45 + $0x8] sm:$0xff]
      %v2737 = vld [vmem:[%s45 + $0x10] sm:$0xff]
      %v2738 = vld [vmem:[%s45 + $0x18] sm:$0xff]
      %v2739 = vld [vmem:[%s45 + $0x20] sm:$0xff]
      %v2740 = vld [vmem:[%s45 + $0x28] sm:$0xff]
      %v2741 = vld [vmem:[%s45 + $0x30] sm:$0xff]
      %v2742 = vld [vmem:[%s45 + $0x38] sm:$0xff]
      %v2743 = vld [vmem:[%s45 + $0x40] sm:$0xff]
      %v2744 = vld [vmem:[%s45 + $0x48] sm:$0xff]
      %v2745 = vld [vmem:[%s45 + $0x50] sm:$0xff]
      %v2746 = vld [vmem:[%s45 + $0x58] sm:$0xff]
      %v2747 = vld [vmem:[%s45 + $0x60] sm:$0xff]
      %v2748 = vld [vmem:[%s45 + $0x68] sm:$0xff]
      %v2749 = vld [vmem:[%s45 + $0x70] sm:$0xff]
      %v2750 = vld [vmem:[%s45 + $0x78] sm:$0xff]
      %2752 = vset.pattern.permute.xlu0 0
      %2753 = vperm.xlu0 %2752, %v2735
      %v2754 = vpop.permute.xlu0 %2753
      %2757 = vset.pattern.permute.xlu0 0
      %2758 = vperm.xlu0 %2757, %v2736
      %v2759 = vpop.permute.xlu0 %2758
      %2762 = vset.pattern.permute.xlu0 0
      %2763 = vperm.xlu0 %2762, %v2737
      %v2764 = vpop.permute.xlu0 %2763
      %2767 = vset.pattern.permute.xlu0 0
      %2768 = vperm.xlu0 %2767, %v2738
      %v2769 = vpop.permute.xlu0 %2768
      %2772 = vset.pattern.permute.xlu0 0
      %2773 = vperm.xlu0 %2772, %v2739
      %v2774 = vpop.permute.xlu0 %2773
      %2777 = vset.pattern.permute.xlu0 0
      %2778 = vperm.xlu0 %2777, %v2740
      %v2779 = vpop.permute.xlu0 %2778
      %2782 = vset.pattern.permute.xlu0 0
      %2783 = vperm.xlu0 %2782, %v2741
      %v2784 = vpop.permute.xlu0 %2783
      %2787 = vset.pattern.permute.xlu0 0
      %2788 = vperm.xlu0 %2787, %v2742
      %v2789 = vpop.permute.xlu0 %2788
      %2792 = vset.pattern.permute.xlu0 0
      %2793 = vperm.xlu0 %2792, %v2743
      %v2794 = vpop.permute.xlu0 %2793
      %2797 = vset.pattern.permute.xlu0 0
      %2798 = vperm.xlu0 %2797, %v2744
      %v2799 = vpop.permute.xlu0 %2798
      %2802 = vset.pattern.permute.xlu0 0
      %2803 = vperm.xlu0 %2802, %v2745
      %v2804 = vpop.permute.xlu0 %2803
      %2807 = vset.pattern.permute.xlu0 0
      %2808 = vperm.xlu0 %2807, %v2746
      %v2809 = vpop.permute.xlu0 %2808
      %2812 = vset.pattern.permute.xlu0 0
      %2813 = vperm.xlu0 %2812, %v2747
      %v2814 = vpop.permute.xlu0 %2813
      %2817 = vset.pattern.permute.xlu0 0
      %2818 = vperm.xlu0 %2817, %v2748
      %v2819 = vpop.permute.xlu0 %2818
      %2822 = vset.pattern.permute.xlu0 0
      %2823 = vperm.xlu0 %2822, %v2749
      %v2824 = vpop.permute.xlu0 %2823
      %2827 = vset.pattern.permute.xlu0 0
      %2828 = vperm.xlu0 %2827, %v2750
      %v2829 = vpop.permute.xlu0 %2828
      %v2847 = vunpack.c.l.b16 %v2717
      %v2848 = vunpack.c.l.b16 %v2718
      %v2849 = vunpack.c.l.b16 %v2719
      %v2850 = vunpack.c.l.b16 %v2720
      %v2851 = vunpack.c.l.b16 %v2721
      %v2852 = vunpack.c.l.b16 %v2722
      %v2853 = vunpack.c.l.b16 %v2723
      %v2854 = vunpack.c.l.b16 %v2724
      %v2855 = vunpack.c.l.b16 %v2725
      %v2856 = vunpack.c.l.b16 %v2726
      %v2857 = vunpack.c.l.b16 %v2727
      %v2858 = vunpack.c.l.b16 %v2728
      %v2859 = vunpack.c.l.b16 %v2729
      %v2860 = vunpack.c.l.b16 %v2730
      %v2861 = vunpack.c.l.b16 %v2731
      %v2862 = vunpack.c.l.b16 %v2732
      %v2863 = vpack.c.b16 %v2848, %v2847
      %v2864 = vpack.c.b16 %v2850, %v2849
      %v2865 = vpack.c.b16 %v2852, %v2851
      %v2866 = vpack.c.b16 %v2854, %v2853
      %v2867 = vpack.c.b16 %v2856, %v2855
      %v2868 = vpack.c.b16 %v2858, %v2857
      %v2869 = vpack.c.b16 %v2860, %v2859
      %v2870 = vpack.c.b16 %v2862, %v2861
      %vm2871 = vcmask 261120
      %v2873 = vsel %vm2871, %v2863, 0
      %v2876 = vsel %vm2871, %v2864, 0
      %v2879 = vsel %vm2871, %v2865, 0
      %v2882 = vsel %vm2871, %v2866, 0
      %v2885 = vsel %vm2871, %v2867, 0
      %v2888 = vsel %vm2871, %v2868, 0
      %v2891 = vsel %vm2871, %v2869, 0
      %v2894 = vsel %vm2871, %v2870, 0
      %2896 = vmatpush.bf16.msra.mxu0 0
      %2897 = vmatpush.bf16.msra.mxu0 0
      %2898 = vmatpush.bf16.msra.mxu0 0
      %2899 = vmatpush.bf16.msra.mxu0 0
      %2900 = vmatpush.bf16.msra.mxu0 0
      %2901 = vmatpush.bf16.msra.mxu0 0
      %2902 = vmatpush.bf16.msra.mxu0 %v2734
      %2903 = vmatpush.bf16.msra.mxu0 %v2733
      %2904 = vmatmul.bf16.gmra.mxu0 %v2873
      %v2905 = vpop.f32.mrf.mxu0
      %v2906 = vadd.f32 %v2754, %v2905
      %v2907 = vpop.f32.mrf.mxu0
      %v2908 = vadd.f32 %v2759, %v2907
      %2909 = vmatmul.bf16.gmra.mxu0 %v2876
      %v2910 = vpop.f32.mrf.mxu0
      %v2911 = vadd.f32 %v2764, %v2910
      %v2912 = vpop.f32.mrf.mxu0
      %v2913 = vadd.f32 %v2769, %v2912
      %2914 = vmatmul.bf16.gmra.mxu0 %v2879
      %v2915 = vpop.f32.mrf.mxu0
      %v2916 = vadd.f32 %v2774, %v2915
      %v2917 = vpop.f32.mrf.mxu0
      %v2918 = vadd.f32 %v2779, %v2917
      %2919 = vmatmul.bf16.gmra.mxu0 %v2882
      %v2920 = vpop.f32.mrf.mxu0
      %v2921 = vadd.f32 %v2784, %v2920
      %v2922 = vpop.f32.mrf.mxu0
      %v2923 = vadd.f32 %v2789, %v2922
      %2924 = vmatmul.bf16.gmra.mxu0 %v2885
      %v2925 = vpop.f32.mrf.mxu0
      %v2926 = vadd.f32 %v2794, %v2925
      %v2927 = vpop.f32.mrf.mxu0
      %v2928 = vadd.f32 %v2799, %v2927
      %2929 = vmatmul.bf16.gmra.mxu0 %v2888
      %v2930 = vpop.f32.mrf.mxu0
      %v2931 = vadd.f32 %v2804, %v2930
      %v2932 = vpop.f32.mrf.mxu0
      %v2933 = vadd.f32 %v2809, %v2932
      %2934 = vmatmul.bf16.gmra.mxu0 %v2891
      %v2935 = vpop.f32.mrf.mxu0
      %v2936 = vadd.f32 %v2814, %v2935
      %v2937 = vpop.f32.mrf.mxu0
      %v2938 = vadd.f32 %v2819, %v2937
      %2939 = vmatmul.bf16.gmra.mxu0 %v2894
      %v2940 = vpop.f32.mrf.mxu0
      %v2941 = vadd.f32 %v2824, %v2940
      %v2942 = vpop.f32.mrf.mxu0
      %v2943 = vadd.f32 %v2829, %v2942
      %2944 = vdwg.mxu0
      %v2945 = vmax.f32 %v2906, 0.0
      %v2946 = vmax.f32 %v2908, 0.0
      %v2947 = vmax.f32 %v2911, 0.0
      %v2948 = vmax.f32 %v2913, 0.0
      %v2949 = vmax.f32 %v2916, 0.0
      %v2950 = vmax.f32 %v2918, 0.0
      %v2951 = vmax.f32 %v2921, 0.0
      %v2952 = vmax.f32 %v2923, 0.0
      %v2953 = vmax.f32 %v2926, 0.0
      %v2954 = vmax.f32 %v2928, 0.0
      %v2955 = vmax.f32 %v2931, 0.0
      %v2956 = vmax.f32 %v2933, 0.0
      %v2957 = vmax.f32 %v2936, 0.0
      %v2958 = vmax.f32 %v2938, 0.0
      %v2959 = vmax.f32 %v2941, 0.0
      %v2960 = vmax.f32 %v2943, 0.0
      %v2961 = vld [vmem:[%s47] sm:$0x1]
      %v2962 = vld [vmem:[%s49] sm:$0xf]
      %v2963 = vld [vmem:[%s49 + $0x4] sm:$0xf]
      %v2964 = vld [vmem:[%s49 + $0x8] sm:$0xf]
      %v2965 = vld [vmem:[%s49 + $0xc] sm:$0xf]
      %v2966 = vld [vmem:[%s49 + $0x10] sm:$0xf]
      %v2967 = vld [vmem:[%s49 + $0x14] sm:$0xf]
      %v2968 = vld [vmem:[%s49 + $0x18] sm:$0xf]
      %v2969 = vld [vmem:[%s49 + $0x1c] sm:$0xf]
      %v2970 = vld [vmem:[%s49 + $0x20] sm:$0xf]
      %v2971 = vld [vmem:[%s49 + $0x24] sm:$0xf]
      %v2972 = vld [vmem:[%s49 + $0x28] sm:$0xf]
      %v2973 = vld [vmem:[%s49 + $0x2c] sm:$0xf]
      %v2974 = vld [vmem:[%s49 + $0x30] sm:$0xf]
      %v2975 = vld [vmem:[%s49 + $0x34] sm:$0xf]
      %v2976 = vld [vmem:[%s49 + $0x38] sm:$0xf]
      %v2977 = vld [vmem:[%s49 + $0x3c] sm:$0xf]
      %v2978 = vpack.c.bf16 %v2946, %v2945
      %v2979 = vpack.c.bf16 %v2948, %v2947
      %v2980 = vpack.c.bf16 %v2950, %v2949
      %v2981 = vpack.c.bf16 %v2952, %v2951
      %v2982 = vpack.c.bf16 %v2954, %v2953
      %v2983 = vpack.c.bf16 %v2956, %v2955
      %v2984 = vpack.c.bf16 %v2958, %v2957
      %v2985 = vpack.c.bf16 %v2960, %v2959
      %v2986 = vld [vmem:[%s51] sm:$0xff]
      %v2987 = vld [vmem:[%s51 + $0x8] sm:$0xff]
      %v2988 = vld [vmem:[%s51 + $0x10] sm:$0xff]
      %v2989 = vld [vmem:[%s51 + $0x18] sm:$0xff]
      %v2990 = vld [vmem:[%s51 + $0x20] sm:$0xff]
      %v2991 = vld [vmem:[%s51 + $0x28] sm:$0xff]
      %v2992 = vld [vmem:[%s51 + $0x30] sm:$0xff]
      %v2993 = vld [vmem:[%s51 + $0x38] sm:$0xff]
      %v2994 = vld [vmem:[%s51 + $0x40] sm:$0xff]
      %v2995 = vld [vmem:[%s51 + $0x48] sm:$0xff]
      %v2996 = vld [vmem:[%s51 + $0x50] sm:$0xff]
      %v2997 = vld [vmem:[%s51 + $0x58] sm:$0xff]
      %v2998 = vld [vmem:[%s51 + $0x60] sm:$0xff]
      %v2999 = vld [vmem:[%s51 + $0x68] sm:$0xff]
      %v3000 = vld [vmem:[%s51 + $0x70] sm:$0xff]
      %v3001 = vld [vmem:[%s51 + $0x78] sm:$0xff]
      %3003 = vset.pattern.permute.xlu0 0
      %3004 = vperm.xlu0 %3003, %v2986
      %v3005 = vpop.permute.xlu0 %3004
      %3008 = vset.pattern.permute.xlu0 0
      %3009 = vperm.xlu0 %3008, %v2987
      %v3010 = vpop.permute.xlu0 %3009
      %3013 = vset.pattern.permute.xlu0 0
      %3014 = vperm.xlu0 %3013, %v2988
      %v3015 = vpop.permute.xlu0 %3014
      %3018 = vset.pattern.permute.xlu0 0
      %3019 = vperm.xlu0 %3018, %v2989
      %v3020 = vpop.permute.xlu0 %3019
      %3023 = vset.pattern.permute.xlu0 0
      %3024 = vperm.xlu0 %3023, %v2990
      %v3025 = vpop.permute.xlu0 %3024
      %3028 = vset.pattern.permute.xlu0 0
      %3029 = vperm.xlu0 %3028, %v2991
      %v3030 = vpop.permute.xlu0 %3029
      %3033 = vset.pattern.permute.xlu0 0
      %3034 = vperm.xlu0 %3033, %v2992
      %v3035 = vpop.permute.xlu0 %3034
      %3038 = vset.pattern.permute.xlu0 0
      %3039 = vperm.xlu0 %3038, %v2993
      %v3040 = vpop.permute.xlu0 %3039
      %3043 = vset.pattern.permute.xlu0 0
      %3044 = vperm.xlu0 %3043, %v2994
      %v3045 = vpop.permute.xlu0 %3044
      %3048 = vset.pattern.permute.xlu0 0
      %3049 = vperm.xlu0 %3048, %v2995
      %v3050 = vpop.permute.xlu0 %3049
      %3053 = vset.pattern.permute.xlu0 0
      %3054 = vperm.xlu0 %3053, %v2996
      %v3055 = vpop.permute.xlu0 %3054
      %3058 = vset.pattern.permute.xlu0 0
      %3059 = vperm.xlu0 %3058, %v2997
      %v3060 = vpop.permute.xlu0 %3059
      %3063 = vset.pattern.permute.xlu0 0
      %3064 = vperm.xlu0 %3063, %v2998
      %v3065 = vpop.permute.xlu0 %3064
      %3068 = vset.pattern.permute.xlu0 0
      %3069 = vperm.xlu0 %3068, %v2999
      %v3070 = vpop.permute.xlu0 %3069
      %3073 = vset.pattern.permute.xlu0 0
      %3074 = vperm.xlu0 %3073, %v3000
      %v3075 = vpop.permute.xlu0 %3074
      %3078 = vset.pattern.permute.xlu0 0
      %3079 = vperm.xlu0 %3078, %v3001
      %v3080 = vpop.permute.xlu0 %3079
      %v3098 = vunpack.c.l.b16 %v2962
      %v3099 = vunpack.c.l.b16 %v2963
      %v3100 = vunpack.c.l.b16 %v2964
      %v3101 = vunpack.c.l.b16 %v2965
      %v3102 = vunpack.c.l.b16 %v2966
      %v3103 = vunpack.c.l.b16 %v2967
      %v3104 = vunpack.c.l.b16 %v2968
      %v3105 = vunpack.c.l.b16 %v2969
      %v3106 = vunpack.c.l.b16 %v2970
      %v3107 = vunpack.c.l.b16 %v2971
      %v3108 = vunpack.c.l.b16 %v2972
      %v3109 = vunpack.c.l.b16 %v2973
      %v3110 = vunpack.c.l.b16 %v2974
      %v3111 = vunpack.c.l.b16 %v2975
      %v3112 = vunpack.c.l.b16 %v2976
      %v3113 = vunpack.c.l.b16 %v2977
      %v3114 = vpack.c.b16 %v3099, %v3098
      %v3115 = vpack.c.b16 %v3101, %v3100
      %v3116 = vpack.c.b16 %v3103, %v3102
      %v3117 = vpack.c.b16 %v3105, %v3104
      %v3118 = vpack.c.b16 %v3107, %v3106
      %v3119 = vpack.c.b16 %v3109, %v3108
      %v3120 = vpack.c.b16 %v3111, %v3110
      %v3121 = vpack.c.b16 %v3113, %v3112
      %3130 = vmatpush.bf16.msra.mxu0 %v2985
      %3131 = vmatpush.bf16.msra.mxu0 %v2984
      %3132 = vmatpush.bf16.msra.mxu0 %v2983
      %3133 = vmatpush.bf16.msra.mxu0 %v2982
      %3134 = vmatpush.bf16.msra.mxu0 %v2981
      %3135 = vmatpush.bf16.msra.mxu0 %v2980
      %3136 = vmatpush.bf16.msra.mxu0 %v2979
      %3137 = vmatpush.bf16.msra.mxu0 %v2978
      %3138 = vmatmul.bf16.gmra.mxu0 %v3114
      %v3139 = vpop.f32.mrf.mxu0
      %v3140 = vadd.f32 %v3005, %v3139
      %v3141 = vpop.f32.mrf.mxu0
      %v3142 = vadd.f32 %v3010, %v3141
      %3143 = vmatmul.bf16.gmra.mxu0 %v3115
      %v3144 = vpop.f32.mrf.mxu0
      %v3145 = vadd.f32 %v3015, %v3144
      %v3146 = vpop.f32.mrf.mxu0
      %v3147 = vadd.f32 %v3020, %v3146
      %3148 = vmatmul.bf16.gmra.mxu0 %v3116
      %v3149 = vpop.f32.mrf.mxu0
      %v3150 = vadd.f32 %v3025, %v3149
      %v3151 = vpop.f32.mrf.mxu0
      %v3152 = vadd.f32 %v3030, %v3151
      %3153 = vmatmul.bf16.gmra.mxu0 %v3117
      %v3154 = vpop.f32.mrf.mxu0
      %v3155 = vadd.f32 %v3035, %v3154
      %v3156 = vpop.f32.mrf.mxu0
      %v3157 = vadd.f32 %v3040, %v3156
      %3158 = vmatmul.bf16.gmra.mxu0 %v3118
      %v3159 = vpop.f32.mrf.mxu0
      %v3160 = vadd.f32 %v3045, %v3159
      %v3161 = vpop.f32.mrf.mxu0
      %v3162 = vadd.f32 %v3050, %v3161
      %3163 = vmatmul.bf16.gmra.mxu0 %v3119
      %v3164 = vpop.f32.mrf.mxu0
      %v3165 = vadd.f32 %v3055, %v3164
      %v3166 = vpop.f32.mrf.mxu0
      %v3167 = vadd.f32 %v3060, %v3166
      %3168 = vmatmul.bf16.gmra.mxu0 %v3120
      %v3169 = vpop.f32.mrf.mxu0
      %v3170 = vadd.f32 %v3065, %v3169
      %v3171 = vpop.f32.mrf.mxu0
      %v3172 = vadd.f32 %v3070, %v3171
      %3173 = vmatmul.bf16.gmra.mxu0 %v3121
      %v3174 = vpop.f32.mrf.mxu0
      %v3175 = vadd.f32 %v3075, %v3174
      %v3176 = vpop.f32.mrf.mxu0
      %v3177 = vadd.f32 %v3080, %v3176
      %3178 = vdwg.mxu0
      %v3179 = vmax.f32 %v3140, 0.0
      %v3180 = vmax.f32 %v3142, 0.0
      %v3181 = vmax.f32 %v3145, 0.0
      %v3182 = vmax.f32 %v3147, 0.0
      %v3183 = vmax.f32 %v3150, 0.0
      %v3184 = vmax.f32 %v3152, 0.0
      %v3185 = vmax.f32 %v3155, 0.0
      %v3186 = vmax.f32 %v3157, 0.0
      %v3187 = vmax.f32 %v3160, 0.0
      %v3188 = vmax.f32 %v3162, 0.0
      %v3189 = vmax.f32 %v3165, 0.0
      %v3190 = vmax.f32 %v3167, 0.0
      %v3191 = vmax.f32 %v3170, 0.0
      %v3192 = vmax.f32 %v3172, 0.0
      %v3193 = vmax.f32 %v3175, 0.0
      %v3194 = vmax.f32 %v3177, 0.0
      %v3195 = vld [vmem:[%s53] sm:$0x1]
      %3196 = vmatpush.msra.mxu0 %v3194
      %3197 = vmatpush.msra.mxu0 %v3193
      %3198 = vmatpush.msra.mxu0 %v3192
      %3199 = vmatpush.msra.mxu0 %v3191
      %3200 = vmatpush.msra.mxu0 %v3190
      %3201 = vmatpush.msra.mxu0 %v3189
      %3202 = vmatpush.msra.mxu0 %v3188
      %3203 = vmatpush.msra.mxu0 %v3187
      %3204 = vmatpush.msra.mxu0 %v3186
      %3205 = vmatpush.msra.mxu0 %v3185
      %3206 = vmatpush.msra.mxu0 %v3184
      %3207 = vmatpush.msra.mxu0 %v3183
      %3208 = vmatpush.msra.mxu0 %v3182
      %3209 = vmatpush.msra.mxu0 %v3181
      %3210 = vmatpush.msra.mxu0 %v3180
      %3211 = vmatpush.msra.mxu0 %v3179
      %3212 = vmatmul.f32.gmra.mxu0 %v3195
      %v3213 = vpop.f32.mrf.mxu0
      %v3214 = vadd.f32 0.0, %v3213
      %3215 = vdwg.mxu0
      %3216 = vmatpush.msra.mxu0 %v2960
      %3217 = vmatpush.msra.mxu0 %v2959
      %3218 = vmatpush.msra.mxu0 %v2958
      %3219 = vmatpush.msra.mxu0 %v2957
      %3220 = vmatpush.msra.mxu0 %v2956
      %3221 = vmatpush.msra.mxu0 %v2955
      %3222 = vmatpush.msra.mxu0 %v2954
      %3223 = vmatpush.msra.mxu0 %v2953
      %3224 = vmatpush.msra.mxu0 %v2952
      %3225 = vmatpush.msra.mxu0 %v2951
      %3226 = vmatpush.msra.mxu0 %v2950
      %3227 = vmatpush.msra.mxu0 %v2949
      %3228 = vmatpush.msra.mxu0 %v2948
      %3229 = vmatpush.msra.mxu0 %v2947
      %3230 = vmatpush.msra.mxu0 %v2946
      %3231 = vmatpush.msra.mxu0 %v2945
      %3232 = vmatmul.f32.gmra.mxu0 %v2961
      %v3233 = vpop.f32.mrf.mxu0
      %v3234 = vadd.f32 %v3214, %v3233
      %3235 = vdwg.mxu0
      %vm3236 = vcmask 122880
      %3237 = vst.msk [vmem:[%s1253] sm:$0x1] %vm3236, %v3234
      %v3238 = vld [vmem:[%s1243] sm:$0x7]
      %v3239 = vld [vmem:[%s57] sm:$0xff]
      %v3240 = vld [vmem:[%s57 + $0x8] sm:$0xff]
      %v3241 = vld [vmem:[%s57 + $0x10] sm:$0xff]
      %v3242 = vld [vmem:[%s57 + $0x18] sm:$0xff]
      %v3243 = vld [vmem:[%s59] sm:$0xff]
      %v3244 = vld [vmem:[%s59 + $0x8] sm:$0xff]
      %v3245 = vld [vmem:[%s59 + $0x10] sm:$0xff]
      %v3246 = vld [vmem:[%s59 + $0x18] sm:$0xff]
      %3248 = vset.pattern.permute.xlu0 0
      %3249 = vperm.xlu0 %3248, %v3239
      %v3250 = vpop.permute.xlu0 %3249
      %3253 = vset.pattern.permute.xlu0 0
      %3254 = vperm.xlu0 %3253, %v3240
      %v3255 = vpop.permute.xlu0 %3254
      %3258 = vset.pattern.permute.xlu0 0
      %3259 = vperm.xlu0 %3258, %v3241
      %v3260 = vpop.permute.xlu0 %3259
      %3263 = vset.pattern.permute.xlu0 0
      %3264 = vperm.xlu0 %3263, %v3242
      %v3265 = vpop.permute.xlu0 %3264
      %v3267 = vperm.slane %v3238, 0
      %v3268 = vmul.f32 %v3250, %v3267
      %v3269 = vmul.f32 %v3255, %v3267
      %v3270 = vmul.f32 %v3260, %v3267
      %v3271 = vmul.f32 %v3265, %v3267
      %3272 = vset.pattern.permute.xlu0 1
      %3273 = vperm.xlu0 %3272, %v3239
      %v3274 = vpop.permute.xlu0 %3273
      %3276 = vset.pattern.permute.xlu0 1
      %3277 = vperm.xlu0 %3276, %v3240
      %v3278 = vpop.permute.xlu0 %3277
      %3280 = vset.pattern.permute.xlu0 1
      %3281 = vperm.xlu0 %3280, %v3241
      %v3282 = vpop.permute.xlu0 %3281
      %3284 = vset.pattern.permute.xlu0 1
      %3285 = vperm.xlu0 %3284, %v3242
      %v3286 = vpop.permute.xlu0 %3285
      %v3288 = vperm.slane %v3238, 1
      %v3289 = vmul.f32 %v3274, %v3288
      %v3290 = vmul.f32 %v3278, %v3288
      %v3291 = vmul.f32 %v3282, %v3288
      %v3292 = vmul.f32 %v3286, %v3288
      %v3293 = vadd.f32 %v3268, %v3289
      %v3294 = vadd.f32 %v3269, %v3290
      %v3295 = vadd.f32 %v3270, %v3291
      %v3296 = vadd.f32 %v3271, %v3292
      %3297 = vset.pattern.permute.xlu0 2
      %3298 = vperm.xlu0 %3297, %v3239
      %v3299 = vpop.permute.xlu0 %3298
      %3301 = vset.pattern.permute.xlu0 2
      %3302 = vperm.xlu0 %3301, %v3240
      %v3303 = vpop.permute.xlu0 %3302
      %3305 = vset.pattern.permute.xlu0 2
      %3306 = vperm.xlu0 %3305, %v3241
      %v3307 = vpop.permute.xlu0 %3306
      %3309 = vset.pattern.permute.xlu0 2
      %3310 = vperm.xlu0 %3309, %v3242
      %v3311 = vpop.permute.xlu0 %3310
      %v3313 = vperm.slane %v3238, 2
      %v3314 = vmul.f32 %v3299, %v3313
      %v3315 = vmul.f32 %v3303, %v3313
      %v3316 = vmul.f32 %v3307, %v3313
      %v3317 = vmul.f32 %v3311, %v3313
      %v3318 = vadd.f32 %v3293, %v3314
      %v3319 = vadd.f32 %v3294, %v3315
      %v3320 = vadd.f32 %v3295, %v3316
      %v3321 = vadd.f32 %v3296, %v3317
      %3323 = vset.pattern.permute.xlu0 0
      %3324 = vperm.xlu0 %3323, %v3243
      %v3325 = vpop.permute.xlu0 %3324
      %3328 = vset.pattern.permute.xlu0 0
      %3329 = vperm.xlu0 %3328, %v3244
      %v3330 = vpop.permute.xlu0 %3329
      %3333 = vset.pattern.permute.xlu0 0
      %3334 = vperm.xlu0 %3333, %v3245
      %v3335 = vpop.permute.xlu0 %3334
      %3338 = vset.pattern.permute.xlu0 0
      %3339 = vperm.xlu0 %3338, %v3246
      %v3340 = vpop.permute.xlu0 %3339
      %v3342 = vadd.f32 %v3318, %v3325
      %v3343 = vadd.f32 %v3319, %v3330
      %v3344 = vadd.f32 %v3320, %v3335
      %v3345 = vadd.f32 %v3321, %v3340
      %v3346 = vmax.f32 %v3342, 0.0
      %v3347 = vmax.f32 %v3343, 0.0
      %v3348 = vmax.f32 %v3344, 0.0
      %v3349 = vmax.f32 %v3345, 0.0
      %v3350 = vld [vmem:[%s61] sm:$0xf]
      %v3351 = vld [vmem:[%s61 + $0x4] sm:$0xf]
      %v3352 = vld [vmem:[%s61 + $0x8] sm:$0xf]
      %v3353 = vld [vmem:[%s61 + $0xc] sm:$0xf]
      %v3354 = vld [vmem:[%s61 + $0x10] sm:$0xf]
      %v3355 = vld [vmem:[%s61 + $0x14] sm:$0xf]
      %v3356 = vld [vmem:[%s61 + $0x18] sm:$0xf]
      %v3357 = vld [vmem:[%s61 + $0x1c] sm:$0xf]
      %v3358 = vld [vmem:[%s61 + $0x20] sm:$0xf]
      %v3359 = vld [vmem:[%s61 + $0x24] sm:$0xf]
      %v3360 = vld [vmem:[%s61 + $0x28] sm:$0xf]
      %v3361 = vld [vmem:[%s61 + $0x2c] sm:$0xf]
      %v3362 = vld [vmem:[%s61 + $0x30] sm:$0xf]
      %v3363 = vld [vmem:[%s61 + $0x34] sm:$0xf]
      %v3364 = vld [vmem:[%s61 + $0x38] sm:$0xf]
      %v3365 = vld [vmem:[%s61 + $0x3c] sm:$0xf]
      %v3366 = vpack.c.bf16 %v3347, %v3346
      %v3367 = vpack.c.bf16 %v3349, %v3348
      %v3368 = vld [vmem:[%s63] sm:$0xff]
      %v3369 = vld [vmem:[%s63 + $0x8] sm:$0xff]
      %v3370 = vld [vmem:[%s63 + $0x10] sm:$0xff]
      %v3371 = vld [vmem:[%s63 + $0x18] sm:$0xff]
      %v3372 = vld [vmem:[%s63 + $0x20] sm:$0xff]
      %v3373 = vld [vmem:[%s63 + $0x28] sm:$0xff]
      %v3374 = vld [vmem:[%s63 + $0x30] sm:$0xff]
      %v3375 = vld [vmem:[%s63 + $0x38] sm:$0xff]
      %v3376 = vld [vmem:[%s63 + $0x40] sm:$0xff]
      %v3377 = vld [vmem:[%s63 + $0x48] sm:$0xff]
      %v3378 = vld [vmem:[%s63 + $0x50] sm:$0xff]
      %v3379 = vld [vmem:[%s63 + $0x58] sm:$0xff]
      %v3380 = vld [vmem:[%s63 + $0x60] sm:$0xff]
      %v3381 = vld [vmem:[%s63 + $0x68] sm:$0xff]
      %v3382 = vld [vmem:[%s63 + $0x70] sm:$0xff]
      %v3383 = vld [vmem:[%s63 + $0x78] sm:$0xff]
      %3385 = vset.pattern.permute.xlu0 0
      %3386 = vperm.xlu0 %3385, %v3368
      %v3387 = vpop.permute.xlu0 %3386
      %3390 = vset.pattern.permute.xlu0 0
      %3391 = vperm.xlu0 %3390, %v3369
      %v3392 = vpop.permute.xlu0 %3391
      %3395 = vset.pattern.permute.xlu0 0
      %3396 = vperm.xlu0 %3395, %v3370
      %v3397 = vpop.permute.xlu0 %3396
      %3400 = vset.pattern.permute.xlu0 0
      %3401 = vperm.xlu0 %3400, %v3371
      %v3402 = vpop.permute.xlu0 %3401
      %3405 = vset.pattern.permute.xlu0 0
      %3406 = vperm.xlu0 %3405, %v3372
      %v3407 = vpop.permute.xlu0 %3406
      %3410 = vset.pattern.permute.xlu0 0
      %3411 = vperm.xlu0 %3410, %v3373
      %v3412 = vpop.permute.xlu0 %3411
      %3415 = vset.pattern.permute.xlu0 0
      %3416 = vperm.xlu0 %3415, %v3374
      %v3417 = vpop.permute.xlu0 %3416
      %3420 = vset.pattern.permute.xlu0 0
      %3421 = vperm.xlu0 %3420, %v3375
      %v3422 = vpop.permute.xlu0 %3421
      %3425 = vset.pattern.permute.xlu0 0
      %3426 = vperm.xlu0 %3425, %v3376
      %v3427 = vpop.permute.xlu0 %3426
      %3430 = vset.pattern.permute.xlu0 0
      %3431 = vperm.xlu0 %3430, %v3377
      %v3432 = vpop.permute.xlu0 %3431
      %3435 = vset.pattern.permute.xlu0 0
      %3436 = vperm.xlu0 %3435, %v3378
      %v3437 = vpop.permute.xlu0 %3436
      %3440 = vset.pattern.permute.xlu0 0
      %3441 = vperm.xlu0 %3440, %v3379
      %v3442 = vpop.permute.xlu0 %3441
      %3445 = vset.pattern.permute.xlu0 0
      %3446 = vperm.xlu0 %3445, %v3380
      %v3447 = vpop.permute.xlu0 %3446
      %3450 = vset.pattern.permute.xlu0 0
      %3451 = vperm.xlu0 %3450, %v3381
      %v3452 = vpop.permute.xlu0 %3451
      %3455 = vset.pattern.permute.xlu0 0
      %3456 = vperm.xlu0 %3455, %v3382
      %v3457 = vpop.permute.xlu0 %3456
      %3460 = vset.pattern.permute.xlu0 0
      %3461 = vperm.xlu0 %3460, %v3383
      %v3462 = vpop.permute.xlu0 %3461
      %v3480 = vunpack.c.l.b16 %v3350
      %v3481 = vunpack.c.l.b16 %v3351
      %v3482 = vunpack.c.l.b16 %v3352
      %v3483 = vunpack.c.l.b16 %v3353
      %v3484 = vunpack.c.l.b16 %v3354
      %v3485 = vunpack.c.l.b16 %v3355
      %v3486 = vunpack.c.l.b16 %v3356
      %v3487 = vunpack.c.l.b16 %v3357
      %v3488 = vunpack.c.l.b16 %v3358
      %v3489 = vunpack.c.l.b16 %v3359
      %v3490 = vunpack.c.l.b16 %v3360
      %v3491 = vunpack.c.l.b16 %v3361
      %v3492 = vunpack.c.l.b16 %v3362
      %v3493 = vunpack.c.l.b16 %v3363
      %v3494 = vunpack.c.l.b16 %v3364
      %v3495 = vunpack.c.l.b16 %v3365
      %v3496 = vpack.c.b16 %v3481, %v3480
      %v3497 = vpack.c.b16 %v3483, %v3482
      %v3498 = vpack.c.b16 %v3485, %v3484
      %v3499 = vpack.c.b16 %v3487, %v3486
      %v3500 = vpack.c.b16 %v3489, %v3488
      %v3501 = vpack.c.b16 %v3491, %v3490
      %v3502 = vpack.c.b16 %v3493, %v3492
      %v3503 = vpack.c.b16 %v3495, %v3494
      %v3505 = vsel %vm2871, %v3496, 0
      %v3508 = vsel %vm2871, %v3497, 0
      %v3511 = vsel %vm2871, %v3498, 0
      %v3514 = vsel %vm2871, %v3499, 0
      %v3517 = vsel %vm2871, %v3500, 0
      %v3520 = vsel %vm2871, %v3501, 0
      %v3523 = vsel %vm2871, %v3502, 0
      %v3526 = vsel %vm2871, %v3503, 0
      %3528 = vmatpush.bf16.msra.mxu0 0
      %3529 = vmatpush.bf16.msra.mxu0 0
      %3530 = vmatpush.bf16.msra.mxu0 0
      %3531 = vmatpush.bf16.msra.mxu0 0
      %3532 = vmatpush.bf16.msra.mxu0 0
      %3533 = vmatpush.bf16.msra.mxu0 0
      %3534 = vmatpush.bf16.msra.mxu0 %v3367
      %3535 = vmatpush.bf16.msra.mxu0 %v3366
      %3536 = vmatmul.bf16.gmra.mxu0 %v3505
      %v3537 = vpop.f32.mrf.mxu0
      %v3538 = vadd.f32 %v3387, %v3537
      %v3539 = vpop.f32.mrf.mxu0
      %v3540 = vadd.f32 %v3392, %v3539
      %3541 = vmatmul.bf16.gmra.mxu0 %v3508
      %v3542 = vpop.f32.mrf.mxu0
      %v3543 = vadd.f32 %v3397, %v3542
      %v3544 = vpop.f32.mrf.mxu0
      %v3545 = vadd.f32 %v3402, %v3544
      %3546 = vmatmul.bf16.gmra.mxu0 %v3511
      %v3547 = vpop.f32.mrf.mxu0
      %v3548 = vadd.f32 %v3407, %v3547
      %v3549 = vpop.f32.mrf.mxu0
      %v3550 = vadd.f32 %v3412, %v3549
      %3551 = vmatmul.bf16.gmra.mxu0 %v3514
      %v3552 = vpop.f32.mrf.mxu0
      %v3553 = vadd.f32 %v3417, %v3552
      %v3554 = vpop.f32.mrf.mxu0
      %v3555 = vadd.f32 %v3422, %v3554
      %3556 = vmatmul.bf16.gmra.mxu0 %v3517
      %v3557 = vpop.f32.mrf.mxu0
      %v3558 = vadd.f32 %v3427, %v3557
      %v3559 = vpop.f32.mrf.mxu0
      %v3560 = vadd.f32 %v3432, %v3559
      %3561 = vmatmul.bf16.gmra.mxu0 %v3520
      %v3562 = vpop.f32.mrf.mxu0
      %v3563 = vadd.f32 %v3437, %v3562
      %v3564 = vpop.f32.mrf.mxu0
      %v3565 = vadd.f32 %v3442, %v3564
      %3566 = vmatmul.bf16.gmra.mxu0 %v3523
      %v3567 = vpop.f32.mrf.mxu0
      %v3568 = vadd.f32 %v3447, %v3567
      %v3569 = vpop.f32.mrf.mxu0
      %v3570 = vadd.f32 %v3452, %v3569
      %3571 = vmatmul.bf16.gmra.mxu0 %v3526
      %v3572 = vpop.f32.mrf.mxu0
      %v3573 = vadd.f32 %v3457, %v3572
      %v3574 = vpop.f32.mrf.mxu0
      %v3575 = vadd.f32 %v3462, %v3574
      %3576 = vdwg.mxu0
      %v3577 = vmax.f32 %v3538, 0.0
      %v3578 = vmax.f32 %v3540, 0.0
      %v3579 = vmax.f32 %v3543, 0.0
      %v3580 = vmax.f32 %v3545, 0.0
      %v3581 = vmax.f32 %v3548, 0.0
      %v3582 = vmax.f32 %v3550, 0.0
      %v3583 = vmax.f32 %v3553, 0.0
      %v3584 = vmax.f32 %v3555, 0.0
      %v3585 = vmax.f32 %v3558, 0.0
      %v3586 = vmax.f32 %v3560, 0.0
      %v3587 = vmax.f32 %v3563, 0.0
      %v3588 = vmax.f32 %v3565, 0.0
      %v3589 = vmax.f32 %v3568, 0.0
      %v3590 = vmax.f32 %v3570, 0.0
      %v3591 = vmax.f32 %v3573, 0.0
      %v3592 = vmax.f32 %v3575, 0.0
      %v3593 = vld [vmem:[%s65] sm:$0x1]
      %v3594 = vld [vmem:[%s67] sm:$0xf]
      %v3595 = vld [vmem:[%s67 + $0x4] sm:$0xf]
      %v3596 = vld [vmem:[%s67 + $0x8] sm:$0xf]
      %v3597 = vld [vmem:[%s67 + $0xc] sm:$0xf]
      %v3598 = vld [vmem:[%s67 + $0x10] sm:$0xf]
      %v3599 = vld [vmem:[%s67 + $0x14] sm:$0xf]
      %v3600 = vld [vmem:[%s67 + $0x18] sm:$0xf]
      %v3601 = vld [vmem:[%s67 + $0x1c] sm:$0xf]
      %v3602 = vld [vmem:[%s67 + $0x20] sm:$0xf]
      %v3603 = vld [vmem:[%s67 + $0x24] sm:$0xf]
      %v3604 = vld [vmem:[%s67 + $0x28] sm:$0xf]
      %v3605 = vld [vmem:[%s67 + $0x2c] sm:$0xf]
      %v3606 = vld [vmem:[%s67 + $0x30] sm:$0xf]
      %v3607 = vld [vmem:[%s67 + $0x34] sm:$0xf]
      %v3608 = vld [vmem:[%s67 + $0x38] sm:$0xf]
      %v3609 = vld [vmem:[%s67 + $0x3c] sm:$0xf]
      %v3610 = vpack.c.bf16 %v3578, %v3577
      %v3611 = vpack.c.bf16 %v3580, %v3579
      %v3612 = vpack.c.bf16 %v3582, %v3581
      %v3613 = vpack.c.bf16 %v3584, %v3583
      %v3614 = vpack.c.bf16 %v3586, %v3585
      %v3615 = vpack.c.bf16 %v3588, %v3587
      %v3616 = vpack.c.bf16 %v3590, %v3589
      %v3617 = vpack.c.bf16 %v3592, %v3591
      %v3618 = vld [vmem:[%s69] sm:$0xff]
      %v3619 = vld [vmem:[%s69 + $0x8] sm:$0xff]
      %v3620 = vld [vmem:[%s69 + $0x10] sm:$0xff]
      %v3621 = vld [vmem:[%s69 + $0x18] sm:$0xff]
      %v3622 = vld [vmem:[%s69 + $0x20] sm:$0xff]
      %v3623 = vld [vmem:[%s69 + $0x28] sm:$0xff]
      %v3624 = vld [vmem:[%s69 + $0x30] sm:$0xff]
      %v3625 = vld [vmem:[%s69 + $0x38] sm:$0xff]
      %v3626 = vld [vmem:[%s69 + $0x40] sm:$0xff]
      %v3627 = vld [vmem:[%s69 + $0x48] sm:$0xff]
      %v3628 = vld [vmem:[%s69 + $0x50] sm:$0xff]
      %v3629 = vld [vmem:[%s69 + $0x58] sm:$0xff]
      %v3630 = vld [vmem:[%s69 + $0x60] sm:$0xff]
      %v3631 = vld [vmem:[%s69 + $0x68] sm:$0xff]
      %v3632 = vld [vmem:[%s69 + $0x70] sm:$0xff]
      %v3633 = vld [vmem:[%s69 + $0x78] sm:$0xff]
      %3635 = vset.pattern.permute.xlu0 0
      %3636 = vperm.xlu0 %3635, %v3618
      %v3637 = vpop.permute.xlu0 %3636
      %3640 = vset.pattern.permute.xlu0 0
      %3641 = vperm.xlu0 %3640, %v3619
      %v3642 = vpop.permute.xlu0 %3641
      %3645 = vset.pattern.permute.xlu0 0
      %3646 = vperm.xlu0 %3645, %v3620
      %v3647 = vpop.permute.xlu0 %3646
      %3650 = vset.pattern.permute.xlu0 0
      %3651 = vperm.xlu0 %3650, %v3621
      %v3652 = vpop.permute.xlu0 %3651
      %3655 = vset.pattern.permute.xlu0 0
      %3656 = vperm.xlu0 %3655, %v3622
      %v3657 = vpop.permute.xlu0 %3656
      %3660 = vset.pattern.permute.xlu0 0
      %3661 = vperm.xlu0 %3660, %v3623
      %v3662 = vpop.permute.xlu0 %3661
      %3665 = vset.pattern.permute.xlu0 0
      %3666 = vperm.xlu0 %3665, %v3624
      %v3667 = vpop.permute.xlu0 %3666
      %3670 = vset.pattern.permute.xlu0 0
      %3671 = vperm.xlu0 %3670, %v3625
      %v3672 = vpop.permute.xlu0 %3671
      %3675 = vset.pattern.permute.xlu0 0
      %3676 = vperm.xlu0 %3675, %v3626
      %v3677 = vpop.permute.xlu0 %3676
      %3680 = vset.pattern.permute.xlu0 0
      %3681 = vperm.xlu0 %3680, %v3627
      %v3682 = vpop.permute.xlu0 %3681
      %3685 = vset.pattern.permute.xlu0 0
      %3686 = vperm.xlu0 %3685, %v3628
      %v3687 = vpop.permute.xlu0 %3686
      %3690 = vset.pattern.permute.xlu0 0
      %3691 = vperm.xlu0 %3690, %v3629
      %v3692 = vpop.permute.xlu0 %3691
      %3695 = vset.pattern.permute.xlu0 0
      %3696 = vperm.xlu0 %3695, %v3630
      %v3697 = vpop.permute.xlu0 %3696
      %3700 = vset.pattern.permute.xlu0 0
      %3701 = vperm.xlu0 %3700, %v3631
      %v3702 = vpop.permute.xlu0 %3701
      %3705 = vset.pattern.permute.xlu0 0
      %3706 = vperm.xlu0 %3705, %v3632
      %v3707 = vpop.permute.xlu0 %3706
      %3710 = vset.pattern.permute.xlu0 0
      %3711 = vperm.xlu0 %3710, %v3633
      %v3712 = vpop.permute.xlu0 %3711
      %v3730 = vunpack.c.l.b16 %v3594
      %v3731 = vunpack.c.l.b16 %v3595
      %v3732 = vunpack.c.l.b16 %v3596
      %v3733 = vunpack.c.l.b16 %v3597
      %v3734 = vunpack.c.l.b16 %v3598
      %v3735 = vunpack.c.l.b16 %v3599
      %v3736 = vunpack.c.l.b16 %v3600
      %v3737 = vunpack.c.l.b16 %v3601
      %v3738 = vunpack.c.l.b16 %v3602
      %v3739 = vunpack.c.l.b16 %v3603
      %v3740 = vunpack.c.l.b16 %v3604
      %v3741 = vunpack.c.l.b16 %v3605
      %v3742 = vunpack.c.l.b16 %v3606
      %v3743 = vunpack.c.l.b16 %v3607
      %v3744 = vunpack.c.l.b16 %v3608
      %v3745 = vunpack.c.l.b16 %v3609
      %v3746 = vpack.c.b16 %v3731, %v3730
      %v3747 = vpack.c.b16 %v3733, %v3732
      %v3748 = vpack.c.b16 %v3735, %v3734
      %v3749 = vpack.c.b16 %v3737, %v3736
      %v3750 = vpack.c.b16 %v3739, %v3738
      %v3751 = vpack.c.b16 %v3741, %v3740
      %v3752 = vpack.c.b16 %v3743, %v3742
      %v3753 = vpack.c.b16 %v3745, %v3744
      %3762 = vmatpush.bf16.msra.mxu0 %v3617
      %3763 = vmatpush.bf16.msra.mxu0 %v3616
      %3764 = vmatpush.bf16.msra.mxu0 %v3615
      %3765 = vmatpush.bf16.msra.mxu0 %v3614
      %3766 = vmatpush.bf16.msra.mxu0 %v3613
      %3767 = vmatpush.bf16.msra.mxu0 %v3612
      %3768 = vmatpush.bf16.msra.mxu0 %v3611
      %3769 = vmatpush.bf16.msra.mxu0 %v3610
      %3770 = vmatmul.bf16.gmra.mxu0 %v3746
      %v3771 = vpop.f32.mrf.mxu0
      %v3772 = vadd.f32 %v3637, %v3771
      %v3773 = vpop.f32.mrf.mxu0
      %v3774 = vadd.f32 %v3642, %v3773
      %3775 = vmatmul.bf16.gmra.mxu0 %v3747
      %v3776 = vpop.f32.mrf.mxu0
      %v3777 = vadd.f32 %v3647, %v3776
      %v3778 = vpop.f32.mrf.mxu0
      %v3779 = vadd.f32 %v3652, %v3778
      %3780 = vmatmul.bf16.gmra.mxu0 %v3748
      %v3781 = vpop.f32.mrf.mxu0
      %v3782 = vadd.f32 %v3657, %v3781
      %v3783 = vpop.f32.mrf.mxu0
      %v3784 = vadd.f32 %v3662, %v3783
      %3785 = vmatmul.bf16.gmra.mxu0 %v3749
      %v3786 = vpop.f32.mrf.mxu0
      %v3787 = vadd.f32 %v3667, %v3786
      %v3788 = vpop.f32.mrf.mxu0
      %v3789 = vadd.f32 %v3672, %v3788
      %3790 = vmatmul.bf16.gmra.mxu0 %v3750
      %v3791 = vpop.f32.mrf.mxu0
      %v3792 = vadd.f32 %v3677, %v3791
      %v3793 = vpop.f32.mrf.mxu0
      %v3794 = vadd.f32 %v3682, %v3793
      %3795 = vmatmul.bf16.gmra.mxu0 %v3751
      %v3796 = vpop.f32.mrf.mxu0
      %v3797 = vadd.f32 %v3687, %v3796
      %v3798 = vpop.f32.mrf.mxu0
      %v3799 = vadd.f32 %v3692, %v3798
      %3800 = vmatmul.bf16.gmra.mxu0 %v3752
      %v3801 = vpop.f32.mrf.mxu0
      %v3802 = vadd.f32 %v3697, %v3801
      %v3803 = vpop.f32.mrf.mxu0
      %v3804 = vadd.f32 %v3702, %v3803
      %3805 = vmatmul.bf16.gmra.mxu0 %v3753
      %v3806 = vpop.f32.mrf.mxu0
      %v3807 = vadd.f32 %v3707, %v3806
      %v3808 = vpop.f32.mrf.mxu0
      %v3809 = vadd.f32 %v3712, %v3808
      %3810 = vdwg.mxu0
      %v3811 = vmax.f32 %v3772, 0.0
      %v3812 = vmax.f32 %v3774, 0.0
      %v3813 = vmax.f32 %v3777, 0.0
      %v3814 = vmax.f32 %v3779, 0.0
      %v3815 = vmax.f32 %v3782, 0.0
      %v3816 = vmax.f32 %v3784, 0.0
      %v3817 = vmax.f32 %v3787, 0.0
      %v3818 = vmax.f32 %v3789, 0.0
      %v3819 = vmax.f32 %v3792, 0.0
      %v3820 = vmax.f32 %v3794, 0.0
      %v3821 = vmax.f32 %v3797, 0.0
      %v3822 = vmax.f32 %v3799, 0.0
      %v3823 = vmax.f32 %v3802, 0.0
      %v3824 = vmax.f32 %v3804, 0.0
      %v3825 = vmax.f32 %v3807, 0.0
      %v3826 = vmax.f32 %v3809, 0.0
      %v3827 = vld [vmem:[%s71] sm:$0x1]
      %3828 = vmatpush.msra.mxu0 %v3826
      %3829 = vmatpush.msra.mxu0 %v3825
      %3830 = vmatpush.msra.mxu0 %v3824
      %3831 = vmatpush.msra.mxu0 %v3823
      %3832 = vmatpush.msra.mxu0 %v3822
      %3833 = vmatpush.msra.mxu0 %v3821
      %3834 = vmatpush.msra.mxu0 %v3820
      %3835 = vmatpush.msra.mxu0 %v3819
      %3836 = vmatpush.msra.mxu0 %v3818
      %3837 = vmatpush.msra.mxu0 %v3817
      %3838 = vmatpush.msra.mxu0 %v3816
      %3839 = vmatpush.msra.mxu0 %v3815
      %3840 = vmatpush.msra.mxu0 %v3814
      %3841 = vmatpush.msra.mxu0 %v3813
      %3842 = vmatpush.msra.mxu0 %v3812
      %3843 = vmatpush.msra.mxu0 %v3811
      %3844 = vmatmul.f32.gmra.mxu0 %v3827
      %v3845 = vpop.f32.mrf.mxu0
      %v3846 = vadd.f32 0.0, %v3845
      %3847 = vdwg.mxu0
      %3848 = vmatpush.msra.mxu0 %v3592
      %3849 = vmatpush.msra.mxu0 %v3591
      %3850 = vmatpush.msra.mxu0 %v3590
      %3851 = vmatpush.msra.mxu0 %v3589
      %3852 = vmatpush.msra.mxu0 %v3588
      %3853 = vmatpush.msra.mxu0 %v3587
      %3854 = vmatpush.msra.mxu0 %v3586
      %3855 = vmatpush.msra.mxu0 %v3585
      %3856 = vmatpush.msra.mxu0 %v3584
      %3857 = vmatpush.msra.mxu0 %v3583
      %3858 = vmatpush.msra.mxu0 %v3582
      %3859 = vmatpush.msra.mxu0 %v3581
      %3860 = vmatpush.msra.mxu0 %v3580
      %3861 = vmatpush.msra.mxu0 %v3579
      %3862 = vmatpush.msra.mxu0 %v3578
      %3863 = vmatpush.msra.mxu0 %v3577
      %3864 = vmatmul.f32.gmra.mxu0 %v3593
      %v3865 = vpop.f32.mrf.mxu0
      %v3866 = vadd.f32 %v3846, %v3865
      %3867 = vdwg.mxu0
      %vm3868 = vcmask 24576
      %3869 = vst.msk [vmem:[%s1256] sm:$0x1] %vm3868, %v3866
      %p3870 = scmp.lt.s32.totalorder %s91, 1
      %s3871 = scalar_select %p3870, %s91, 1
      %s3872 = smul.addr %s3871, 2
      %s3873 = scalar_lea.vmem %s73, %s3872
      %p3874 = scmp.lt.s32.totalorder %s91, 1
      %s3875 = scalar_select %p3874, %s91, 1
      %s3876 = scalar_lea.vmem %s75, %s3875
      %p3877 = scmp.lt.s32.totalorder %s91, 1
      %s3878 = scalar_select %p3877, %s91, 1
      %s3879 = scalar_lea.vmem %s77, %s3878
      %p3880 = scmp.lt.s32.totalorder %s91, 1
      %s3881 = scalar_select %p3880, %s91, 1
      %s3882 = scalar_lea.vmem %s79, %s3881
      // Predicated region
      $region165: #{eed_forward.2} parent=163 // pred_check
        %p3883 = pneg %p885
      $region166: #{eed_forward.2} parent=163 // pred_check_branch
        %3885 = sbr.rel (%p3883) target = $region168
      $region167: #{eed_forward.2} parent=163 // pred_region
        _
      $region168: #{eed_forward.2} parent=163 // pred_fallthru
        _
      // Predicated region
      $region169: #{eed_forward.2} parent=163 // pred_check
        %p3886 = pneg %p911
      $region170: #{eed_forward.2} parent=163 // pred_check_branch
        %3888 = sbr.rel (%p3886) target = $region172
      $region171: #{eed_forward.2} parent=163 // pred_region
        _
      $region172: #{eed_forward.2} parent=163 // pred_fallthru
        _
      // Predicated region
      $region173: #{eed_forward.2} parent=163 // pred_check
        %p3889 = pneg %p937
      $region174: #{eed_forward.2} parent=163 // pred_check_branch
        %3891 = sbr.rel (%p3889) target = $region176
      $region175: #{eed_forward.2} parent=163 // pred_region
        _
      $region176: #{eed_forward.2} parent=163 // pred_fallthru
        _
      // Predicated region
      $region177: #{eed_forward.2} parent=163 // pred_check
        %p3892 = pneg %p963
      $region178: #{eed_forward.2} parent=163 // pred_check_branch
        %3894 = sbr.rel (%p3892) target = $region180
      $region179: #{eed_forward.2} parent=163 // pred_region
        _
      $region180: #{eed_forward.2} parent=163 // pred_fallthru
        _
    $region164: #{eed_forward.2} parent=5 // pred_fallthru
      _
    %p3895 = scmp.le.s32.totalorder 2, %s86
    // Predicated region
    $region181: #{eed_forward.2} parent=5 // pred_check
      %p3896 = pneg %p3895
    $region182: #{eed_forward.2} parent=5 // pred_check_branch
      %3898 = sbr.rel (%p3896) target = $region184
    $region183: #{eed_forward.2} parent=5 // pred_region
      %s3899 = ssub.s32 %s86, 2
      // Predicated region
      $region185: #{eed_forward.2} parent=183 // pred_check
        %p3900 = pneg %p891
      $region186: #{eed_forward.2} parent=183 // pred_check_branch
        %3902 = sbr.rel (%p3900) target = $region188
      $region187: #{eed_forward.2} parent=183 // pred_region
        %p3903 = scmp.lt.s32.totalorder %s92, 1
        %s3904 = scalar_select %p3903, %s92, 1
        %s3905 = smul.addr %s3904, 2
        %s3906 = scalar_lea.vmem %s73, %s3905
      $region188: #{eed_forward.2} parent=183 // pred_fallthru
        _
      // Predicated region
      $region189: #{eed_forward.2} parent=183 // pred_check
        %p3907 = pneg %p917
      $region190: #{eed_forward.2} parent=183 // pred_check_branch
        %3909 = sbr.rel (%p3907) target = $region192
      $region191: #{eed_forward.2} parent=183 // pred_region
        %p3910 = scmp.lt.s32.totalorder %s92, 1
        %s3911 = scalar_select %p3910, %s92, 1
        %s3912 = scalar_lea.vmem %s75, %s3911
      $region192: #{eed_forward.2} parent=183 // pred_fallthru
        _
      // Predicated region
      $region193: #{eed_forward.2} parent=183 // pred_check
        %p3913 = pneg %p943
      $region194: #{eed_forward.2} parent=183 // pred_check_branch
        %3915 = sbr.rel (%p3913) target = $region196
      $region195: #{eed_forward.2} parent=183 // pred_region
        %p3916 = scmp.lt.s32.totalorder %s92, 1
        %s3917 = scalar_select %p3916, %s92, 1
        %s3918 = scalar_lea.vmem %s77, %s3917
      $region196: #{eed_forward.2} parent=183 // pred_fallthru
        _
      // Predicated region
      $region197: #{eed_forward.2} parent=183 // pred_check
        %p3919 = pneg %p969
      $region198: #{eed_forward.2} parent=183 // pred_check_branch
        %3921 = sbr.rel (%p3919) target = $region200
      $region199: #{eed_forward.2} parent=183 // pred_region
        %p3922 = scmp.lt.s32.totalorder %s92, 1
        %s3923 = scalar_select %p3922, %s92, 1
        %s3924 = scalar_lea.vmem %s79, %s3923
      $region200: #{eed_forward.2} parent=183 // pred_fallthru
        _
    $region184: #{eed_forward.2} parent=5 // pred_fallthru
      _
  $region6: #{eed_forward.2} parent=0 // loop_footer
    %s90 = sadd.s32 1, %s86
  $region7: #{eed_forward.2} parent=0 // loop_footer_branch
    %85 = sbr.rel target = $region3
  $region8: #{eed_forward.2} parent=0 // loop_exit
    _

</llo_original>
